<compile_context>
chip_gen: v7x
topology: tpu7x:2x2x1
jax: 0.10.0
libtpu: 0.0.40
codegen_flags: <defaults>
</compile_context>

<pallas_src>
import math

import jax
import jax.numpy as jnp
from jax.experimental import pallas as pl
from jax.experimental.pallas import tpu as pltpu

EMBED_DIM = 32
NUM_HEADS = 4
HEAD_DIM = EMBED_DIM // NUM_HEADS
SEQ = 8
BATCH = 2
LN_EPS = 1e-5

_HIGH = jax.lax.Precision.HIGHEST


def self_attn_layer_kernel(x_ref, wqkv_ref, bqkv_ref, wo_ref, obg_ref,
                           hm2_ref, seg_ones_ref, qvalid_ref, out_ref):
    """Whole layer in one launch.

    x_ref:        (B*S, E)        flattened tokens
    wqkv_ref:     (E, 3E)         fused, pre-transposed in-proj weight (Q columns pre-scaled)
    bqkv_ref:     (1, 3E)         fused in-proj bias (Q part pre-scaled)
    wo_ref:       (E, E)          pre-transposed out-proj weight
    obg_ref:      (3, E)          row0 = out-proj bias, row1 = LN gamma, row2 = LN beta
    hm2_ref:      (B*H*S, 2E)     head mask for the tiled [K|V] rows (heads-major layout)
    seg_ones_ref: (B*H*S, B*H*S)  block-diagonal SxS ones (per-(head,batch) segment sums)
    qvalid_ref:   (B*S, B*H*S)    1.0 where the key row belongs to the query's batch
    out_ref:      (B*S, E)
    """
    E, H = EMBED_DIM, NUM_HEADS

    x = x_ref[...]                                                        # (BS, E)

    # ---- fused, pre-transposed, pre-scaled QKV in-projection: one MXU pass ----
    qkv = jnp.dot(x, wqkv_ref[...], precision=_HIGH,
                  preferred_element_type=jnp.float32) + bqkv_ref[...]     # (BS, 3E)
    q = qkv[:, :E]                                                        # (BS, E), pre-scaled
    kv = qkv[:, E:]                                                       # (BS, 2E) = [K | V]

    # ---- block-diagonal K/V rows for ALL batches & heads (heads-major layout) ----
    # row r = h*(B*S) + b*S + t  ->  [K|V] row of token (b, t), masked to head h's columns.
    kv_rows = jnp.tile(kv, (H, 1)) * hm2_ref[...]                         # (B*H*S, 2E)
    k_rows = kv_rows[:, :E]                                               # (R, E)
    v_rows = kv_rows[:, E:]                                               # (R, E)

    # ---- all-(batch, head) scores in one MXU pass; contract on E of both operands ----
    s = jax.lax.dot_general(q, k_rows, (((1,), (1,)), ((), ())),
                            precision=_HIGH,
                            preferred_element_type=jnp.float32)           # (BS, R)

    qvalid = qvalid_ref[...]                                              # (BS, R)
    inv_valid = 1.0 - qvalid
    s = s - inv_valid * 1e30                                              # kill cross-batch scores

    # Row max is shared across heads (constant per softmax segment -> mathematically exact).
    # TODO(synk): with extreme logit ranges a whole head segment could underflow; the +1e-30
    # below then yields zeros for that head instead of NaN (a per-segment max would be exact).
    p = jnp.exp(s - jnp.max(s, axis=-1, keepdims=True))                   # (BS, R)

    # Per-(head, batch) segment sums via block-diag-ones matmul; exact normalization divide.
    seg = jnp.dot(p, seg_ones_ref[...], precision=_HIGH,
                  preferred_element_type=jnp.float32)                     # (BS, R)
    p = p / (seg + inv_valid + 1e-30)
    # TODO(synk): attention-weight dropout & residual dropout skipped (eval mode => identity).

    # ---- concatenated per-head outputs for all batches in one MXU pass ----
    attn = jnp.dot(p, v_rows, precision=_HIGH,
                   preferred_element_type=jnp.float32)                    # (BS, E)

    # ---- out-projection (pre-transposed) + bias ----
    o = jnp.dot(attn, wo_ref[...], precision=_HIGH,
                preferred_element_type=jnp.float32) + obg_ref[0:1, :]

    # ---- residual + LayerNorm over E ----
    y = x + o
    mean = jnp.mean(y, axis=-1, keepdims=True)
    yc = y - mean
    var = jnp.mean(yc * yc, axis=-1, keepdims=True)
    y_norm = yc * jax.lax.rsqrt(var + LN_EPS)
    out_ref[...] = y_norm * obg_ref[1:2, :] + obg_ref[2:3, :]


def prepare_params(in_proj_w, in_proj_b, wo, bo, gamma, beta):
    """One-time host-side parameter / constant preparation (outside the per-call jit)."""
    E, H, hd, S, B = EMBED_DIM, NUM_HEADS, HEAD_DIM, SEQ, BATCH
    BS, R = B * S, B * H * S
    scale = 1.0 / math.sqrt(hd)

    w_t = in_proj_w.T.astype(jnp.float32)                                  # (E, 3E)
    w_qkv_t = jnp.concatenate([w_t[:, :E] * scale, w_t[:, E:]], axis=1)    # fold 1/sqrt(hd) into Q
    b = in_proj_b.astype(jnp.float32)
    b_qkv = jnp.concatenate([b[:E] * scale, b[E:]]).reshape(1, 3 * E)      # (1, 3E)
    wo_t = wo.T.astype(jnp.float32)                                        # (E, E)
    obg = jnp.stack([bo, gamma, beta], axis=0).astype(jnp.float32)         # (3, E)

    # Heads-major row index r = h*(B*S) + b*S + t, so jnp.tile(kv, (H, 1)) yields the rows.
    r = jnp.arange(R)
    e = jnp.arange(E)
    head_of_r = r // BS
    hm = (head_of_r[:, None] == (e[None, :] // hd)).astype(jnp.float32)    # (R, E)
    hm2 = jnp.concatenate([hm, hm], axis=1)                                # (R, 2E) for [K|V]
    seg_ones = ((r[:, None] // S) == (r[None, :] // S)).astype(jnp.float32)        # (R, R)
    i = jnp.arange(BS)
    batch_of_r = (r // S) % B
    qvalid = ((i[:, None] // S) == batch_of_r[None, :]).astype(jnp.float32)        # (BS, R)

    return (w_qkv_t, b_qkv, wo_t, obg, hm2, seg_ones, qvalid)


@jax.jit
def self_attention_layer(x, params):
    """x: (B, S, E) float32; params: output of prepare_params()."""
    w_qkv_t, b_qkv, wo_t, obg, hm2, seg_ones, qvalid = params
    B, S, E = x.shape
    x2d = x.reshape(B * S, E)

    vmem = pltpu.MemorySpace.VMEM
    out2d = pl.pallas_call(
        self_attn_layer_kernel,
        out_shape=jax.ShapeDtypeStruct((B * S, E), jnp.float32),
        in_specs=[pl.BlockSpec(memory_space=vmem)] * 8,
        out_specs=pl.BlockSpec(memory_space=vmem),
    )(x2d, w_qkv_t, b_qkv, wo_t, obg, hm2, seg_ones, qvalid)
    return out2d.reshape(B, S, E)


def reference_jax(x, wq, wk, wv, bq, bk, bv, wo, bo, gamma, beta):
    """Pure-JAX reference mirroring PyTorch MultiheadAttention (eval) + LayerNorm."""
    B, S, E = x.shape
    q = jnp.dot(x, wq.T, precision=_HIGH) + bq
    k = jnp.dot(x, wk.T, precision=_HIGH) + bk
    v = jnp.dot(x, wv.T, precision=_HIGH) + bv
    qh = q.reshape(B, S, NUM_HEADS, HEAD_DIM).transpose(0, 2, 1, 3)
    kh = k.reshape(B, S, NUM_HEADS, HEAD_DIM).transpose(0, 2, 1, 3)
    vh = v.reshape(B, S, NUM_HEADS, HEAD_DIM).transpose(0, 2, 1, 3)
    s = jnp.einsum("bhqd,bhkd->bhqk", qh, kh, precision=_HIGH) / math.sqrt(HEAD_DIM)
    p = jax.nn.softmax(s, axis=-1)
    o = jnp.einsum("bhqk,bhkd->bhqd", p, vh, precision=_HIGH)
    o = o.transpose(0, 2, 1, 3).reshape(B, S, E)
    o = jnp.dot(o, wo.T, precision=_HIGH) + bo
    y = x + o
    mean = jnp.mean(y, axis=-1, keepdims=True)
    var = jnp.mean((y - mean) ** 2, axis=-1, keepdims=True)
    return (y - mean) / jnp.sqrt(var + LN_EPS) * gamma + beta


if __name__ == "__main__":
    key = jax.random.PRNGKey(0)
    keys = jax.random.split(key, 8)

    x = jax.random.normal(keys[0], (BATCH, SEQ, EMBED_DIM), dtype=jnp.float32)

    # Deterministic parameter init (shapes follow nn.MultiheadAttention / nn.LayerNorm).
    in_proj_w = (jax.random.normal(keys[1], (3 * EMBED_DIM, EMBED_DIM), dtype=jnp.float32)
                 * (1.0 / math.sqrt(EMBED_DIM)))
    in_proj_b = jax.random.normal(keys[2], (3 * EMBED_DIM,), dtype=jnp.float32) * 0.02
    wo = (jax.random.normal(keys[3], (EMBED_DIM, EMBED_DIM), dtype=jnp.float32)
          * (1.0 / math.sqrt(EMBED_DIM)))
    bo = jax.random.normal(keys[4], (EMBED_DIM,), dtype=jnp.float32) * 0.02
    gamma = 1.0 + 0.1 * jax.random.normal(keys[5], (EMBED_DIM,), dtype=jnp.float32)
    beta = 0.05 * jax.random.normal(keys[6], (EMBED_DIM,), dtype=jnp.float32)

    params = prepare_params(in_proj_w, in_proj_b, wo, bo, gamma, beta)

    out = self_attention_layer(x, params)
    out = jax.block_until_ready(out)

    wq, wk, wv = (in_proj_w[:EMBED_DIM], in_proj_w[EMBED_DIM:2 * EMBED_DIM],
                  in_proj_w[2 * EMBED_DIM:])
    bq, bk, bv = (in_proj_b[:EMBED_DIM], in_proj_b[EMBED_DIM:2 * EMBED_DIM],
                  in_proj_b[2 * EMBED_DIM:])
    ref = reference_jax(x, wq, wk, wv, bq, bk, bv, wo, bo, gamma, beta)

    assert out.shape == (BATCH, SEQ, EMBED_DIM)
    assert jnp.allclose(out, ref, atol=2e-3, rtol=2e-3), "mismatch vs JAX reference"

    print("KERNEL_OK")
</pallas_src>

<mosaic_0001>
module attributes {stable_mosaic.version = 11 : i64} {
  func.func @self_attn_layer_kernel(%arg0: memref<16x32xf32, #tpu.memory_space<vmem>>, %arg1: memref<32x96xf32, #tpu.memory_space<vmem>>, %arg2: memref<1x96xf32, #tpu.memory_space<vmem>>, %arg3: memref<32x32xf32, #tpu.memory_space<vmem>>, %arg4: memref<3x32xf32, #tpu.memory_space<vmem>>, %arg5: memref<64x64xf32, #tpu.memory_space<vmem>>, %arg6: memref<64x64xf32, #tpu.memory_space<vmem>>, %arg7: memref<16x64xf32, #tpu.memory_space<vmem>>, %arg8: memref<16x32xf32, #tpu.memory_space<vmem>>) attributes {dimension_semantics = [], scalar_prefetch = 0 : i64, scratch_operands = 0 : i64, tpu.core_type = #tpu.core_type<tc>} {
    %c0 = arith.constant 0 : index
    %c0_0 = arith.constant 0 : index
    %0 = vector.load %arg0[%c0, %c0_0] : memref<16x32xf32, #tpu.memory_space<vmem>>, vector<16x32xf32>
    %c0_1 = arith.constant 0 : index
    %c0_2 = arith.constant 0 : index
    %1 = vector.load %arg1[%c0_1, %c0_2] : memref<32x96xf32, #tpu.memory_space<vmem>>, vector<32x96xf32>
    %cst = arith.constant dense<0.000000e+00> : vector<16x96xf32>
    %2 = tpu.matmul %0, %1, %cst {dimension_numbers = #tpu.dot_dimension_numbers<[1], [0], [0], [1], [0, 0, 1, 1], [], []>, precision = #tpu.contract_precision<fp32>} : vector<16x32xf32>, vector<32x96xf32>, vector<16x96xf32> -> vector<16x96xf32>
    %c0_3 = arith.constant 0 : index
    %c0_4 = arith.constant 0 : index
    %3 = vector.load %arg2[%c0_3, %c0_4] : memref<1x96xf32, #tpu.memory_space<vmem>>, vector<1x96xf32>
    %4 = vector.broadcast %3 : vector<1x96xf32> to vector<16x96xf32>
    %5 = arith.addf %2, %4 : vector<16x96xf32>
    %6 = vector.extract_strided_slice %5 {offsets = [0, 0], sizes = [16, 32], strides = [1, 1]} : vector<16x96xf32> to vector<16x32xf32>
    %7 = vector.extract_strided_slice %5 {offsets = [0, 32], sizes = [16, 64], strides = [1, 1]} : vector<16x96xf32> to vector<16x64xf32>
    %8 = tpu.concatenate %7, %7, %7, %7 in 0 : vector<16x64xf32>, vector<16x64xf32>, vector<16x64xf32>, vector<16x64xf32> -> vector<64x64xf32>
    %c0_5 = arith.constant 0 : index
    %c0_6 = arith.constant 0 : index
    %9 = vector.load %arg5[%c0_5, %c0_6] : memref<64x64xf32, #tpu.memory_space<vmem>>, vector<64x64xf32>
    %10 = arith.mulf %8, %9 : vector<64x64xf32>
    %11 = vector.extract_strided_slice %10 {offsets = [0, 0], sizes = [64, 32], strides = [1, 1]} : vector<64x64xf32> to vector<64x32xf32>
    %12 = vector.extract_strided_slice %10 {offsets = [0, 32], sizes = [64, 32], strides = [1, 1]} : vector<64x64xf32> to vector<64x32xf32>
    %cst_7 = arith.constant dense<0.000000e+00> : vector<16x64xf32>
    %13 = tpu.matmul %6, %11, %cst_7 {dimension_numbers = #tpu.dot_dimension_numbers<[1], [1], [0], [0], [0, 0, 1, 0], [], []>, precision = #tpu.contract_precision<fp32>} : vector<16x32xf32>, vector<64x32xf32>, vector<16x64xf32> -> vector<16x64xf32>
    %c0_8 = arith.constant 0 : index
    %c0_9 = arith.constant 0 : index
    %14 = vector.load %arg7[%c0_8, %c0_9] : memref<16x64xf32, #tpu.memory_space<vmem>>, vector<16x64xf32>
    %cst_10 = arith.constant 1.000000e+00 : f32
    %15 = vector.broadcast %cst_10 : f32 to vector<16x64xf32>
    %16 = arith.subf %15, %14 : vector<16x64xf32>
    %cst_11 = arith.constant 1.000000e+30 : f32
    %17 = vector.broadcast %cst_11 : f32 to vector<16x64xf32>
    %18 = arith.mulf %16, %17 : vector<16x64xf32>
    %19 = arith.subf %13, %18 : vector<16x64xf32>
    %cst_12 = arith.constant dense<0xFF800000> : vector<16xf32>
    %20 = vector.multi_reduction <maximumf>, %19, %cst_12 [1] : vector<16x64xf32> to vector<16xf32>
    %21 = vector.shape_cast %20 : vector<16xf32> to vector<16x1xf32>
    %22 = vector.broadcast %21 : vector<16x1xf32> to vector<16x64xf32>
    %23 = arith.subf %19, %22 : vector<16x64xf32>
    %24 = math.exp %23 : vector<16x64xf32>
    %c0_13 = arith.constant 0 : index
    %c0_14 = arith.constant 0 : index
    %25 = vector.load %arg6[%c0_13, %c0_14] : memref<64x64xf32, #tpu.memory_space<vmem>>, vector<64x64xf32>
    %cst_15 = arith.constant dense<0.000000e+00> : vector<16x64xf32>
    %26 = tpu.matmul %24, %25, %cst_15 {dimension_numbers = #tpu.dot_dimension_numbers<[1], [0], [0], [1], [0, 0, 1, 1], [], []>, precision = #tpu.contract_precision<fp32>} : vector<16x64xf32>, vector<64x64xf32>, vector<16x64xf32> -> vector<16x64xf32>
    %27 = arith.addf %26, %16 : vector<16x64xf32>
    %cst_16 = arith.constant 1.000000e-30 : f32
    %28 = vector.broadcast %cst_16 : f32 to vector<16x64xf32>
    %29 = arith.addf %27, %28 : vector<16x64xf32>
    %30 = arith.divf %24, %29 : vector<16x64xf32>
    %cst_17 = arith.constant dense<0.000000e+00> : vector<16x32xf32>
    %31 = tpu.matmul %30, %12, %cst_17 {dimension_numbers = #tpu.dot_dimension_numbers<[1], [0], [0], [1], [0, 0, 1, 1], [], []>, precision = #tpu.contract_precision<fp32>} : vector<16x64xf32>, vector<64x32xf32>, vector<16x32xf32> -> vector<16x32xf32>
    %c0_18 = arith.constant 0 : index
    %c0_19 = arith.constant 0 : index
    %32 = vector.load %arg3[%c0_18, %c0_19] : memref<32x32xf32, #tpu.memory_space<vmem>>, vector<32x32xf32>
    %cst_20 = arith.constant dense<0.000000e+00> : vector<16x32xf32>
    %33 = tpu.matmul %31, %32, %cst_20 {dimension_numbers = #tpu.dot_dimension_numbers<[1], [0], [0], [1], [0, 0, 1, 1], [], []>, precision = #tpu.contract_precision<fp32>} : vector<16x32xf32>, vector<32x32xf32>, vector<16x32xf32> -> vector<16x32xf32>
    %c0_21 = arith.constant 0 : index
    %c0_22 = arith.constant 0 : index
    %34 = vector.load %arg4[%c0_21, %c0_22] : memref<3x32xf32, #tpu.memory_space<vmem>>, vector<1x32xf32>
    %35 = vector.broadcast %34 : vector<1x32xf32> to vector<16x32xf32>
    %36 = arith.addf %33, %35 : vector<16x32xf32>
    %37 = arith.addf %0, %36 : vector<16x32xf32>
    %cst_23 = arith.constant dense<0.000000e+00> : vector<16xf32>
    %38 = vector.multi_reduction <add>, %37, %cst_23 [1] : vector<16x32xf32> to vector<16xf32>
    %39 = vector.shape_cast %38 : vector<16xf32> to vector<16x1xf32>
    %cst_24 = arith.constant 3.200000e+01 : f32
    %40 = vector.broadcast %cst_24 : f32 to vector<16x1xf32>
    %41 = arith.divf %39, %40 : vector<16x1xf32>
    %42 = vector.broadcast %41 : vector<16x1xf32> to vector<16x32xf32>
    %43 = arith.subf %37, %42 : vector<16x32xf32>
    %44 = arith.mulf %43, %43 : vector<16x32xf32>
    %cst_25 = arith.constant dense<0.000000e+00> : vector<16xf32>
    %45 = vector.multi_reduction <add>, %44, %cst_25 [1] : vector<16x32xf32> to vector<16xf32>
    %46 = vector.shape_cast %45 : vector<16xf32> to vector<16x1xf32>
    %cst_26 = arith.constant 3.200000e+01 : f32
    %47 = vector.broadcast %cst_26 : f32 to vector<16x1xf32>
    %48 = arith.divf %46, %47 : vector<16x1xf32>
    %cst_27 = arith.constant 9.99999974E-6 : f32
    %49 = vector.broadcast %cst_27 : f32 to vector<16x1xf32>
    %50 = arith.addf %48, %49 : vector<16x1xf32>
    %51 = math.rsqrt %50 : vector<16x1xf32>
    %52 = vector.broadcast %51 : vector<16x1xf32> to vector<16x32xf32>
    %53 = arith.mulf %43, %52 : vector<16x32xf32>
    %c1 = arith.constant 1 : index
    %c0_28 = arith.constant 0 : index
    %54 = vector.load %arg4[%c1, %c0_28] : memref<3x32xf32, #tpu.memory_space<vmem>>, vector<1x32xf32>
    %55 = vector.broadcast %54 : vector<1x32xf32> to vector<16x32xf32>
    %56 = arith.mulf %53, %55 : vector<16x32xf32>
    %c2 = arith.constant 2 : index
    %c0_29 = arith.constant 0 : index
    %57 = vector.load %arg4[%c2, %c0_29] : memref<3x32xf32, #tpu.memory_space<vmem>>, vector<1x32xf32>
    %58 = vector.broadcast %57 : vector<1x32xf32> to vector<16x32xf32>
    %59 = arith.addf %56, %58 : vector<16x32xf32>
    %c0_30 = arith.constant 0 : index
    %c0_31 = arith.constant 0 : index
    %60 = vector.load %arg8[%c0_30, %c0_31] : memref<16x32xf32, #tpu.memory_space<vmem>>, vector<16x32xf32>
    tpu.vector_store %arg8[%c0_30, %c0_31], %59 {strides = array<i32>} : memref<16x32xf32, #tpu.memory_space<vmem>>, vector<16x32xf32>,
    return
  }
}

</mosaic_0001>

<llo_original>
// kernel: self_attention_layer.1
$region0: #{self_attention_layer.1}
  #allocation0 [shape = 'u32[]', space=smem, size = 0x4, offset = 0x4, fixed_abs, tag = 'smem constant byte address 0x4 - core index']
  #allocation1 [shape = 'u32[144,128]{1,0:T(1,128)}', space=vmem, size = 0x12000, scoped, tag = 'internal scratch']
  %s0 = inlined_call_operand.hbm [shape: f32[16,32], index: 0, kind: input, shape index: {}]
  %s1 = inlined_call_operand.hbm [shape: f32[32,96], index: 1, kind: input, shape index: {}]
  %s2 = inlined_call_operand.vmem [shape: f32[1,96], index: 2, kind: input, shape index: {}]
  %s3 = inlined_call_operand.hbm [shape: f32[32,32], index: 3, kind: input, shape index: {}]
  %s4 = inlined_call_operand.vmem [shape: f32[3,32], index: 4, kind: input, shape index: {}]
  %s5 = inlined_call_operand.hbm [shape: f32[64,64], index: 5, kind: input, shape index: {}]
  %s6 = inlined_call_operand.hbm [shape: f32[64,64], index: 6, kind: input, shape index: {}]
  %s7 = inlined_call_operand.vmem [shape: f32[16,64], index: 7, kind: input, shape index: {}]
  %s8 = inlined_call_operand.hbm [shape: f32[16,32], index: 8, kind: output, shape index: {}]
  %s9 = sld [smem:[#allocation0]]
  $region62: #{self_attention_layer.1} parent=0
    _
  %s11 = ssub.s32 1, %s9
  %s12 = scalar_select 0, %s11, %s9
  $region1: #{self_attention_layer.1} parent=0
    #allocation2 [shape = 'u8[8192]{0}', space=vmem, size = 0x2000, scoped, tag = 'input window, operand 0, single buffered']
    #allocation3 [shape = 's32[1]{0}', space=sflag, size = 0x4, scoped, tag = 'scoped memory for self_attention_layer.1']
    #allocation4 [shape = 's32[1]{0}', space=sflag, size = 0x4, scoped, tag = 'scoped memory for self_attention_layer.1']
    #allocation5 [shape = 'u8[16384]{0}', space=vmem, size = 0x4000, scoped, tag = 'input window, operand 1, single buffered']
    #allocation6 [shape = 's32[1]{0}', space=sflag, size = 0x4, scoped, tag = 'scoped memory for self_attention_layer.1']
    #allocation7 [shape = 'u8[16384]{0}', space=vmem, size = 0x4000, scoped, tag = 'input window, operand 3, single buffered']
    #allocation8 [shape = 'u8[32768]{0}', space=vmem, size = 0x8000, scoped, tag = 'input window, operand 5, single buffered']
    #allocation9 [shape = 's32[1]{0}', space=sflag, size = 0x4, scoped, tag = 'scoped memory for self_attention_layer.1']
    #allocation10 [shape = 'u8[32768]{0}', space=vmem, size = 0x8000, scoped, tag = 'input window, operand 6, single buffered']
    #allocation11 [shape = 'u8[8192]{0}', space=vmem, size = 0x2000, scoped, tag = 'output window, operand 0, single buffered']
    %13 = vsyncpa [#allocation3], 0
    %14 = vsyncpa [#allocation6], 0
    %15 = vsyncpa [#allocation9], 0
    %16 = vsyncpa [#allocation4], 0
    // Predicated region
    $region2: #{self_attention_layer.1} parent=1 // pred_check
      _
    $region3: #{self_attention_layer.1} parent=1 // pred_check_branch
      %18 = sbr.rel (0) target = $region5
    $region4: #{self_attention_layer.1} parent=1 // pred_region
      %s20 = ssub.s32 256, 256
      %21 = vsyncadd [#allocation3], %s20
      %s22 = sshll.u32 [#allocation2], 4
      %s23 = int_to_ptr.vmem [resolvable:$true] %s22
      %28 = dma.hbm_to_vmem [thread:$0]  %s0, 256, %s23, [#allocation3], 128, 128, 8
    $region5: #{self_attention_layer.1} parent=1 // pred_fallthru
      _
    // Predicated region
    $region6: #{self_attention_layer.1} parent=1 // pred_check
      _
    $region7: #{self_attention_layer.1} parent=1 // pred_check_branch
      %30 = sbr.rel (0) target = $region9
    $region8: #{self_attention_layer.1} parent=1 // pred_region
      %s32 = ssub.s32 512, 512
      %33 = vsyncadd [#allocation6], %s32
      %s34 = sshll.u32 [#allocation5], 4
      %s35 = int_to_ptr.vmem [resolvable:$true] %s34
      %40 = dma.hbm_to_vmem [thread:$0]  %s1, 512, %s35, [#allocation6], 128, 128, 8
    $region9: #{self_attention_layer.1} parent=1 // pred_fallthru
      _
    // Predicated region
    $region10: #{self_attention_layer.1} parent=1 // pred_check
      _
    $region11: #{self_attention_layer.1} parent=1 // pred_check_branch
      %42 = sbr.rel (0) target = $region13
    $region12: #{self_attention_layer.1} parent=1 // pred_region
      _
    $region13: #{self_attention_layer.1} parent=1 // pred_fallthru
      _
    // Predicated region
    $region14: #{self_attention_layer.1} parent=1 // pred_check
      _
    $region15: #{self_attention_layer.1} parent=1 // pred_check_branch
      %44 = sbr.rel (0) target = $region17
    $region16: #{self_attention_layer.1} parent=1 // pred_region
      %s46 = ssub.s32 512, 512
      %47 = vsyncadd [#allocation6], %s46
      %s48 = sshll.u32 [#allocation7], 4
      %s49 = int_to_ptr.vmem [resolvable:$true] %s48
      %54 = dma.hbm_to_vmem [thread:$0]  %s3, 512, %s49, [#allocation6], 128, 128, 8
    $region17: #{self_attention_layer.1} parent=1 // pred_fallthru
      _
    // Predicated region
    $region18: #{self_attention_layer.1} parent=1 // pred_check
      _
    $region19: #{self_attention_layer.1} parent=1 // pred_check_branch
      %56 = sbr.rel (0) target = $region21
    $region20: #{self_attention_layer.1} parent=1 // pred_region
      _
    $region21: #{self_attention_layer.1} parent=1 // pred_fallthru
      _
    // Predicated region
    $region22: #{self_attention_layer.1} parent=1 // pred_check
      _
    $region23: #{self_attention_layer.1} parent=1 // pred_check_branch
      %58 = sbr.rel (0) target = $region25
    $region24: #{self_attention_layer.1} parent=1 // pred_region
      %s60 = ssub.s32 1024, 1024
      %61 = vsyncadd [#allocation9], %s60
      %s62 = sshll.u32 [#allocation8], 4
      %s63 = int_to_ptr.vmem [resolvable:$true] %s62
      %68 = dma.hbm_to_vmem [thread:$0]  %s5, 1024, %s63, [#allocation9], 128, 128, 8
    $region25: #{self_attention_layer.1} parent=1 // pred_fallthru
      _
    // Predicated region
    $region26: #{self_attention_layer.1} parent=1 // pred_check
      _
    $region27: #{self_attention_layer.1} parent=1 // pred_check_branch
      %70 = sbr.rel (0) target = $region29
    $region28: #{self_attention_layer.1} parent=1 // pred_region
      %s72 = ssub.s32 1024, 1024
      %73 = vsyncadd [#allocation9], %s72
      %s74 = sshll.u32 [#allocation10], 4
      %s75 = int_to_ptr.vmem [resolvable:$true] %s74
      %80 = dma.hbm_to_vmem [thread:$0]  %s6, 1024, %s75, [#allocation9], 128, 128, 8
    $region29: #{self_attention_layer.1} parent=1 // pred_fallthru
      _
    // Predicated region
    $region30: #{self_attention_layer.1} parent=1 // pred_check
      _
    $region31: #{self_attention_layer.1} parent=1 // pred_check_branch
      %82 = sbr.rel (0) target = $region33
    $region32: #{self_attention_layer.1} parent=1 // pred_region
      _
    $region33: #{self_attention_layer.1} parent=1 // pred_fallthru
      _
    // Predicated region
    $region34: #{self_attention_layer.1} parent=1 // pred_check
      _
    $region35: #{self_attention_layer.1} parent=1 // pred_check_branch
      %84 = sbr.rel (0) target = $region37
    $region36: #{self_attention_layer.1} parent=1 // pred_region
      %85 = dma.done [#allocation3], 256
    $region37: #{self_attention_layer.1} parent=1 // pred_fallthru
      _
    // Predicated region
    $region38: #{self_attention_layer.1} parent=1 // pred_check
      _
    $region39: #{self_attention_layer.1} parent=1 // pred_check_branch
      %87 = sbr.rel (0) target = $region41
    $region40: #{self_attention_layer.1} parent=1 // pred_region
      %88 = dma.done [#allocation6], 512
    $region41: #{self_attention_layer.1} parent=1 // pred_fallthru
      _
    // Predicated region
    $region42: #{self_attention_layer.1} parent=1 // pred_check
      _
    $region43: #{self_attention_layer.1} parent=1 // pred_check_branch
      %90 = sbr.rel (0) target = $region45
    $region44: #{self_attention_layer.1} parent=1 // pred_region
      %91 = dma.done [#allocation6], 512
    $region45: #{self_attention_layer.1} parent=1 // pred_fallthru
      _
    // Predicated region
    $region46: #{self_attention_layer.1} parent=1 // pred_check
      _
    $region47: #{self_attention_layer.1} parent=1 // pred_check_branch
      %93 = sbr.rel (0) target = $region49
    $region48: #{self_attention_layer.1} parent=1 // pred_region
      %94 = dma.done [#allocation9], 1024
    $region49: #{self_attention_layer.1} parent=1 // pred_fallthru
      _
    // Predicated region
    $region50: #{self_attention_layer.1} parent=1 // pred_check
      _
    $region51: #{self_attention_layer.1} parent=1 // pred_check_branch
      %96 = sbr.rel (0) target = $region53
    $region52: #{self_attention_layer.1} parent=1 // pred_region
      %97 = dma.done [#allocation9], 1024
    $region53: #{self_attention_layer.1} parent=1 // pred_fallthru
      _
    %v98 = vld [vmem:[#allocation2] sm:$0xff]
    %v99 = vld [vmem:[#allocation2 + $0x8] sm:$0xff]
    %v100 = vld [vmem:[#allocation5] sm:$0xff]
    %v101 = vld [vmem:[#allocation5 + $0x8] sm:$0xff]
    %v102 = vld [vmem:[#allocation5 + $0x10] sm:$0xff]
    %v103 = vld [vmem:[#allocation5 + $0x18] sm:$0xff]
    %v104 = vld [vmem:[%s2] sm:$0x1]
    %v106 = vlaneseq
    %v107 = vshrl.u32 %v106, 7
    %v108 = vsub.s32 0, %v107
    %v109 = vrot.slane %v104, %v108
    %vm111 = vcmask 261120
    %v113 = vsel %vm111, %v98, 0
    %v116 = vsel %vm111, %v99, 0
    %118 = vmatprep.subr.mxu0 0.0
    %v119 = vand.u32 %v100, 4294901760
    %120 = vmatpush1.msra.mxu0 %v119
    %121 = vmatprep.subr.mxu0 0.0
    %v122 = vand.u32 %v101, 4294901760
    %123 = vmatpush1.msra.mxu0 %v122
    %124 = vmatprep.subr.mxu0 0.0
    %v125 = vand.u32 %v102, 4294901760
    %126 = vmatpush1.msra.mxu0 %v125
    %127 = vmatprep.subr.mxu0 0.0
    %v128 = vand.u32 %v103, 4294901760
    %129 = vmatpush1.msra.mxu0 %v128
    %130 = vmatprep.subr.mxu0 0.0
    %131 = vmatpush1.msra.mxu0 0.0
    %132 = vmatprep.subr.mxu0 0.0
    %133 = vmatpush1.msra.mxu0 0.0
    %134 = vmatprep.subr.mxu0 0.0
    %135 = vmatpush1.msra.mxu0 0.0
    %136 = vmatprep.subr.mxu0 0.0
    %137 = vmatpush1.msra.mxu0 0.0
    %138 = vmatprep.subr.mxu0 0.0
    %139 = vmatpush1.msra.mxu0 0.0
    %140 = vmatprep.subr.mxu0 0.0
    %141 = vmatpush1.msra.mxu0 0.0
    %142 = vmatprep.subr.mxu0 0.0
    %143 = vmatpush1.msra.mxu0 0.0
    %144 = vmatprep.subr.mxu0 0.0
    %145 = vmatpush1.msra.mxu0 0.0
    %146 = vmatprep.subr.mxu0 0.0
    %147 = vmatpush1.msra.mxu0 0.0
    %148 = vmatprep.subr.mxu0 0.0
    %149 = vmatpush1.msra.mxu0 0.0
    %150 = vmatprep.subr.mxu0 0.0
    %151 = vmatpush1.msra.mxu0 0.0
    %152 = vmatprep.subr.mxu0 0.0
    %153 = vmatpush1.msra.mxu0 0.0
    %154 = vmatprep.subr.mxu0 0.0
    %155 = vmatpush1.msra.mxu0 0.0
    %156 = vmatprep.subr.mxu0 0.0
    %157 = vmatpush1.msra.mxu0 0.0
    %158 = vmatprep.subr.mxu0 0.0
    %159 = vmatpush1.msra.mxu0 0.0
    %160 = vmatprep.subr.mxu0 0.0
    %161 = vmatpush1.msra.mxu0 0.0
    %162 = vmatprep.subr.mxu0 0.0
    %163 = vmatpush1.msra.mxu0 0.0
    %164 = vmatprep.subr.mxu0 0.0
    %165 = vmatpush1.msra.mxu0 0.0
    %166 = vmatprep.subr.mxu0 0.0
    %167 = vmatpush1.msra.mxu0 0.0
    %168 = vmatprep.subr.mxu0 0.0
    %169 = vmatpush1.msra.mxu0 0.0
    %170 = vmatprep.subr.mxu0 0.0
    %171 = vmatpush1.msra.mxu0 0.0
    %172 = vmatprep.subr.mxu0 0.0
    %173 = vmatpush1.msra.mxu0 0.0
    %174 = vmatprep.subr.mxu0 0.0
    %175 = vmatpush1.msra.mxu0 0.0
    %176 = vmatprep.subr.mxu0 0.0
    %177 = vmatpush1.msra.mxu0 0.0
    %178 = vmatprep.subr.mxu0 0.0
    %179 = vmatpush1.msra.mxu0 0.0
    %180 = vmatprep.subr.mxu0 0.0
    %181 = vmatpush1.msra.mxu0 0.0
    %182 = vmatprep.subr.mxu0 0.0
    %183 = vmatpush1.msra.mxu0 0.0
    %184 = vmatprep.subr.mxu0 0.0
    %185 = vmatpush1.msra.mxu0 0.0
    %186 = vmatprep.mubr.f32.mxu0 0.0
    %v187 = vand.u32 %v113, 4294901760
    %v188 = vsub.f32 %v113, %v187
    %v189 = vand.u32 %v188, 4294901760
    %v190 = vsub.f32 %v188, %v189
    %v191 = vand.u32 %v190, 4294901760
    %192 = vmatmul.mubr.f32.gmra.mrb[0].mxu0 %v191
    %v193 = vpop.f32.mrb[0].mxu0
    %v194 = vadd.f32 %v109, %v193
    %v195 = vpop.f32.mrb[0].mxu0
    %196 = vmatprep.mubr.f32.mxu0 0.0
    %v197 = vand.u32 %v116, 4294901760
    %v198 = vsub.f32 %v116, %v197
    %v199 = vand.u32 %v198, 4294901760
    %v200 = vsub.f32 %v198, %v199
    %v201 = vand.u32 %v200, 4294901760
    %202 = vmatmul.mubr.f32.gmra.mrb[0].mxu0 %v201
    %v203 = vpop.f32.mrb[0].mxu0
    %v204 = vadd.f32 %v109, %v203
    %v205 = vpop.f32.mrb[0].mxu0
    %206 = vdwg.mxu0
    %207 = vmatprep.subr.mxu0 0.0
    %v208 = vand.u32 %v100, 4294901760
    %v209 = vsub.f32 %v100, %v208
    %v210 = vand.u32 %v209, 4294901760
    %v211 = vsub.f32 %v209, %v210
    %v212 = vand.u32 %v211, 4294901760
    %213 = vmatpush1.msra.mxu0 %v212
    %214 = vmatprep.subr.mxu0 0.0
    %v215 = vand.u32 %v101, 4294901760
    %v216 = vsub.f32 %v101, %v215
    %v217 = vand.u32 %v216, 4294901760
    %v218 = vsub.f32 %v216, %v217
    %v219 = vand.u32 %v218, 4294901760
    %220 = vmatpush1.msra.mxu0 %v219
    %221 = vmatprep.subr.mxu0 0.0
    %v222 = vand.u32 %v102, 4294901760
    %v223 = vsub.f32 %v102, %v222
    %v224 = vand.u32 %v223, 4294901760
    %v225 = vsub.f32 %v223, %v224
    %v226 = vand.u32 %v225, 4294901760
    %227 = vmatpush1.msra.mxu0 %v226
    %228 = vmatprep.subr.mxu0 0.0
    %v229 = vand.u32 %v103, 4294901760
    %v230 = vsub.f32 %v103, %v229
    %v231 = vand.u32 %v230, 4294901760
    %v232 = vsub.f32 %v230, %v231
    %v233 = vand.u32 %v232, 4294901760
    %234 = vmatpush1.msra.mxu0 %v233
    %235 = vmatprep.subr.mxu0 0.0
    %236 = vmatpush1.msra.mxu0 0.0
    %237 = vmatprep.subr.mxu0 0.0
    %238 = vmatpush1.msra.mxu0 0.0
    %239 = vmatprep.subr.mxu0 0.0
    %240 = vmatpush1.msra.mxu0 0.0
    %241 = vmatprep.subr.mxu0 0.0
    %242 = vmatpush1.msra.mxu0 0.0
    %243 = vmatprep.subr.mxu0 0.0
    %244 = vmatpush1.msra.mxu0 0.0
    %245 = vmatprep.subr.mxu0 0.0
    %246 = vmatpush1.msra.mxu0 0.0
    %247 = vmatprep.subr.mxu0 0.0
    %248 = vmatpush1.msra.mxu0 0.0
    %249 = vmatprep.subr.mxu0 0.0
    %250 = vmatpush1.msra.mxu0 0.0
    %251 = vmatprep.subr.mxu0 0.0
    %252 = vmatpush1.msra.mxu0 0.0
    %253 = vmatprep.subr.mxu0 0.0
    %254 = vmatpush1.msra.mxu0 0.0
    %255 = vmatprep.subr.mxu0 0.0
    %256 = vmatpush1.msra.mxu0 0.0
    %257 = vmatprep.subr.mxu0 0.0
    %258 = vmatpush1.msra.mxu0 0.0
    %259 = vmatprep.subr.mxu0 0.0
    %260 = vmatpush1.msra.mxu0 0.0
    %261 = vmatprep.subr.mxu0 0.0
    %262 = vmatpush1.msra.mxu0 0.0
    %263 = vmatprep.subr.mxu0 0.0
    %264 = vmatpush1.msra.mxu0 0.0
    %265 = vmatprep.subr.mxu0 0.0
    %266 = vmatpush1.msra.mxu0 0.0
    %267 = vmatprep.subr.mxu0 0.0
    %268 = vmatpush1.msra.mxu0 0.0
    %269 = vmatprep.subr.mxu0 0.0
    %270 = vmatpush1.msra.mxu0 0.0
    %271 = vmatprep.subr.mxu0 0.0
    %272 = vmatpush1.msra.mxu0 0.0
    %273 = vmatprep.subr.mxu0 0.0
    %274 = vmatpush1.msra.mxu0 0.0
    %275 = vmatprep.subr.mxu0 0.0
    %276 = vmatpush1.msra.mxu0 0.0
    %277 = vmatprep.subr.mxu0 0.0
    %278 = vmatpush1.msra.mxu0 0.0
    %279 = vmatprep.subr.mxu0 0.0
    %280 = vmatpush1.msra.mxu0 0.0
    %281 = vmatprep.subr.mxu0 0.0
    %282 = vmatpush1.msra.mxu0 0.0
    %283 = vmatprep.subr.mxu0 0.0
    %284 = vmatpush1.msra.mxu0 0.0
    %285 = vmatprep.subr.mxu0 0.0
    %286 = vmatpush1.msra.mxu0 0.0
    %287 = vmatprep.subr.mxu0 0.0
    %288 = vmatpush1.msra.mxu0 0.0
    %289 = vmatprep.subr.mxu0 0.0
    %290 = vmatpush1.msra.mxu0 0.0
    %291 = vmatprep.mubr.f32.mxu0 0.0
    %v292 = vand.u32 %v113, 4294901760
    %293 = vmatmul.mubr.f32.gmra.mrb[0].mxu0 %v292
    %v294 = vpop.f32.mrb[0].mxu0
    %v295 = vadd.f32 %v194, %v294
    %v296 = vpop.f32.mrb[0].mxu0
    %297 = vmatprep.mubr.f32.mxu0 0.0
    %v298 = vand.u32 %v116, 4294901760
    %299 = vmatmul.mubr.f32.gmra.mrb[0].mxu0 %v298
    %v300 = vpop.f32.mrb[0].mxu0
    %v301 = vadd.f32 %v204, %v300
    %v302 = vpop.f32.mrb[0].mxu0
    %303 = vdwg.mxu0
    %304 = vmatprep.subr.mxu0 0.0
    %v305 = vand.u32 %v100, 4294901760
    %v306 = vsub.f32 %v100, %v305
    %307 = vmatpush1.msra.mxu0 %v306
    %308 = vmatprep.subr.mxu0 0.0
    %v309 = vand.u32 %v101, 4294901760
    %v310 = vsub.f32 %v101, %v309
    %311 = vmatpush1.msra.mxu0 %v310
    %312 = vmatprep.subr.mxu0 0.0
    %v313 = vand.u32 %v102, 4294901760
    %v314 = vsub.f32 %v102, %v313
    %315 = vmatpush1.msra.mxu0 %v314
    %316 = vmatprep.subr.mxu0 0.0
    %v317 = vand.u32 %v103, 4294901760
    %v318 = vsub.f32 %v103, %v317
    %319 = vmatpush1.msra.mxu0 %v318
    %320 = vmatprep.subr.mxu0 0.0
    %321 = vmatpush1.msra.mxu0 0.0
    %322 = vmatprep.subr.mxu0 0.0
    %323 = vmatpush1.msra.mxu0 0.0
    %324 = vmatprep.subr.mxu0 0.0
    %325 = vmatpush1.msra.mxu0 0.0
    %326 = vmatprep.subr.mxu0 0.0
    %327 = vmatpush1.msra.mxu0 0.0
    %328 = vmatprep.subr.mxu0 0.0
    %329 = vmatpush1.msra.mxu0 0.0
    %330 = vmatprep.subr.mxu0 0.0
    %331 = vmatpush1.msra.mxu0 0.0
    %332 = vmatprep.subr.mxu0 0.0
    %333 = vmatpush1.msra.mxu0 0.0
    %334 = vmatprep.subr.mxu0 0.0
    %335 = vmatpush1.msra.mxu0 0.0
    %336 = vmatprep.subr.mxu0 0.0
    %337 = vmatpush1.msra.mxu0 0.0
    %338 = vmatprep.subr.mxu0 0.0
    %339 = vmatpush1.msra.mxu0 0.0
    %340 = vmatprep.subr.mxu0 0.0
    %341 = vmatpush1.msra.mxu0 0.0
    %342 = vmatprep.subr.mxu0 0.0
    %343 = vmatpush1.msra.mxu0 0.0
    %344 = vmatprep.subr.mxu0 0.0
    %345 = vmatpush1.msra.mxu0 0.0
    %346 = vmatprep.subr.mxu0 0.0
    %347 = vmatpush1.msra.mxu0 0.0
    %348 = vmatprep.subr.mxu0 0.0
    %349 = vmatpush1.msra.mxu0 0.0
    %350 = vmatprep.subr.mxu0 0.0
    %351 = vmatpush1.msra.mxu0 0.0
    %352 = vmatprep.subr.mxu0 0.0
    %353 = vmatpush1.msra.mxu0 0.0
    %354 = vmatprep.subr.mxu0 0.0
    %355 = vmatpush1.msra.mxu0 0.0
    %356 = vmatprep.subr.mxu0 0.0
    %357 = vmatpush1.msra.mxu0 0.0
    %358 = vmatprep.subr.mxu0 0.0
    %359 = vmatpush1.msra.mxu0 0.0
    %360 = vmatprep.subr.mxu0 0.0
    %361 = vmatpush1.msra.mxu0 0.0
    %362 = vmatprep.subr.mxu0 0.0
    %363 = vmatpush1.msra.mxu0 0.0
    %364 = vmatprep.subr.mxu0 0.0
    %365 = vmatpush1.msra.mxu0 0.0
    %366 = vmatprep.subr.mxu0 0.0
    %367 = vmatpush1.msra.mxu0 0.0
    %368 = vmatprep.subr.mxu0 0.0
    %369 = vmatpush1.msra.mxu0 0.0
    %370 = vmatprep.subr.mxu0 0.0
    %371 = vmatpush1.msra.mxu0 0.0
    %372 = vmatprep.subr.mxu0 0.0
    %373 = vmatpush1.msra.mxu0 0.0
    %374 = vmatprep.subr.mxu0 0.0
    %375 = vmatpush1.msra.mxu0 0.0
    %376 = vmatprep.mubr.f32.mxu0 0.0
    %v377 = vand.u32 %v113, 4294901760
    %v378 = vsub.f32 %v113, %v377
    %379 = vmatmul.mubr.f32.gmra.mrb[0].mxu0 %v378
    %v380 = vpop.f32.mrb[0].mxu0
    %v381 = vadd.f32 %v295, %v380
    %v382 = vpop.f32.mrb[0].mxu0
    %383 = vmatprep.mubr.f32.mxu0 0.0
    %v384 = vand.u32 %v116, 4294901760
    %v385 = vsub.f32 %v116, %v384
    %386 = vmatmul.mubr.f32.gmra.mrb[0].mxu0 %v385
    %v387 = vpop.f32.mrb[0].mxu0
    %v388 = vadd.f32 %v301, %v387
    %v389 = vpop.f32.mrb[0].mxu0
    %390 = vdwg.mxu0
    %391 = vmatprep.subr.mxu0 0.0
    %v392 = vand.u32 %v100, 4294901760
    %393 = vmatpush1.msra.mxu0 %v392
    %394 = vmatprep.subr.mxu0 0.0
    %v395 = vand.u32 %v101, 4294901760
    %396 = vmatpush1.msra.mxu0 %v395
    %397 = vmatprep.subr.mxu0 0.0
    %v398 = vand.u32 %v102, 4294901760
    %399 = vmatpush1.msra.mxu0 %v398
    %400 = vmatprep.subr.mxu0 0.0
    %v401 = vand.u32 %v103, 4294901760
    %402 = vmatpush1.msra.mxu0 %v401
    %403 = vmatprep.subr.mxu0 0.0
    %404 = vmatpush1.msra.mxu0 0.0
    %405 = vmatprep.subr.mxu0 0.0
    %406 = vmatpush1.msra.mxu0 0.0
    %407 = vmatprep.subr.mxu0 0.0
    %408 = vmatpush1.msra.mxu0 0.0
    %409 = vmatprep.subr.mxu0 0.0
    %410 = vmatpush1.msra.mxu0 0.0
    %411 = vmatprep.subr.mxu0 0.0
    %412 = vmatpush1.msra.mxu0 0.0
    %413 = vmatprep.subr.mxu0 0.0
    %414 = vmatpush1.msra.mxu0 0.0
    %415 = vmatprep.subr.mxu0 0.0
    %416 = vmatpush1.msra.mxu0 0.0
    %417 = vmatprep.subr.mxu0 0.0
    %418 = vmatpush1.msra.mxu0 0.0
    %419 = vmatprep.subr.mxu0 0.0
    %420 = vmatpush1.msra.mxu0 0.0
    %421 = vmatprep.subr.mxu0 0.0
    %422 = vmatpush1.msra.mxu0 0.0
    %423 = vmatprep.subr.mxu0 0.0
    %424 = vmatpush1.msra.mxu0 0.0
    %425 = vmatprep.subr.mxu0 0.0
    %426 = vmatpush1.msra.mxu0 0.0
    %427 = vmatprep.subr.mxu0 0.0
    %428 = vmatpush1.msra.mxu0 0.0
    %429 = vmatprep.subr.mxu0 0.0
    %430 = vmatpush1.msra.mxu0 0.0
    %431 = vmatprep.subr.mxu0 0.0
    %432 = vmatpush1.msra.mxu0 0.0
    %433 = vmatprep.subr.mxu0 0.0
    %434 = vmatpush1.msra.mxu0 0.0
    %435 = vmatprep.subr.mxu0 0.0
    %436 = vmatpush1.msra.mxu0 0.0
    %437 = vmatprep.subr.mxu0 0.0
    %438 = vmatpush1.msra.mxu0 0.0
    %439 = vmatprep.subr.mxu0 0.0
    %440 = vmatpush1.msra.mxu0 0.0
    %441 = vmatprep.subr.mxu0 0.0
    %442 = vmatpush1.msra.mxu0 0.0
    %443 = vmatprep.subr.mxu0 0.0
    %444 = vmatpush1.msra.mxu0 0.0
    %445 = vmatprep.subr.mxu0 0.0
    %446 = vmatpush1.msra.mxu0 0.0
    %447 = vmatprep.subr.mxu0 0.0
    %448 = vmatpush1.msra.mxu0 0.0
    %449 = vmatprep.subr.mxu0 0.0
    %450 = vmatpush1.msra.mxu0 0.0
    %451 = vmatprep.subr.mxu0 0.0
    %452 = vmatpush1.msra.mxu0 0.0
    %453 = vmatprep.subr.mxu0 0.0
    %454 = vmatpush1.msra.mxu0 0.0
    %455 = vmatprep.subr.mxu0 0.0
    %456 = vmatpush1.msra.mxu0 0.0
    %457 = vmatprep.subr.mxu0 0.0
    %458 = vmatpush1.msra.mxu0 0.0
    %459 = vmatprep.mubr.f32.mxu0 0.0
    %v460 = vand.u32 %v113, 4294901760
    %v461 = vsub.f32 %v113, %v460
    %v462 = vand.u32 %v461, 4294901760
    %463 = vmatmul.mubr.f32.gmra.mrb[0].mxu0 %v462
    %v464 = vpop.f32.mrb[0].mxu0
    %v465 = vadd.f32 %v381, %v464
    %v466 = vpop.f32.mrb[0].mxu0
    %467 = vmatprep.mubr.f32.mxu0 0.0
    %v468 = vand.u32 %v116, 4294901760
    %v469 = vsub.f32 %v116, %v468
    %v470 = vand.u32 %v469, 4294901760
    %471 = vmatmul.mubr.f32.gmra.mrb[0].mxu0 %v470
    %v472 = vpop.f32.mrb[0].mxu0
    %v473 = vadd.f32 %v388, %v472
    %v474 = vpop.f32.mrb[0].mxu0
    %475 = vdwg.mxu0
    %476 = vmatprep.subr.mxu0 0.0
    %v477 = vand.u32 %v100, 4294901760
    %v478 = vsub.f32 %v100, %v477
    %v479 = vand.u32 %v478, 4294901760
    %480 = vmatpush1.msra.mxu0 %v479
    %481 = vmatprep.subr.mxu0 0.0
    %v482 = vand.u32 %v101, 4294901760
    %v483 = vsub.f32 %v101, %v482
    %v484 = vand.u32 %v483, 4294901760
    %485 = vmatpush1.msra.mxu0 %v484
    %486 = vmatprep.subr.mxu0 0.0
    %v487 = vand.u32 %v102, 4294901760
    %v488 = vsub.f32 %v102, %v487
    %v489 = vand.u32 %v488, 4294901760
    %490 = vmatpush1.msra.mxu0 %v489
    %491 = vmatprep.subr.mxu0 0.0
    %v492 = vand.u32 %v103, 4294901760
    %v493 = vsub.f32 %v103, %v492
    %v494 = vand.u32 %v493, 4294901760
    %495 = vmatpush1.msra.mxu0 %v494
    %496 = vmatprep.subr.mxu0 0.0
    %497 = vmatpush1.msra.mxu0 0.0
    %498 = vmatprep.subr.mxu0 0.0
    %499 = vmatpush1.msra.mxu0 0.0
    %500 = vmatprep.subr.mxu0 0.0
    %501 = vmatpush1.msra.mxu0 0.0
    %502 = vmatprep.subr.mxu0 0.0
    %503 = vmatpush1.msra.mxu0 0.0
    %504 = vmatprep.subr.mxu0 0.0
    %505 = vmatpush1.msra.mxu0 0.0
    %506 = vmatprep.subr.mxu0 0.0
    %507 = vmatpush1.msra.mxu0 0.0
    %508 = vmatprep.subr.mxu0 0.0
    %509 = vmatpush1.msra.mxu0 0.0
    %510 = vmatprep.subr.mxu0 0.0
    %511 = vmatpush1.msra.mxu0 0.0
    %512 = vmatprep.subr.mxu0 0.0
    %513 = vmatpush1.msra.mxu0 0.0
    %514 = vmatprep.subr.mxu0 0.0
    %515 = vmatpush1.msra.mxu0 0.0
    %516 = vmatprep.subr.mxu0 0.0
    %517 = vmatpush1.msra.mxu0 0.0
    %518 = vmatprep.subr.mxu0 0.0
    %519 = vmatpush1.msra.mxu0 0.0
    %520 = vmatprep.subr.mxu0 0.0
    %521 = vmatpush1.msra.mxu0 0.0
    %522 = vmatprep.subr.mxu0 0.0
    %523 = vmatpush1.msra.mxu0 0.0
    %524 = vmatprep.subr.mxu0 0.0
    %525 = vmatpush1.msra.mxu0 0.0
    %526 = vmatprep.subr.mxu0 0.0
    %527 = vmatpush1.msra.mxu0 0.0
    %528 = vmatprep.subr.mxu0 0.0
    %529 = vmatpush1.msra.mxu0 0.0
    %530 = vmatprep.subr.mxu0 0.0
    %531 = vmatpush1.msra.mxu0 0.0
    %532 = vmatprep.subr.mxu0 0.0
    %533 = vmatpush1.msra.mxu0 0.0
    %534 = vmatprep.subr.mxu0 0.0
    %535 = vmatpush1.msra.mxu0 0.0
    %536 = vmatprep.subr.mxu0 0.0
    %537 = vmatpush1.msra.mxu0 0.0
    %538 = vmatprep.subr.mxu0 0.0
    %539 = vmatpush1.msra.mxu0 0.0
    %540 = vmatprep.subr.mxu0 0.0
    %541 = vmatpush1.msra.mxu0 0.0
    %542 = vmatprep.subr.mxu0 0.0
    %543 = vmatpush1.msra.mxu0 0.0
    %544 = vmatprep.subr.mxu0 0.0
    %545 = vmatpush1.msra.mxu0 0.0
    %546 = vmatprep.subr.mxu0 0.0
    %547 = vmatpush1.msra.mxu0 0.0
    %548 = vmatprep.subr.mxu0 0.0
    %549 = vmatpush1.msra.mxu0 0.0
    %550 = vmatprep.subr.mxu0 0.0
    %551 = vmatpush1.msra.mxu0 0.0
    %552 = vmatprep.mubr.f32.mxu0 0.0
    %v553 = vand.u32 %v113, 4294901760
    %554 = vmatmul.mubr.f32.gmra.mrb[0].mxu0 %v553
    %v555 = vpop.f32.mrb[0].mxu0
    %v556 = vadd.f32 %v465, %v555
    %v557 = vpop.f32.mrb[0].mxu0
    %558 = vmatprep.mubr.f32.mxu0 0.0
    %v559 = vand.u32 %v116, 4294901760
    %560 = vmatmul.mubr.f32.gmra.mrb[0].mxu0 %v559
    %v561 = vpop.f32.mrb[0].mxu0
    %v562 = vadd.f32 %v473, %v561
    %v563 = vpop.f32.mrb[0].mxu0
    %564 = vdwg.mxu0
    %565 = vmatprep.subr.mxu0 0.0
    %v566 = vand.u32 %v100, 4294901760
    %567 = vmatpush1.msra.mxu0 %v566
    %568 = vmatprep.subr.mxu0 0.0
    %v569 = vand.u32 %v101, 4294901760
    %570 = vmatpush1.msra.mxu0 %v569
    %571 = vmatprep.subr.mxu0 0.0
    %v572 = vand.u32 %v102, 4294901760
    %573 = vmatpush1.msra.mxu0 %v572
    %574 = vmatprep.subr.mxu0 0.0
    %v575 = vand.u32 %v103, 4294901760
    %576 = vmatpush1.msra.mxu0 %v575
    %577 = vmatprep.subr.mxu0 0.0
    %578 = vmatpush1.msra.mxu0 0.0
    %579 = vmatprep.subr.mxu0 0.0
    %580 = vmatpush1.msra.mxu0 0.0
    %581 = vmatprep.subr.mxu0 0.0
    %582 = vmatpush1.msra.mxu0 0.0
    %583 = vmatprep.subr.mxu0 0.0
    %584 = vmatpush1.msra.mxu0 0.0
    %585 = vmatprep.subr.mxu0 0.0
    %586 = vmatpush1.msra.mxu0 0.0
    %587 = vmatprep.subr.mxu0 0.0
    %588 = vmatpush1.msra.mxu0 0.0
    %589 = vmatprep.subr.mxu0 0.0
    %590 = vmatpush1.msra.mxu0 0.0
    %591 = vmatprep.subr.mxu0 0.0
    %592 = vmatpush1.msra.mxu0 0.0
    %593 = vmatprep.subr.mxu0 0.0
    %594 = vmatpush1.msra.mxu0 0.0
    %595 = vmatprep.subr.mxu0 0.0
    %596 = vmatpush1.msra.mxu0 0.0
    %597 = vmatprep.subr.mxu0 0.0
    %598 = vmatpush1.msra.mxu0 0.0
    %599 = vmatprep.subr.mxu0 0.0
    %600 = vmatpush1.msra.mxu0 0.0
    %601 = vmatprep.subr.mxu0 0.0
    %602 = vmatpush1.msra.mxu0 0.0
    %603 = vmatprep.subr.mxu0 0.0
    %604 = vmatpush1.msra.mxu0 0.0
    %605 = vmatprep.subr.mxu0 0.0
    %606 = vmatpush1.msra.mxu0 0.0
    %607 = vmatprep.subr.mxu0 0.0
    %608 = vmatpush1.msra.mxu0 0.0
    %609 = vmatprep.subr.mxu0 0.0
    %610 = vmatpush1.msra.mxu0 0.0
    %611 = vmatprep.subr.mxu0 0.0
    %612 = vmatpush1.msra.mxu0 0.0
    %613 = vmatprep.subr.mxu0 0.0
    %614 = vmatpush1.msra.mxu0 0.0
    %615 = vmatprep.subr.mxu0 0.0
    %616 = vmatpush1.msra.mxu0 0.0
    %617 = vmatprep.subr.mxu0 0.0
    %618 = vmatpush1.msra.mxu0 0.0
    %619 = vmatprep.subr.mxu0 0.0
    %620 = vmatpush1.msra.mxu0 0.0
    %621 = vmatprep.subr.mxu0 0.0
    %622 = vmatpush1.msra.mxu0 0.0
    %623 = vmatprep.subr.mxu0 0.0
    %624 = vmatpush1.msra.mxu0 0.0
    %625 = vmatprep.subr.mxu0 0.0
    %626 = vmatpush1.msra.mxu0 0.0
    %627 = vmatprep.subr.mxu0 0.0
    %628 = vmatpush1.msra.mxu0 0.0
    %629 = vmatprep.subr.mxu0 0.0
    %630 = vmatpush1.msra.mxu0 0.0
    %631 = vmatprep.subr.mxu0 0.0
    %632 = vmatpush1.msra.mxu0 0.0
    %633 = vmatprep.mubr.f32.mxu0 0.0
    %v634 = vand.u32 %v113, 4294901760
    %635 = vmatmul.mubr.f32.gmra.mrb[0].mxu0 %v634
    %v636 = vpop.f32.mrb[0].mxu0
    %v637 = vadd.f32 %v556, %v636
    %v638 = vpop.f32.mrb[0].mxu0
    %639 = vmatprep.mubr.f32.mxu0 0.0
    %v640 = vand.u32 %v116, 4294901760
    %641 = vmatmul.mubr.f32.gmra.mrb[0].mxu0 %v640
    %v642 = vpop.f32.mrb[0].mxu0
    %v643 = vadd.f32 %v562, %v642
    %v644 = vpop.f32.mrb[0].mxu0
    %645 = vdwg.mxu0
    %v646 = vld [vmem:[#allocation8] sm:$0xff]
    %v647 = vld [vmem:[#allocation8 + $0x8] sm:$0xff]
    %v648 = vld [vmem:[#allocation8 + $0x10] sm:$0xff]
    %v649 = vld [vmem:[#allocation8 + $0x18] sm:$0xff]
    %v650 = vld [vmem:[#allocation8 + $0x20] sm:$0xff]
    %v651 = vld [vmem:[#allocation8 + $0x28] sm:$0xff]
    %v652 = vld [vmem:[#allocation8 + $0x30] sm:$0xff]
    %v653 = vld [vmem:[#allocation8 + $0x38] sm:$0xff]
    %662 = vrot.lane.b32.xlu0 %v646, 32
    %v663 = vpop.permute.xlu0 %662
    %664 = vrot.lane.b32.xlu0 %v647, 32
    %v665 = vpop.permute.xlu0 %664
    %666 = vrot.lane.b32.xlu0 %v648, 32
    %v667 = vpop.permute.xlu0 %666
    %668 = vrot.lane.b32.xlu0 %v649, 32
    %v669 = vpop.permute.xlu0 %668
    %670 = vrot.lane.b32.xlu0 %v650, 32
    %v671 = vpop.permute.xlu0 %670
    %672 = vrot.lane.b32.xlu0 %v651, 32
    %v673 = vpop.permute.xlu0 %672
    %674 = vrot.lane.b32.xlu0 %v652, 32
    %v675 = vpop.permute.xlu0 %674
    %676 = vrot.lane.b32.xlu0 %v653, 32
    %v677 = vpop.permute.xlu0 %676
    %v686 = vmul.f32 %v637, %v663
    %v687 = vmul.f32 %v643, %v665
    %v688 = vmul.f32 %v637, %v667
    %v689 = vmul.f32 %v643, %v669
    %v690 = vmul.f32 %v637, %v671
    %v691 = vmul.f32 %v643, %v673
    %v692 = vmul.f32 %v637, %v675
    %v693 = vmul.f32 %v643, %v677
    %702 = vrot.lane.b32.xlu0 %v686, 96
    %v703 = vpop.permute.xlu0 %702
    %704 = vrot.lane.b32.xlu0 %v687, 96
    %v705 = vpop.permute.xlu0 %704
    %706 = vrot.lane.b32.xlu0 %v688, 96
    %v707 = vpop.permute.xlu0 %706
    %708 = vrot.lane.b32.xlu0 %v689, 96
    %v709 = vpop.permute.xlu0 %708
    %710 = vrot.lane.b32.xlu0 %v690, 96
    %v711 = vpop.permute.xlu0 %710
    %712 = vrot.lane.b32.xlu0 %v691, 96
    %v713 = vpop.permute.xlu0 %712
    %714 = vrot.lane.b32.xlu0 %v692, 96
    %v715 = vpop.permute.xlu0 %714
    %716 = vrot.lane.b32.xlu0 %v693, 96
    %v717 = vpop.permute.xlu0 %716
    %v719 = vsel %vm111, %v637, 0
    %v722 = vsel %vm111, %v643, 0
    %v724 = vsel %vm111, %v703, 0
    %v726 = vsel %vm111, %v705, 0
    %v728 = vsel %vm111, %v707, 0
    %v730 = vsel %vm111, %v709, 0
    %v732 = vsel %vm111, %v711, 0
    %v734 = vsel %vm111, %v713, 0
    %v736 = vsel %vm111, %v715, 0
    %v738 = vsel %vm111, %v717, 0
    %740 = vmatprep.subr.mxu0 0.0
    %v741 = vand.u32 %v724, 4294901760
    %742 = vmatpush1.xpose.msra.mxu0 %v741
    %743 = vmatprep.subr.mxu0 0.0
    %v744 = vand.u32 %v726, 4294901760
    %745 = vmatpush1.xpose.msra.mxu0 %v744
    %746 = vmatprep.subr.mxu0 0.0
    %v747 = vand.u32 %v728, 4294901760
    %748 = vmatpush1.xpose.msra.mxu0 %v747
    %749 = vmatprep.subr.mxu0 0.0
    %v750 = vand.u32 %v730, 4294901760
    %751 = vmatpush1.xpose.msra.mxu0 %v750
    %752 = vmatprep.subr.mxu0 0.0
    %v753 = vand.u32 %v732, 4294901760
    %754 = vmatpush1.xpose.msra.mxu0 %v753
    %755 = vmatprep.subr.mxu0 0.0
    %v756 = vand.u32 %v734, 4294901760
    %757 = vmatpush1.xpose.msra.mxu0 %v756
    %758 = vmatprep.subr.mxu0 0.0
    %v759 = vand.u32 %v736, 4294901760
    %760 = vmatpush1.xpose.msra.mxu0 %v759
    %761 = vmatprep.subr.mxu0 0.0
    %v762 = vand.u32 %v738, 4294901760
    %763 = vmatpush1.xpose.msra.mxu0 %v762
    %764 = vmatprep.subr.mxu0 0.0
    %765 = vmatpush1.xpose.msra.mxu0 0.0
    %766 = vmatprep.subr.mxu0 0.0
    %767 = vmatpush1.xpose.msra.mxu0 0.0
    %768 = vmatprep.subr.mxu0 0.0
    %769 = vmatpush1.xpose.msra.mxu0 0.0
    %770 = vmatprep.subr.mxu0 0.0
    %771 = vmatpush1.xpose.msra.mxu0 0.0
    %772 = vmatprep.subr.mxu0 0.0
    %773 = vmatpush1.xpose.msra.mxu0 0.0
    %774 = vmatprep.subr.mxu0 0.0
    %775 = vmatpush1.xpose.msra.mxu0 0.0
    %776 = vmatprep.subr.mxu0 0.0
    %777 = vmatpush1.xpose.msra.mxu0 0.0
    %778 = vmatprep.subr.mxu0 0.0
    %779 = vmatpush1.xpose.msra.mxu0 0.0
    %780 = vmatprep.subr.mxu0 0.0
    %781 = vmatpush1.xpose.msra.mxu0 0.0
    %782 = vmatprep.subr.mxu0 0.0
    %783 = vmatpush1.xpose.msra.mxu0 0.0
    %784 = vmatprep.subr.mxu0 0.0
    %785 = vmatpush1.xpose.msra.mxu0 0.0
    %786 = vmatprep.subr.mxu0 0.0
    %787 = vmatpush1.xpose.msra.mxu0 0.0
    %788 = vmatprep.subr.mxu0 0.0
    %789 = vmatpush1.xpose.msra.mxu0 0.0
    %790 = vmatprep.subr.mxu0 0.0
    %791 = vmatpush1.xpose.msra.mxu0 0.0
    %792 = vmatprep.subr.mxu0 0.0
    %793 = vmatpush1.xpose.msra.mxu0 0.0
    %794 = vmatprep.subr.mxu0 0.0
    %795 = vmatpush1.xpose.msra.mxu0 0.0
    %796 = vmatprep.subr.mxu0 0.0
    %797 = vmatpush1.xpose.msra.mxu0 0.0
    %798 = vmatprep.subr.mxu0 0.0
    %799 = vmatpush1.xpose.msra.mxu0 0.0
    %800 = vmatprep.subr.mxu0 0.0
    %801 = vmatpush1.xpose.msra.mxu0 0.0
    %802 = vmatprep.subr.mxu0 0.0
    %803 = vmatpush1.xpose.msra.mxu0 0.0
    %804 = vmatprep.subr.mxu0 0.0
    %805 = vmatpush1.xpose.msra.mxu0 0.0
    %806 = vmatprep.subr.mxu0 0.0
    %807 = vmatpush1.xpose.msra.mxu0 0.0
    %808 = vmatprep.subr.mxu0 0.0
    %809 = vmatpush1.xpose.msra.mxu0 0.0
    %810 = vmatprep.subr.mxu0 0.0
    %811 = vmatpush1.xpose.msra.mxu0 0.0
    %812 = vmatprep.mubr.f32.mxu0 0.0
    %v813 = vand.u32 %v719, 4294901760
    %v814 = vsub.f32 %v719, %v813
    %v815 = vand.u32 %v814, 4294901760
    %v816 = vsub.f32 %v814, %v815
    %v817 = vand.u32 %v816, 4294901760
    %818 = vmatmul.mubr.f32.gmra.mrb[0].mxu0 %v817
    %v819 = vpop.f32.mrb[0].mxu0
    %v820 = vadd.f32 0.0, %v819
    %v821 = vpop.f32.mrb[0].mxu0
    %822 = vmatprep.mubr.f32.mxu0 0.0
    %v823 = vand.u32 %v722, 4294901760
    %v824 = vsub.f32 %v722, %v823
    %v825 = vand.u32 %v824, 4294901760
    %v826 = vsub.f32 %v824, %v825
    %v827 = vand.u32 %v826, 4294901760
    %828 = vmatmul.mubr.f32.gmra.mrb[0].mxu0 %v827
    %v829 = vpop.f32.mrb[0].mxu0
    %v830 = vadd.f32 0.0, %v829
    %v831 = vpop.f32.mrb[0].mxu0
    %832 = vdwg.mxu0
    %833 = vmatprep.subr.mxu0 0.0
    %v834 = vand.u32 %v724, 4294901760
    %v835 = vsub.f32 %v724, %v834
    %v836 = vand.u32 %v835, 4294901760
    %v837 = vsub.f32 %v835, %v836
    %v838 = vand.u32 %v837, 4294901760
    %839 = vmatpush1.xpose.msra.mxu0 %v838
    %840 = vmatprep.subr.mxu0 0.0
    %v841 = vand.u32 %v726, 4294901760
    %v842 = vsub.f32 %v726, %v841
    %v843 = vand.u32 %v842, 4294901760
    %v844 = vsub.f32 %v842, %v843
    %v845 = vand.u32 %v844, 4294901760
    %846 = vmatpush1.xpose.msra.mxu0 %v845
    %847 = vmatprep.subr.mxu0 0.0
    %v848 = vand.u32 %v728, 4294901760
    %v849 = vsub.f32 %v728, %v848
    %v850 = vand.u32 %v849, 4294901760
    %v851 = vsub.f32 %v849, %v850
    %v852 = vand.u32 %v851, 4294901760
    %853 = vmatpush1.xpose.msra.mxu0 %v852
    %854 = vmatprep.subr.mxu0 0.0
    %v855 = vand.u32 %v730, 4294901760
    %v856 = vsub.f32 %v730, %v855
    %v857 = vand.u32 %v856, 4294901760
    %v858 = vsub.f32 %v856, %v857
    %v859 = vand.u32 %v858, 4294901760
    %860 = vmatpush1.xpose.msra.mxu0 %v859
    %861 = vmatprep.subr.mxu0 0.0
    %v862 = vand.u32 %v732, 4294901760
    %v863 = vsub.f32 %v732, %v862
    %v864 = vand.u32 %v863, 4294901760
    %v865 = vsub.f32 %v863, %v864
    %v866 = vand.u32 %v865, 4294901760
    %867 = vmatpush1.xpose.msra.mxu0 %v866
    %868 = vmatprep.subr.mxu0 0.0
    %v869 = vand.u32 %v734, 4294901760
    %v870 = vsub.f32 %v734, %v869
    %v871 = vand.u32 %v870, 4294901760
    %v872 = vsub.f32 %v870, %v871
    %v873 = vand.u32 %v872, 4294901760
    %874 = vmatpush1.xpose.msra.mxu0 %v873
    %875 = vmatprep.subr.mxu0 0.0
    %v876 = vand.u32 %v736, 4294901760
    %v877 = vsub.f32 %v736, %v876
    %v878 = vand.u32 %v877, 4294901760
    %v879 = vsub.f32 %v877, %v878
    %v880 = vand.u32 %v879, 4294901760
    %881 = vmatpush1.xpose.msra.mxu0 %v880
    %882 = vmatprep.subr.mxu0 0.0
    %v883 = vand.u32 %v738, 4294901760
    %v884 = vsub.f32 %v738, %v883
    %v885 = vand.u32 %v884, 4294901760
    %v886 = vsub.f32 %v884, %v885
    %v887 = vand.u32 %v886, 4294901760
    %888 = vmatpush1.xpose.msra.mxu0 %v887
    %889 = vmatprep.subr.mxu0 0.0
    %890 = vmatpush1.xpose.msra.mxu0 0.0
    %891 = vmatprep.subr.mxu0 0.0
    %892 = vmatpush1.xpose.msra.mxu0 0.0
    %893 = vmatprep.subr.mxu0 0.0
    %894 = vmatpush1.xpose.msra.mxu0 0.0
    %895 = vmatprep.subr.mxu0 0.0
    %896 = vmatpush1.xpose.msra.mxu0 0.0
    %897 = vmatprep.subr.mxu0 0.0
    %898 = vmatpush1.xpose.msra.mxu0 0.0
    %899 = vmatprep.subr.mxu0 0.0
    %900 = vmatpush1.xpose.msra.mxu0 0.0
    %901 = vmatprep.subr.mxu0 0.0
    %902 = vmatpush1.xpose.msra.mxu0 0.0
    %903 = vmatprep.subr.mxu0 0.0
    %904 = vmatpush1.xpose.msra.mxu0 0.0
    %905 = vmatprep.subr.mxu0 0.0
    %906 = vmatpush1.xpose.msra.mxu0 0.0
    %907 = vmatprep.subr.mxu0 0.0
    %908 = vmatpush1.xpose.msra.mxu0 0.0
    %909 = vmatprep.subr.mxu0 0.0
    %910 = vmatpush1.xpose.msra.mxu0 0.0
    %911 = vmatprep.subr.mxu0 0.0
    %912 = vmatpush1.xpose.msra.mxu0 0.0
    %913 = vmatprep.subr.mxu0 0.0
    %914 = vmatpush1.xpose.msra.mxu0 0.0
    %915 = vmatprep.subr.mxu0 0.0
    %916 = vmatpush1.xpose.msra.mxu0 0.0
    %917 = vmatprep.subr.mxu0 0.0
    %918 = vmatpush1.xpose.msra.mxu0 0.0
    %919 = vmatprep.subr.mxu0 0.0
    %920 = vmatpush1.xpose.msra.mxu0 0.0
    %921 = vmatprep.subr.mxu0 0.0
    %922 = vmatpush1.xpose.msra.mxu0 0.0
    %923 = vmatprep.subr.mxu0 0.0
    %924 = vmatpush1.xpose.msra.mxu0 0.0
    %925 = vmatprep.subr.mxu0 0.0
    %926 = vmatpush1.xpose.msra.mxu0 0.0
    %927 = vmatprep.subr.mxu0 0.0
    %928 = vmatpush1.xpose.msra.mxu0 0.0
    %929 = vmatprep.subr.mxu0 0.0
    %930 = vmatpush1.xpose.msra.mxu0 0.0
    %931 = vmatprep.subr.mxu0 0.0
    %932 = vmatpush1.xpose.msra.mxu0 0.0
    %933 = vmatprep.subr.mxu0 0.0
    %934 = vmatpush1.xpose.msra.mxu0 0.0
    %935 = vmatprep.subr.mxu0 0.0
    %936 = vmatpush1.xpose.msra.mxu0 0.0
    %937 = vmatprep.mubr.f32.mxu0 0.0
    %v938 = vand.u32 %v719, 4294901760
    %939 = vmatmul.mubr.f32.gmra.mrb[0].mxu0 %v938
    %v940 = vpop.f32.mrb[0].mxu0
    %v941 = vadd.f32 %v820, %v940
    %v942 = vpop.f32.mrb[0].mxu0
    %943 = vmatprep.mubr.f32.mxu0 0.0
    %v944 = vand.u32 %v722, 4294901760
    %945 = vmatmul.mubr.f32.gmra.mrb[0].mxu0 %v944
    %v946 = vpop.f32.mrb[0].mxu0
    %v947 = vadd.f32 %v830, %v946
    %v948 = vpop.f32.mrb[0].mxu0
    %949 = vdwg.mxu0
    %950 = vmatprep.subr.mxu0 0.0
    %v951 = vand.u32 %v724, 4294901760
    %v952 = vsub.f32 %v724, %v951
    %953 = vmatpush1.xpose.msra.mxu0 %v952
    %954 = vmatprep.subr.mxu0 0.0
    %v955 = vand.u32 %v726, 4294901760
    %v956 = vsub.f32 %v726, %v955
    %957 = vmatpush1.xpose.msra.mxu0 %v956
    %958 = vmatprep.subr.mxu0 0.0
    %v959 = vand.u32 %v728, 4294901760
    %v960 = vsub.f32 %v728, %v959
    %961 = vmatpush1.xpose.msra.mxu0 %v960
    %962 = vmatprep.subr.mxu0 0.0
    %v963 = vand.u32 %v730, 4294901760
    %v964 = vsub.f32 %v730, %v963
    %965 = vmatpush1.xpose.msra.mxu0 %v964
    %966 = vmatprep.subr.mxu0 0.0
    %v967 = vand.u32 %v732, 4294901760
    %v968 = vsub.f32 %v732, %v967
    %969 = vmatpush1.xpose.msra.mxu0 %v968
    %970 = vmatprep.subr.mxu0 0.0
    %v971 = vand.u32 %v734, 4294901760
    %v972 = vsub.f32 %v734, %v971
    %973 = vmatpush1.xpose.msra.mxu0 %v972
    %974 = vmatprep.subr.mxu0 0.0
    %v975 = vand.u32 %v736, 4294901760
    %v976 = vsub.f32 %v736, %v975
    %977 = vmatpush1.xpose.msra.mxu0 %v976
    %978 = vmatprep.subr.mxu0 0.0
    %v979 = vand.u32 %v738, 4294901760
    %v980 = vsub.f32 %v738, %v979
    %981 = vmatpush1.xpose.msra.mxu0 %v980
    %982 = vmatprep.subr.mxu0 0.0
    %983 = vmatpush1.xpose.msra.mxu0 0.0
    %984 = vmatprep.subr.mxu0 0.0
    %985 = vmatpush1.xpose.msra.mxu0 0.0
    %986 = vmatprep.subr.mxu0 0.0
    %987 = vmatpush1.xpose.msra.mxu0 0.0
    %988 = vmatprep.subr.mxu0 0.0
    %989 = vmatpush1.xpose.msra.mxu0 0.0
    %990 = vmatprep.subr.mxu0 0.0
    %991 = vmatpush1.xpose.msra.mxu0 0.0
    %992 = vmatprep.subr.mxu0 0.0
    %993 = vmatpush1.xpose.msra.mxu0 0.0
    %994 = vmatprep.subr.mxu0 0.0
    %995 = vmatpush1.xpose.msra.mxu0 0.0
    %996 = vmatprep.subr.mxu0 0.0
    %997 = vmatpush1.xpose.msra.mxu0 0.0
    %998 = vmatprep.subr.mxu0 0.0
    %999 = vmatpush1.xpose.msra.mxu0 0.0
    %1000 = vmatprep.subr.mxu0 0.0
    %1001 = vmatpush1.xpose.msra.mxu0 0.0
    %1002 = vmatprep.subr.mxu0 0.0
    %1003 = vmatpush1.xpose.msra.mxu0 0.0
    %1004 = vmatprep.subr.mxu0 0.0
    %1005 = vmatpush1.xpose.msra.mxu0 0.0
    %1006 = vmatprep.subr.mxu0 0.0
    %1007 = vmatpush1.xpose.msra.mxu0 0.0
    %1008 = vmatprep.subr.mxu0 0.0
    %1009 = vmatpush1.xpose.msra.mxu0 0.0
    %1010 = vmatprep.subr.mxu0 0.0
    %1011 = vmatpush1.xpose.msra.mxu0 0.0
    %1012 = vmatprep.subr.mxu0 0.0
    %1013 = vmatpush1.xpose.msra.mxu0 0.0
    %1014 = vmatprep.subr.mxu0 0.0
    %1015 = vmatpush1.xpose.msra.mxu0 0.0
    %1016 = vmatprep.subr.mxu0 0.0
    %1017 = vmatpush1.xpose.msra.mxu0 0.0
    %1018 = vmatprep.subr.mxu0 0.0
    %1019 = vmatpush1.xpose.msra.mxu0 0.0
    %1020 = vmatprep.subr.mxu0 0.0
    %1021 = vmatpush1.xpose.msra.mxu0 0.0
    %1022 = vmatprep.subr.mxu0 0.0
    %1023 = vmatpush1.xpose.msra.mxu0 0.0
    %1024 = vmatprep.subr.mxu0 0.0
    %1025 = vmatpush1.xpose.msra.mxu0 0.0
    %1026 = vmatprep.subr.mxu0 0.0
    %1027 = vmatpush1.xpose.msra.mxu0 0.0
    %1028 = vmatprep.subr.mxu0 0.0
    %1029 = vmatpush1.xpose.msra.mxu0 0.0
    %1030 = vmatprep.mubr.f32.mxu0 0.0
    %v1031 = vand.u32 %v719, 4294901760
    %v1032 = vsub.f32 %v719, %v1031
    %1033 = vmatmul.mubr.f32.gmra.mrb[0].mxu0 %v1032
    %v1034 = vpop.f32.mrb[0].mxu0
    %v1035 = vadd.f32 %v941, %v1034
    %v1036 = vpop.f32.mrb[0].mxu0
    %1037 = vmatprep.mubr.f32.mxu0 0.0
    %v1038 = vand.u32 %v722, 4294901760
    %v1039 = vsub.f32 %v722, %v1038
    %1040 = vmatmul.mubr.f32.gmra.mrb[0].mxu0 %v1039
    %v1041 = vpop.f32.mrb[0].mxu0
    %v1042 = vadd.f32 %v947, %v1041
    %v1043 = vpop.f32.mrb[0].mxu0
    %1044 = vdwg.mxu0
    %1045 = vmatprep.subr.mxu0 0.0
    %v1046 = vand.u32 %v724, 4294901760
    %1047 = vmatpush1.xpose.msra.mxu0 %v1046
    %1048 = vmatprep.subr.mxu0 0.0
    %v1049 = vand.u32 %v726, 4294901760
    %1050 = vmatpush1.xpose.msra.mxu0 %v1049
    %1051 = vmatprep.subr.mxu0 0.0
    %v1052 = vand.u32 %v728, 4294901760
    %1053 = vmatpush1.xpose.msra.mxu0 %v1052
    %1054 = vmatprep.subr.mxu0 0.0
    %v1055 = vand.u32 %v730, 4294901760
    %1056 = vmatpush1.xpose.msra.mxu0 %v1055
    %1057 = vmatprep.subr.mxu0 0.0
    %v1058 = vand.u32 %v732, 4294901760
    %1059 = vmatpush1.xpose.msra.mxu0 %v1058
    %1060 = vmatprep.subr.mxu0 0.0
    %v1061 = vand.u32 %v734, 4294901760
    %1062 = vmatpush1.xpose.msra.mxu0 %v1061
    %1063 = vmatprep.subr.mxu0 0.0
    %v1064 = vand.u32 %v736, 4294901760
    %1065 = vmatpush1.xpose.msra.mxu0 %v1064
    %1066 = vmatprep.subr.mxu0 0.0
    %v1067 = vand.u32 %v738, 4294901760
    %1068 = vmatpush1.xpose.msra.mxu0 %v1067
    %1069 = vmatprep.subr.mxu0 0.0
    %1070 = vmatpush1.xpose.msra.mxu0 0.0
    %1071 = vmatprep.subr.mxu0 0.0
    %1072 = vmatpush1.xpose.msra.mxu0 0.0
    %1073 = vmatprep.subr.mxu0 0.0
    %1074 = vmatpush1.xpose.msra.mxu0 0.0
    %1075 = vmatprep.subr.mxu0 0.0
    %1076 = vmatpush1.xpose.msra.mxu0 0.0
    %1077 = vmatprep.subr.mxu0 0.0
    %1078 = vmatpush1.xpose.msra.mxu0 0.0
    %1079 = vmatprep.subr.mxu0 0.0
    %1080 = vmatpush1.xpose.msra.mxu0 0.0
    %1081 = vmatprep.subr.mxu0 0.0
    %1082 = vmatpush1.xpose.msra.mxu0 0.0
    %1083 = vmatprep.subr.mxu0 0.0
    %1084 = vmatpush1.xpose.msra.mxu0 0.0
    %1085 = vmatprep.subr.mxu0 0.0
    %1086 = vmatpush1.xpose.msra.mxu0 0.0
    %1087 = vmatprep.subr.mxu0 0.0
    %1088 = vmatpush1.xpose.msra.mxu0 0.0
    %1089 = vmatprep.subr.mxu0 0.0
    %1090 = vmatpush1.xpose.msra.mxu0 0.0
    %1091 = vmatprep.subr.mxu0 0.0
    %1092 = vmatpush1.xpose.msra.mxu0 0.0
    %1093 = vmatprep.subr.mxu0 0.0
    %1094 = vmatpush1.xpose.msra.mxu0 0.0
    %1095 = vmatprep.subr.mxu0 0.0
    %1096 = vmatpush1.xpose.msra.mxu0 0.0
    %1097 = vmatprep.subr.mxu0 0.0
    %1098 = vmatpush1.xpose.msra.mxu0 0.0
    %1099 = vmatprep.subr.mxu0 0.0
    %1100 = vmatpush1.xpose.msra.mxu0 0.0
    %1101 = vmatprep.subr.mxu0 0.0
    %1102 = vmatpush1.xpose.msra.mxu0 0.0
    %1103 = vmatprep.subr.mxu0 0.0
    %1104 = vmatpush1.xpose.msra.mxu0 0.0
    %1105 = vmatprep.subr.mxu0 0.0
    %1106 = vmatpush1.xpose.msra.mxu0 0.0
    %1107 = vmatprep.subr.mxu0 0.0
    %1108 = vmatpush1.xpose.msra.mxu0 0.0
    %1109 = vmatprep.subr.mxu0 0.0
    %1110 = vmatpush1.xpose.msra.mxu0 0.0
    %1111 = vmatprep.subr.mxu0 0.0
    %1112 = vmatpush1.xpose.msra.mxu0 0.0
    %1113 = vmatprep.subr.mxu0 0.0
    %1114 = vmatpush1.xpose.msra.mxu0 0.0
    %1115 = vmatprep.subr.mxu0 0.0
    %1116 = vmatpush1.xpose.msra.mxu0 0.0
    %1117 = vmatprep.mubr.f32.mxu0 0.0
    %v1118 = vand.u32 %v719, 4294901760
    %v1119 = vsub.f32 %v719, %v1118
    %v1120 = vand.u32 %v1119, 4294901760
    %1121 = vmatmul.mubr.f32.gmra.mrb[0].mxu0 %v1120
    %v1122 = vpop.f32.mrb[0].mxu0
    %v1123 = vadd.f32 %v1035, %v1122
    %v1124 = vpop.f32.mrb[0].mxu0
    %1125 = vmatprep.mubr.f32.mxu0 0.0
    %v1126 = vand.u32 %v722, 4294901760
    %v1127 = vsub.f32 %v722, %v1126
    %v1128 = vand.u32 %v1127, 4294901760
    %1129 = vmatmul.mubr.f32.gmra.mrb[0].mxu0 %v1128
    %v1130 = vpop.f32.mrb[0].mxu0
    %v1131 = vadd.f32 %v1042, %v1130
    %v1132 = vpop.f32.mrb[0].mxu0
    %1133 = vdwg.mxu0
    %1134 = vmatprep.subr.mxu0 0.0
    %v1135 = vand.u32 %v724, 4294901760
    %v1136 = vsub.f32 %v724, %v1135
    %v1137 = vand.u32 %v1136, 4294901760
    %1138 = vmatpush1.xpose.msra.mxu0 %v1137
    %1139 = vmatprep.subr.mxu0 0.0
    %v1140 = vand.u32 %v726, 4294901760
    %v1141 = vsub.f32 %v726, %v1140
    %v1142 = vand.u32 %v1141, 4294901760
    %1143 = vmatpush1.xpose.msra.mxu0 %v1142
    %1144 = vmatprep.subr.mxu0 0.0
    %v1145 = vand.u32 %v728, 4294901760
    %v1146 = vsub.f32 %v728, %v1145
    %v1147 = vand.u32 %v1146, 4294901760
    %1148 = vmatpush1.xpose.msra.mxu0 %v1147
    %1149 = vmatprep.subr.mxu0 0.0
    %v1150 = vand.u32 %v730, 4294901760
    %v1151 = vsub.f32 %v730, %v1150
    %v1152 = vand.u32 %v1151, 4294901760
    %1153 = vmatpush1.xpose.msra.mxu0 %v1152
    %1154 = vmatprep.subr.mxu0 0.0
    %v1155 = vand.u32 %v732, 4294901760
    %v1156 = vsub.f32 %v732, %v1155
    %v1157 = vand.u32 %v1156, 4294901760
    %1158 = vmatpush1.xpose.msra.mxu0 %v1157
    %1159 = vmatprep.subr.mxu0 0.0
    %v1160 = vand.u32 %v734, 4294901760
    %v1161 = vsub.f32 %v734, %v1160
    %v1162 = vand.u32 %v1161, 4294901760
    %1163 = vmatpush1.xpose.msra.mxu0 %v1162
    %1164 = vmatprep.subr.mxu0 0.0
    %v1165 = vand.u32 %v736, 4294901760
    %v1166 = vsub.f32 %v736, %v1165
    %v1167 = vand.u32 %v1166, 4294901760
    %1168 = vmatpush1.xpose.msra.mxu0 %v1167
    %1169 = vmatprep.subr.mxu0 0.0
    %v1170 = vand.u32 %v738, 4294901760
    %v1171 = vsub.f32 %v738, %v1170
    %v1172 = vand.u32 %v1171, 4294901760
    %1173 = vmatpush1.xpose.msra.mxu0 %v1172
    %1174 = vmatprep.subr.mxu0 0.0
    %1175 = vmatpush1.xpose.msra.mxu0 0.0
    %1176 = vmatprep.subr.mxu0 0.0
    %1177 = vmatpush1.xpose.msra.mxu0 0.0
    %1178 = vmatprep.subr.mxu0 0.0
    %1179 = vmatpush1.xpose.msra.mxu0 0.0
    %1180 = vmatprep.subr.mxu0 0.0
    %1181 = vmatpush1.xpose.msra.mxu0 0.0
    %1182 = vmatprep.subr.mxu0 0.0
    %1183 = vmatpush1.xpose.msra.mxu0 0.0
    %1184 = vmatprep.subr.mxu0 0.0
    %1185 = vmatpush1.xpose.msra.mxu0 0.0
    %1186 = vmatprep.subr.mxu0 0.0
    %1187 = vmatpush1.xpose.msra.mxu0 0.0
    %1188 = vmatprep.subr.mxu0 0.0
    %1189 = vmatpush1.xpose.msra.mxu0 0.0
    %1190 = vmatprep.subr.mxu0 0.0
    %1191 = vmatpush1.xpose.msra.mxu0 0.0
    %1192 = vmatprep.subr.mxu0 0.0
    %1193 = vmatpush1.xpose.msra.mxu0 0.0
    %1194 = vmatprep.subr.mxu0 0.0
    %1195 = vmatpush1.xpose.msra.mxu0 0.0
    %1196 = vmatprep.subr.mxu0 0.0
    %1197 = vmatpush1.xpose.msra.mxu0 0.0
    %1198 = vmatprep.subr.mxu0 0.0
    %1199 = vmatpush1.xpose.msra.mxu0 0.0
    %1200 = vmatprep.subr.mxu0 0.0
    %1201 = vmatpush1.xpose.msra.mxu0 0.0
    %1202 = vmatprep.subr.mxu0 0.0
    %1203 = vmatpush1.xpose.msra.mxu0 0.0
    %1204 = vmatprep.subr.mxu0 0.0
    %1205 = vmatpush1.xpose.msra.mxu0 0.0
    %1206 = vmatprep.subr.mxu0 0.0
    %1207 = vmatpush1.xpose.msra.mxu0 0.0
    %1208 = vmatprep.subr.mxu0 0.0
    %1209 = vmatpush1.xpose.msra.mxu0 0.0
    %1210 = vmatprep.subr.mxu0 0.0
    %1211 = vmatpush1.xpose.msra.mxu0 0.0
    %1212 = vmatprep.subr.mxu0 0.0
    %1213 = vmatpush1.xpose.msra.mxu0 0.0
    %1214 = vmatprep.subr.mxu0 0.0
    %1215 = vmatpush1.xpose.msra.mxu0 0.0
    %1216 = vmatprep.subr.mxu0 0.0
    %1217 = vmatpush1.xpose.msra.mxu0 0.0
    %1218 = vmatprep.subr.mxu0 0.0
    %1219 = vmatpush1.xpose.msra.mxu0 0.0
    %1220 = vmatprep.subr.mxu0 0.0
    %1221 = vmatpush1.xpose.msra.mxu0 0.0
    %1222 = vmatprep.mubr.f32.mxu0 0.0
    %v1223 = vand.u32 %v719, 4294901760
    %1224 = vmatmul.mubr.f32.gmra.mrb[0].mxu0 %v1223
    %v1225 = vpop.f32.mrb[0].mxu0
    %v1226 = vadd.f32 %v1123, %v1225
    %v1227 = vpop.f32.mrb[0].mxu0
    %1228 = vmatprep.mubr.f32.mxu0 0.0
    %v1229 = vand.u32 %v722, 4294901760
    %1230 = vmatmul.mubr.f32.gmra.mrb[0].mxu0 %v1229
    %v1231 = vpop.f32.mrb[0].mxu0
    %v1232 = vadd.f32 %v1131, %v1231
    %v1233 = vpop.f32.mrb[0].mxu0
    %1234 = vdwg.mxu0
    %1235 = vmatprep.subr.mxu0 0.0
    %v1236 = vand.u32 %v724, 4294901760
    %1237 = vmatpush1.xpose.msra.mxu0 %v1236
    %1238 = vmatprep.subr.mxu0 0.0
    %v1239 = vand.u32 %v726, 4294901760
    %1240 = vmatpush1.xpose.msra.mxu0 %v1239
    %1241 = vmatprep.subr.mxu0 0.0
    %v1242 = vand.u32 %v728, 4294901760
    %1243 = vmatpush1.xpose.msra.mxu0 %v1242
    %1244 = vmatprep.subr.mxu0 0.0
    %v1245 = vand.u32 %v730, 4294901760
    %1246 = vmatpush1.xpose.msra.mxu0 %v1245
    %1247 = vmatprep.subr.mxu0 0.0
    %v1248 = vand.u32 %v732, 4294901760
    %1249 = vmatpush1.xpose.msra.mxu0 %v1248
    %1250 = vmatprep.subr.mxu0 0.0
    %v1251 = vand.u32 %v734, 4294901760
    %1252 = vmatpush1.xpose.msra.mxu0 %v1251
    %1253 = vmatprep.subr.mxu0 0.0
    %v1254 = vand.u32 %v736, 4294901760
    %1255 = vmatpush1.xpose.msra.mxu0 %v1254
    %1256 = vmatprep.subr.mxu0 0.0
    %v1257 = vand.u32 %v738, 4294901760
    %1258 = vmatpush1.xpose.msra.mxu0 %v1257
    %1259 = vmatprep.subr.mxu0 0.0
    %1260 = vmatpush1.xpose.msra.mxu0 0.0
    %1261 = vmatprep.subr.mxu0 0.0
    %1262 = vmatpush1.xpose.msra.mxu0 0.0
    %1263 = vmatprep.subr.mxu0 0.0
    %1264 = vmatpush1.xpose.msra.mxu0 0.0
    %1265 = vmatprep.subr.mxu0 0.0
    %1266 = vmatpush1.xpose.msra.mxu0 0.0
    %1267 = vmatprep.subr.mxu0 0.0
    %1268 = vmatpush1.xpose.msra.mxu0 0.0
    %1269 = vmatprep.subr.mxu0 0.0
    %1270 = vmatpush1.xpose.msra.mxu0 0.0
    %1271 = vmatprep.subr.mxu0 0.0
    %1272 = vmatpush1.xpose.msra.mxu0 0.0
    %1273 = vmatprep.subr.mxu0 0.0
    %1274 = vmatpush1.xpose.msra.mxu0 0.0
    %1275 = vmatprep.subr.mxu0 0.0
    %1276 = vmatpush1.xpose.msra.mxu0 0.0
    %1277 = vmatprep.subr.mxu0 0.0
    %1278 = vmatpush1.xpose.msra.mxu0 0.0
    %1279 = vmatprep.subr.mxu0 0.0
    %1280 = vmatpush1.xpose.msra.mxu0 0.0
    %1281 = vmatprep.subr.mxu0 0.0
    %1282 = vmatpush1.xpose.msra.mxu0 0.0
    %1283 = vmatprep.subr.mxu0 0.0
    %1284 = vmatpush1.xpose.msra.mxu0 0.0
    %1285 = vmatprep.subr.mxu0 0.0
    %1286 = vmatpush1.xpose.msra.mxu0 0.0
    %1287 = vmatprep.subr.mxu0 0.0
    %1288 = vmatpush1.xpose.msra.mxu0 0.0
    %1289 = vmatprep.subr.mxu0 0.0
    %1290 = vmatpush1.xpose.msra.mxu0 0.0
    %1291 = vmatprep.subr.mxu0 0.0
    %1292 = vmatpush1.xpose.msra.mxu0 0.0
    %1293 = vmatprep.subr.mxu0 0.0
    %1294 = vmatpush1.xpose.msra.mxu0 0.0
    %1295 = vmatprep.subr.mxu0 0.0
    %1296 = vmatpush1.xpose.msra.mxu0 0.0
    %1297 = vmatprep.subr.mxu0 0.0
    %1298 = vmatpush1.xpose.msra.mxu0 0.0
    %1299 = vmatprep.subr.mxu0 0.0
    %1300 = vmatpush1.xpose.msra.mxu0 0.0
    %1301 = vmatprep.subr.mxu0 0.0
    %1302 = vmatpush1.xpose.msra.mxu0 0.0
    %1303 = vmatprep.subr.mxu0 0.0
    %1304 = vmatpush1.xpose.msra.mxu0 0.0
    %1305 = vmatprep.subr.mxu0 0.0
    %1306 = vmatpush1.xpose.msra.mxu0 0.0
    %1307 = vmatprep.mubr.f32.mxu0 0.0
    %v1308 = vand.u32 %v719, 4294901760
    %1309 = vmatmul.mubr.f32.gmra.mrb[0].mxu0 %v1308
    %v1310 = vpop.f32.mrb[0].mxu0
    %v1311 = vadd.f32 %v1226, %v1310
    %v1312 = vpop.f32.mrb[0].mxu0
    %1313 = vmatprep.mubr.f32.mxu0 0.0
    %v1314 = vand.u32 %v722, 4294901760
    %1315 = vmatmul.mubr.f32.gmra.mrb[0].mxu0 %v1314
    %v1316 = vpop.f32.mrb[0].mxu0
    %v1317 = vadd.f32 %v1232, %v1316
    %v1318 = vpop.f32.mrb[0].mxu0
    %1319 = vdwg.mxu0
    %v1320 = vld [vmem:[%s7] sm:$0xff]
    %v1321 = vld [vmem:[%s7 + $0x8] sm:$0xff]
    %v1322 = vsub.f32 1.0, %v1320
    %v1323 = vsub.f32 1.0, %v1321
    %v1324 = vmul.f32 %v1322, 1e+30
    %v1325 = vmul.f32 %v1323, 1e+30
    %v1326 = vsub.f32 %v1311, %v1324
    %v1327 = vsub.f32 %v1317, %v1325
    %vm1328 = vcmask 523264
    %v1329 = vsel %vm1328, %v1326, -inf
    %1330 = vmax.xlane.f32.xlu0 %v1329
    %v1331 = vpop.xlane.xlu0 %1330
    %v1332 = vsel %vm1328, %v1327, -inf
    %1333 = vmax.xlane.f32.xlu0 %v1332
    %v1334 = vpop.xlane.xlu0 %1333
    %v1335 = vsub.f32 %v1326, %v1331
    %v1336 = vsub.f32 %v1327, %v1334
    %v1337 = vmul.f32 %v1335, 1.442695
    %v1338 = vpow.pop %v1337
    %v1339 = vmul.f32 %v1336, 1.442695
    %v1340 = vpow.pop %v1339
    %v1341 = vld [vmem:[#allocation10] sm:$0xff]
    %v1342 = vld [vmem:[#allocation10 + $0x8] sm:$0xff]
    %v1343 = vld [vmem:[#allocation10 + $0x10] sm:$0xff]
    %v1344 = vld [vmem:[#allocation10 + $0x18] sm:$0xff]
    %v1345 = vld [vmem:[#allocation10 + $0x20] sm:$0xff]
    %v1346 = vld [vmem:[#allocation10 + $0x28] sm:$0xff]
    %v1347 = vld [vmem:[#allocation10 + $0x30] sm:$0xff]
    %v1348 = vld [vmem:[#allocation10 + $0x38] sm:$0xff]
    %v1350 = vsel %vm1328, %v1338, 0
    %v1353 = vsel %vm1328, %v1340, 0
    %1355 = vmatprep.subr.mxu0 0.0
    %v1356 = vand.u32 %v1341, 4294901760
    %1357 = vmatpush1.msra.mxu0 %v1356
    %1358 = vmatprep.subr.mxu0 0.0
    %v1359 = vand.u32 %v1342, 4294901760
    %1360 = vmatpush1.msra.mxu0 %v1359
    %1361 = vmatprep.subr.mxu0 0.0
    %v1362 = vand.u32 %v1343, 4294901760
    %1363 = vmatpush1.msra.mxu0 %v1362
    %1364 = vmatprep.subr.mxu0 0.0
    %v1365 = vand.u32 %v1344, 4294901760
    %1366 = vmatpush1.msra.mxu0 %v1365
    %1367 = vmatprep.subr.mxu0 0.0
    %v1368 = vand.u32 %v1345, 4294901760
    %1369 = vmatpush1.msra.mxu0 %v1368
    %1370 = vmatprep.subr.mxu0 0.0
    %v1371 = vand.u32 %v1346, 4294901760
    %1372 = vmatpush1.msra.mxu0 %v1371
    %1373 = vmatprep.subr.mxu0 0.0
    %v1374 = vand.u32 %v1347, 4294901760
    %1375 = vmatpush1.msra.mxu0 %v1374
    %1376 = vmatprep.subr.mxu0 0.0
    %v1377 = vand.u32 %v1348, 4294901760
    %1378 = vmatpush1.msra.mxu0 %v1377
    %1379 = vmatprep.subr.mxu0 0.0
    %1380 = vmatpush1.msra.mxu0 0.0
    %1381 = vmatprep.subr.mxu0 0.0
    %1382 = vmatpush1.msra.mxu0 0.0
    %1383 = vmatprep.subr.mxu0 0.0
    %1384 = vmatpush1.msra.mxu0 0.0
    %1385 = vmatprep.subr.mxu0 0.0
    %1386 = vmatpush1.msra.mxu0 0.0
    %1387 = vmatprep.subr.mxu0 0.0
    %1388 = vmatpush1.msra.mxu0 0.0
    %1389 = vmatprep.subr.mxu0 0.0
    %1390 = vmatpush1.msra.mxu0 0.0
    %1391 = vmatprep.subr.mxu0 0.0
    %1392 = vmatpush1.msra.mxu0 0.0
    %1393 = vmatprep.subr.mxu0 0.0
    %1394 = vmatpush1.msra.mxu0 0.0
    %1395 = vmatprep.subr.mxu0 0.0
    %1396 = vmatpush1.msra.mxu0 0.0
    %1397 = vmatprep.subr.mxu0 0.0
    %1398 = vmatpush1.msra.mxu0 0.0
    %1399 = vmatprep.subr.mxu0 0.0
    %1400 = vmatpush1.msra.mxu0 0.0
    %1401 = vmatprep.subr.mxu0 0.0
    %1402 = vmatpush1.msra.mxu0 0.0
    %1403 = vmatprep.subr.mxu0 0.0
    %1404 = vmatpush1.msra.mxu0 0.0
    %1405 = vmatprep.subr.mxu0 0.0
    %1406 = vmatpush1.msra.mxu0 0.0
    %1407 = vmatprep.subr.mxu0 0.0
    %1408 = vmatpush1.msra.mxu0 0.0
    %1409 = vmatprep.subr.mxu0 0.0
    %1410 = vmatpush1.msra.mxu0 0.0
    %1411 = vmatprep.subr.mxu0 0.0
    %1412 = vmatpush1.msra.mxu0 0.0
    %1413 = vmatprep.subr.mxu0 0.0
    %1414 = vmatpush1.msra.mxu0 0.0
    %1415 = vmatprep.subr.mxu0 0.0
    %1416 = vmatpush1.msra.mxu0 0.0
    %1417 = vmatprep.subr.mxu0 0.0
    %1418 = vmatpush1.msra.mxu0 0.0
    %1419 = vmatprep.subr.mxu0 0.0
    %1420 = vmatpush1.msra.mxu0 0.0
    %1421 = vmatprep.subr.mxu0 0.0
    %1422 = vmatpush1.msra.mxu0 0.0
    %1423 = vmatprep.subr.mxu0 0.0
    %1424 = vmatpush1.msra.mxu0 0.0
    %1425 = vmatprep.subr.mxu0 0.0
    %1426 = vmatpush1.msra.mxu0 0.0
    %1427 = vmatprep.mubr.f32.mxu0 0.0
    %v1428 = vand.u32 %v1350, 4294901760
    %v1429 = vsub.f32 %v1350, %v1428
    %v1430 = vand.u32 %v1429, 4294901760
    %v1431 = vsub.f32 %v1429, %v1430
    %v1432 = vand.u32 %v1431, 4294901760
    %1433 = vmatmul.mubr.f32.gmra.mrb[0].mxu0 %v1432
    %v1434 = vpop.f32.mrb[0].mxu0
    %v1435 = vadd.f32 %v1322, %v1434
    %v1436 = vpop.f32.mrb[0].mxu0
    %1437 = vmatprep.mubr.f32.mxu0 0.0
    %v1438 = vand.u32 %v1353, 4294901760
    %v1439 = vsub.f32 %v1353, %v1438
    %v1440 = vand.u32 %v1439, 4294901760
    %v1441 = vsub.f32 %v1439, %v1440
    %v1442 = vand.u32 %v1441, 4294901760
    %1443 = vmatmul.mubr.f32.gmra.mrb[0].mxu0 %v1442
    %v1444 = vpop.f32.mrb[0].mxu0
    %v1445 = vadd.f32 %v1323, %v1444
    %v1446 = vpop.f32.mrb[0].mxu0
    %1447 = vdwg.mxu0
    %1448 = vmatprep.subr.mxu0 0.0
    %v1449 = vand.u32 %v1341, 4294901760
    %v1450 = vsub.f32 %v1341, %v1449
    %v1451 = vand.u32 %v1450, 4294901760
    %v1452 = vsub.f32 %v1450, %v1451
    %v1453 = vand.u32 %v1452, 4294901760
    %1454 = vmatpush1.msra.mxu0 %v1453
    %1455 = vmatprep.subr.mxu0 0.0
    %v1456 = vand.u32 %v1342, 4294901760
    %v1457 = vsub.f32 %v1342, %v1456
    %v1458 = vand.u32 %v1457, 4294901760
    %v1459 = vsub.f32 %v1457, %v1458
    %v1460 = vand.u32 %v1459, 4294901760
    %1461 = vmatpush1.msra.mxu0 %v1460
    %1462 = vmatprep.subr.mxu0 0.0
    %v1463 = vand.u32 %v1343, 4294901760
    %v1464 = vsub.f32 %v1343, %v1463
    %v1465 = vand.u32 %v1464, 4294901760
    %v1466 = vsub.f32 %v1464, %v1465
    %v1467 = vand.u32 %v1466, 4294901760
    %1468 = vmatpush1.msra.mxu0 %v1467
    %1469 = vmatprep.subr.mxu0 0.0
    %v1470 = vand.u32 %v1344, 4294901760
    %v1471 = vsub.f32 %v1344, %v1470
    %v1472 = vand.u32 %v1471, 4294901760
    %v1473 = vsub.f32 %v1471, %v1472
    %v1474 = vand.u32 %v1473, 4294901760
    %1475 = vmatpush1.msra.mxu0 %v1474
    %1476 = vmatprep.subr.mxu0 0.0
    %v1477 = vand.u32 %v1345, 4294901760
    %v1478 = vsub.f32 %v1345, %v1477
    %v1479 = vand.u32 %v1478, 4294901760
    %v1480 = vsub.f32 %v1478, %v1479
    %v1481 = vand.u32 %v1480, 4294901760
    %1482 = vmatpush1.msra.mxu0 %v1481
    %1483 = vmatprep.subr.mxu0 0.0
    %v1484 = vand.u32 %v1346, 4294901760
    %v1485 = vsub.f32 %v1346, %v1484
    %v1486 = vand.u32 %v1485, 4294901760
    %v1487 = vsub.f32 %v1485, %v1486
    %v1488 = vand.u32 %v1487, 4294901760
    %1489 = vmatpush1.msra.mxu0 %v1488
    %1490 = vmatprep.subr.mxu0 0.0
    %v1491 = vand.u32 %v1347, 4294901760
    %v1492 = vsub.f32 %v1347, %v1491
    %v1493 = vand.u32 %v1492, 4294901760
    %v1494 = vsub.f32 %v1492, %v1493
    %v1495 = vand.u32 %v1494, 4294901760
    %1496 = vmatpush1.msra.mxu0 %v1495
    %1497 = vmatprep.subr.mxu0 0.0
    %v1498 = vand.u32 %v1348, 4294901760
    %v1499 = vsub.f32 %v1348, %v1498
    %v1500 = vand.u32 %v1499, 4294901760
    %v1501 = vsub.f32 %v1499, %v1500
    %v1502 = vand.u32 %v1501, 4294901760
    %1503 = vmatpush1.msra.mxu0 %v1502
    %1504 = vmatprep.subr.mxu0 0.0
    %1505 = vmatpush1.msra.mxu0 0.0
    %1506 = vmatprep.subr.mxu0 0.0
    %1507 = vmatpush1.msra.mxu0 0.0
    %1508 = vmatprep.subr.mxu0 0.0
    %1509 = vmatpush1.msra.mxu0 0.0
    %1510 = vmatprep.subr.mxu0 0.0
    %1511 = vmatpush1.msra.mxu0 0.0
    %1512 = vmatprep.subr.mxu0 0.0
    %1513 = vmatpush1.msra.mxu0 0.0
    %1514 = vmatprep.subr.mxu0 0.0
    %1515 = vmatpush1.msra.mxu0 0.0
    %1516 = vmatprep.subr.mxu0 0.0
    %1517 = vmatpush1.msra.mxu0 0.0
    %1518 = vmatprep.subr.mxu0 0.0
    %1519 = vmatpush1.msra.mxu0 0.0
    %1520 = vmatprep.subr.mxu0 0.0
    %1521 = vmatpush1.msra.mxu0 0.0
    %1522 = vmatprep.subr.mxu0 0.0
    %1523 = vmatpush1.msra.mxu0 0.0
    %1524 = vmatprep.subr.mxu0 0.0
    %1525 = vmatpush1.msra.mxu0 0.0
    %1526 = vmatprep.subr.mxu0 0.0
    %1527 = vmatpush1.msra.mxu0 0.0
    %1528 = vmatprep.subr.mxu0 0.0
    %1529 = vmatpush1.msra.mxu0 0.0
    %1530 = vmatprep.subr.mxu0 0.0
    %1531 = vmatpush1.msra.mxu0 0.0
    %1532 = vmatprep.subr.mxu0 0.0
    %1533 = vmatpush1.msra.mxu0 0.0
    %1534 = vmatprep.subr.mxu0 0.0
    %1535 = vmatpush1.msra.mxu0 0.0
    %1536 = vmatprep.subr.mxu0 0.0
    %1537 = vmatpush1.msra.mxu0 0.0
    %1538 = vmatprep.subr.mxu0 0.0
    %1539 = vmatpush1.msra.mxu0 0.0
    %1540 = vmatprep.subr.mxu0 0.0
    %1541 = vmatpush1.msra.mxu0 0.0
    %1542 = vmatprep.subr.mxu0 0.0
    %1543 = vmatpush1.msra.mxu0 0.0
    %1544 = vmatprep.subr.mxu0 0.0
    %1545 = vmatpush1.msra.mxu0 0.0
    %1546 = vmatprep.subr.mxu0 0.0
    %1547 = vmatpush1.msra.mxu0 0.0
    %1548 = vmatprep.subr.mxu0 0.0
    %1549 = vmatpush1.msra.mxu0 0.0
    %1550 = vmatprep.subr.mxu0 0.0
    %1551 = vmatpush1.msra.mxu0 0.0
    %1552 = vmatprep.mubr.f32.mxu0 0.0
    %v1553 = vand.u32 %v1350, 4294901760
    %1554 = vmatmul.mubr.f32.gmra.mrb[0].mxu0 %v1553
    %v1555 = vpop.f32.mrb[0].mxu0
    %v1556 = vadd.f32 %v1435, %v1555
    %v1557 = vpop.f32.mrb[0].mxu0
    %1558 = vmatprep.mubr.f32.mxu0 0.0
    %v1559 = vand.u32 %v1353, 4294901760
    %1560 = vmatmul.mubr.f32.gmra.mrb[0].mxu0 %v1559
    %v1561 = vpop.f32.mrb[0].mxu0
    %v1562 = vadd.f32 %v1445, %v1561
    %v1563 = vpop.f32.mrb[0].mxu0
    %1564 = vdwg.mxu0
    %1565 = vmatprep.subr.mxu0 0.0
    %v1566 = vand.u32 %v1341, 4294901760
    %v1567 = vsub.f32 %v1341, %v1566
    %1568 = vmatpush1.msra.mxu0 %v1567
    %1569 = vmatprep.subr.mxu0 0.0
    %v1570 = vand.u32 %v1342, 4294901760
    %v1571 = vsub.f32 %v1342, %v1570
    %1572 = vmatpush1.msra.mxu0 %v1571
    %1573 = vmatprep.subr.mxu0 0.0
    %v1574 = vand.u32 %v1343, 4294901760
    %v1575 = vsub.f32 %v1343, %v1574
    %1576 = vmatpush1.msra.mxu0 %v1575
    %1577 = vmatprep.subr.mxu0 0.0
    %v1578 = vand.u32 %v1344, 4294901760
    %v1579 = vsub.f32 %v1344, %v1578
    %1580 = vmatpush1.msra.mxu0 %v1579
    %1581 = vmatprep.subr.mxu0 0.0
    %v1582 = vand.u32 %v1345, 4294901760
    %v1583 = vsub.f32 %v1345, %v1582
    %1584 = vmatpush1.msra.mxu0 %v1583
    %1585 = vmatprep.subr.mxu0 0.0
    %v1586 = vand.u32 %v1346, 4294901760
    %v1587 = vsub.f32 %v1346, %v1586
    %1588 = vmatpush1.msra.mxu0 %v1587
    %1589 = vmatprep.subr.mxu0 0.0
    %v1590 = vand.u32 %v1347, 4294901760
    %v1591 = vsub.f32 %v1347, %v1590
    %1592 = vmatpush1.msra.mxu0 %v1591
    %1593 = vmatprep.subr.mxu0 0.0
    %v1594 = vand.u32 %v1348, 4294901760
    %v1595 = vsub.f32 %v1348, %v1594
    %1596 = vmatpush1.msra.mxu0 %v1595
    %1597 = vmatprep.subr.mxu0 0.0
    %1598 = vmatpush1.msra.mxu0 0.0
    %1599 = vmatprep.subr.mxu0 0.0
    %1600 = vmatpush1.msra.mxu0 0.0
    %1601 = vmatprep.subr.mxu0 0.0
    %1602 = vmatpush1.msra.mxu0 0.0
    %1603 = vmatprep.subr.mxu0 0.0
    %1604 = vmatpush1.msra.mxu0 0.0
    %1605 = vmatprep.subr.mxu0 0.0
    %1606 = vmatpush1.msra.mxu0 0.0
    %1607 = vmatprep.subr.mxu0 0.0
    %1608 = vmatpush1.msra.mxu0 0.0
    %1609 = vmatprep.subr.mxu0 0.0
    %1610 = vmatpush1.msra.mxu0 0.0
    %1611 = vmatprep.subr.mxu0 0.0
    %1612 = vmatpush1.msra.mxu0 0.0
    %1613 = vmatprep.subr.mxu0 0.0
    %1614 = vmatpush1.msra.mxu0 0.0
    %1615 = vmatprep.subr.mxu0 0.0
    %1616 = vmatpush1.msra.mxu0 0.0
    %1617 = vmatprep.subr.mxu0 0.0
    %1618 = vmatpush1.msra.mxu0 0.0
    %1619 = vmatprep.subr.mxu0 0.0
    %1620 = vmatpush1.msra.mxu0 0.0
    %1621 = vmatprep.subr.mxu0 0.0
    %1622 = vmatpush1.msra.mxu0 0.0
    %1623 = vmatprep.subr.mxu0 0.0
    %1624 = vmatpush1.msra.mxu0 0.0
    %1625 = vmatprep.subr.mxu0 0.0
    %1626 = vmatpush1.msra.mxu0 0.0
    %1627 = vmatprep.subr.mxu0 0.0
    %1628 = vmatpush1.msra.mxu0 0.0
    %1629 = vmatprep.subr.mxu0 0.0
    %1630 = vmatpush1.msra.mxu0 0.0
    %1631 = vmatprep.subr.mxu0 0.0
    %1632 = vmatpush1.msra.mxu0 0.0
    %1633 = vmatprep.subr.mxu0 0.0
    %1634 = vmatpush1.msra.mxu0 0.0
    %1635 = vmatprep.subr.mxu0 0.0
    %1636 = vmatpush1.msra.mxu0 0.0
    %1637 = vmatprep.subr.mxu0 0.0
    %1638 = vmatpush1.msra.mxu0 0.0
    %1639 = vmatprep.subr.mxu0 0.0
    %1640 = vmatpush1.msra.mxu0 0.0
    %1641 = vmatprep.subr.mxu0 0.0
    %1642 = vmatpush1.msra.mxu0 0.0
    %1643 = vmatprep.subr.mxu0 0.0
    %1644 = vmatpush1.msra.mxu0 0.0
    %1645 = vmatprep.mubr.f32.mxu0 0.0
    %v1646 = vand.u32 %v1350, 4294901760
    %v1647 = vsub.f32 %v1350, %v1646
    %1648 = vmatmul.mubr.f32.gmra.mrb[0].mxu0 %v1647
    %v1649 = vpop.f32.mrb[0].mxu0
    %v1650 = vadd.f32 %v1556, %v1649
    %v1651 = vpop.f32.mrb[0].mxu0
    %1652 = vmatprep.mubr.f32.mxu0 0.0
    %v1653 = vand.u32 %v1353, 4294901760
    %v1654 = vsub.f32 %v1353, %v1653
    %1655 = vmatmul.mubr.f32.gmra.mrb[0].mxu0 %v1654
    %v1656 = vpop.f32.mrb[0].mxu0
    %v1657 = vadd.f32 %v1562, %v1656
    %v1658 = vpop.f32.mrb[0].mxu0
    %1659 = vdwg.mxu0
    %1660 = vmatprep.subr.mxu0 0.0
    %v1661 = vand.u32 %v1341, 4294901760
    %1662 = vmatpush1.msra.mxu0 %v1661
    %1663 = vmatprep.subr.mxu0 0.0
    %v1664 = vand.u32 %v1342, 4294901760
    %1665 = vmatpush1.msra.mxu0 %v1664
    %1666 = vmatprep.subr.mxu0 0.0
    %v1667 = vand.u32 %v1343, 4294901760
    %1668 = vmatpush1.msra.mxu0 %v1667
    %1669 = vmatprep.subr.mxu0 0.0
    %v1670 = vand.u32 %v1344, 4294901760
    %1671 = vmatpush1.msra.mxu0 %v1670
    %1672 = vmatprep.subr.mxu0 0.0
    %v1673 = vand.u32 %v1345, 4294901760
    %1674 = vmatpush1.msra.mxu0 %v1673
    %1675 = vmatprep.subr.mxu0 0.0
    %v1676 = vand.u32 %v1346, 4294901760
    %1677 = vmatpush1.msra.mxu0 %v1676
    %1678 = vmatprep.subr.mxu0 0.0
    %v1679 = vand.u32 %v1347, 4294901760
    %1680 = vmatpush1.msra.mxu0 %v1679
    %1681 = vmatprep.subr.mxu0 0.0
    %v1682 = vand.u32 %v1348, 4294901760
    %1683 = vmatpush1.msra.mxu0 %v1682
    %1684 = vmatprep.subr.mxu0 0.0
    %1685 = vmatpush1.msra.mxu0 0.0
    %1686 = vmatprep.subr.mxu0 0.0
    %1687 = vmatpush1.msra.mxu0 0.0
    %1688 = vmatprep.subr.mxu0 0.0
    %1689 = vmatpush1.msra.mxu0 0.0
    %1690 = vmatprep.subr.mxu0 0.0
    %1691 = vmatpush1.msra.mxu0 0.0
    %1692 = vmatprep.subr.mxu0 0.0
    %1693 = vmatpush1.msra.mxu0 0.0
    %1694 = vmatprep.subr.mxu0 0.0
    %1695 = vmatpush1.msra.mxu0 0.0
    %1696 = vmatprep.subr.mxu0 0.0
    %1697 = vmatpush1.msra.mxu0 0.0
    %1698 = vmatprep.subr.mxu0 0.0
    %1699 = vmatpush1.msra.mxu0 0.0
    %1700 = vmatprep.subr.mxu0 0.0
    %1701 = vmatpush1.msra.mxu0 0.0
    %1702 = vmatprep.subr.mxu0 0.0
    %1703 = vmatpush1.msra.mxu0 0.0
    %1704 = vmatprep.subr.mxu0 0.0
    %1705 = vmatpush1.msra.mxu0 0.0
    %1706 = vmatprep.subr.mxu0 0.0
    %1707 = vmatpush1.msra.mxu0 0.0
    %1708 = vmatprep.subr.mxu0 0.0
    %1709 = vmatpush1.msra.mxu0 0.0
    %1710 = vmatprep.subr.mxu0 0.0
    %1711 = vmatpush1.msra.mxu0 0.0
    %1712 = vmatprep.subr.mxu0 0.0
    %1713 = vmatpush1.msra.mxu0 0.0
    %1714 = vmatprep.subr.mxu0 0.0
    %1715 = vmatpush1.msra.mxu0 0.0
    %1716 = vmatprep.subr.mxu0 0.0
    %1717 = vmatpush1.msra.mxu0 0.0
    %1718 = vmatprep.subr.mxu0 0.0
    %1719 = vmatpush1.msra.mxu0 0.0
    %1720 = vmatprep.subr.mxu0 0.0
    %1721 = vmatpush1.msra.mxu0 0.0
    %1722 = vmatprep.subr.mxu0 0.0
    %1723 = vmatpush1.msra.mxu0 0.0
    %1724 = vmatprep.subr.mxu0 0.0
    %1725 = vmatpush1.msra.mxu0 0.0
    %1726 = vmatprep.subr.mxu0 0.0
    %1727 = vmatpush1.msra.mxu0 0.0
    %1728 = vmatprep.subr.mxu0 0.0
    %1729 = vmatpush1.msra.mxu0 0.0
    %1730 = vmatprep.subr.mxu0 0.0
    %1731 = vmatpush1.msra.mxu0 0.0
    %1732 = vmatprep.mubr.f32.mxu0 0.0
    %v1733 = vand.u32 %v1350, 4294901760
    %v1734 = vsub.f32 %v1350, %v1733
    %v1735 = vand.u32 %v1734, 4294901760
    %1736 = vmatmul.mubr.f32.gmra.mrb[0].mxu0 %v1735
    %v1737 = vpop.f32.mrb[0].mxu0
    %v1738 = vadd.f32 %v1650, %v1737
    %v1739 = vpop.f32.mrb[0].mxu0
    %1740 = vmatprep.mubr.f32.mxu0 0.0
    %v1741 = vand.u32 %v1353, 4294901760
    %v1742 = vsub.f32 %v1353, %v1741
    %v1743 = vand.u32 %v1742, 4294901760
    %1744 = vmatmul.mubr.f32.gmra.mrb[0].mxu0 %v1743
    %v1745 = vpop.f32.mrb[0].mxu0
    %v1746 = vadd.f32 %v1657, %v1745
    %v1747 = vpop.f32.mrb[0].mxu0
    %1748 = vdwg.mxu0
    %1749 = vmatprep.subr.mxu0 0.0
    %v1750 = vand.u32 %v1341, 4294901760
    %v1751 = vsub.f32 %v1341, %v1750
    %v1752 = vand.u32 %v1751, 4294901760
    %1753 = vmatpush1.msra.mxu0 %v1752
    %1754 = vmatprep.subr.mxu0 0.0
    %v1755 = vand.u32 %v1342, 4294901760
    %v1756 = vsub.f32 %v1342, %v1755
    %v1757 = vand.u32 %v1756, 4294901760
    %1758 = vmatpush1.msra.mxu0 %v1757
    %1759 = vmatprep.subr.mxu0 0.0
    %v1760 = vand.u32 %v1343, 4294901760
    %v1761 = vsub.f32 %v1343, %v1760
    %v1762 = vand.u32 %v1761, 4294901760
    %1763 = vmatpush1.msra.mxu0 %v1762
    %1764 = vmatprep.subr.mxu0 0.0
    %v1765 = vand.u32 %v1344, 4294901760
    %v1766 = vsub.f32 %v1344, %v1765
    %v1767 = vand.u32 %v1766, 4294901760
    %1768 = vmatpush1.msra.mxu0 %v1767
    %1769 = vmatprep.subr.mxu0 0.0
    %v1770 = vand.u32 %v1345, 4294901760
    %v1771 = vsub.f32 %v1345, %v1770
    %v1772 = vand.u32 %v1771, 4294901760
    %1773 = vmatpush1.msra.mxu0 %v1772
    %1774 = vmatprep.subr.mxu0 0.0
    %v1775 = vand.u32 %v1346, 4294901760
    %v1776 = vsub.f32 %v1346, %v1775
    %v1777 = vand.u32 %v1776, 4294901760
    %1778 = vmatpush1.msra.mxu0 %v1777
    %1779 = vmatprep.subr.mxu0 0.0
    %v1780 = vand.u32 %v1347, 4294901760
    %v1781 = vsub.f32 %v1347, %v1780
    %v1782 = vand.u32 %v1781, 4294901760
    %1783 = vmatpush1.msra.mxu0 %v1782
    %1784 = vmatprep.subr.mxu0 0.0
    %v1785 = vand.u32 %v1348, 4294901760
    %v1786 = vsub.f32 %v1348, %v1785
    %v1787 = vand.u32 %v1786, 4294901760
    %1788 = vmatpush1.msra.mxu0 %v1787
    %1789 = vmatprep.subr.mxu0 0.0
    %1790 = vmatpush1.msra.mxu0 0.0
    %1791 = vmatprep.subr.mxu0 0.0
    %1792 = vmatpush1.msra.mxu0 0.0
    %1793 = vmatprep.subr.mxu0 0.0
    %1794 = vmatpush1.msra.mxu0 0.0
    %1795 = vmatprep.subr.mxu0 0.0
    %1796 = vmatpush1.msra.mxu0 0.0
    %1797 = vmatprep.subr.mxu0 0.0
    %1798 = vmatpush1.msra.mxu0 0.0
    %1799 = vmatprep.subr.mxu0 0.0
    %1800 = vmatpush1.msra.mxu0 0.0
    %1801 = vmatprep.subr.mxu0 0.0
    %1802 = vmatpush1.msra.mxu0 0.0
    %1803 = vmatprep.subr.mxu0 0.0
    %1804 = vmatpush1.msra.mxu0 0.0
    %1805 = vmatprep.subr.mxu0 0.0
    %1806 = vmatpush1.msra.mxu0 0.0
    %1807 = vmatprep.subr.mxu0 0.0
    %1808 = vmatpush1.msra.mxu0 0.0
    %1809 = vmatprep.subr.mxu0 0.0
    %1810 = vmatpush1.msra.mxu0 0.0
    %1811 = vmatprep.subr.mxu0 0.0
    %1812 = vmatpush1.msra.mxu0 0.0
    %1813 = vmatprep.subr.mxu0 0.0
    %1814 = vmatpush1.msra.mxu0 0.0
    %1815 = vmatprep.subr.mxu0 0.0
    %1816 = vmatpush1.msra.mxu0 0.0
    %1817 = vmatprep.subr.mxu0 0.0
    %1818 = vmatpush1.msra.mxu0 0.0
    %1819 = vmatprep.subr.mxu0 0.0
    %1820 = vmatpush1.msra.mxu0 0.0
    %1821 = vmatprep.subr.mxu0 0.0
    %1822 = vmatpush1.msra.mxu0 0.0
    %1823 = vmatprep.subr.mxu0 0.0
    %1824 = vmatpush1.msra.mxu0 0.0
    %1825 = vmatprep.subr.mxu0 0.0
    %1826 = vmatpush1.msra.mxu0 0.0
    %1827 = vmatprep.subr.mxu0 0.0
    %1828 = vmatpush1.msra.mxu0 0.0
    %1829 = vmatprep.subr.mxu0 0.0
    %1830 = vmatpush1.msra.mxu0 0.0
    %1831 = vmatprep.subr.mxu0 0.0
    %1832 = vmatpush1.msra.mxu0 0.0
    %1833 = vmatprep.subr.mxu0 0.0
    %1834 = vmatpush1.msra.mxu0 0.0
    %1835 = vmatprep.subr.mxu0 0.0
    %1836 = vmatpush1.msra.mxu0 0.0
    %1837 = vmatprep.mubr.f32.mxu0 0.0
    %v1838 = vand.u32 %v1350, 4294901760
    %1839 = vmatmul.mubr.f32.gmra.mrb[0].mxu0 %v1838
    %v1840 = vpop.f32.mrb[0].mxu0
    %v1841 = vadd.f32 %v1738, %v1840
    %v1842 = vpop.f32.mrb[0].mxu0
    %1843 = vmatprep.mubr.f32.mxu0 0.0
    %v1844 = vand.u32 %v1353, 4294901760
    %1845 = vmatmul.mubr.f32.gmra.mrb[0].mxu0 %v1844
    %v1846 = vpop.f32.mrb[0].mxu0
    %v1847 = vadd.f32 %v1746, %v1846
    %v1848 = vpop.f32.mrb[0].mxu0
    %1849 = vdwg.mxu0
    %1850 = vmatprep.subr.mxu0 0.0
    %v1851 = vand.u32 %v1341, 4294901760
    %1852 = vmatpush1.msra.mxu0 %v1851
    %1853 = vmatprep.subr.mxu0 0.0
    %v1854 = vand.u32 %v1342, 4294901760
    %1855 = vmatpush1.msra.mxu0 %v1854
    %1856 = vmatprep.subr.mxu0 0.0
    %v1857 = vand.u32 %v1343, 4294901760
    %1858 = vmatpush1.msra.mxu0 %v1857
    %1859 = vmatprep.subr.mxu0 0.0
    %v1860 = vand.u32 %v1344, 4294901760
    %1861 = vmatpush1.msra.mxu0 %v1860
    %1862 = vmatprep.subr.mxu0 0.0
    %v1863 = vand.u32 %v1345, 4294901760
    %1864 = vmatpush1.msra.mxu0 %v1863
    %1865 = vmatprep.subr.mxu0 0.0
    %v1866 = vand.u32 %v1346, 4294901760
    %1867 = vmatpush1.msra.mxu0 %v1866
    %1868 = vmatprep.subr.mxu0 0.0
    %v1869 = vand.u32 %v1347, 4294901760
    %1870 = vmatpush1.msra.mxu0 %v1869
    %1871 = vmatprep.subr.mxu0 0.0
    %v1872 = vand.u32 %v1348, 4294901760
    %1873 = vmatpush1.msra.mxu0 %v1872
    %1874 = vmatprep.subr.mxu0 0.0
    %1875 = vmatpush1.msra.mxu0 0.0
    %1876 = vmatprep.subr.mxu0 0.0
    %1877 = vmatpush1.msra.mxu0 0.0
    %1878 = vmatprep.subr.mxu0 0.0
    %1879 = vmatpush1.msra.mxu0 0.0
    %1880 = vmatprep.subr.mxu0 0.0
    %1881 = vmatpush1.msra.mxu0 0.0
    %1882 = vmatprep.subr.mxu0 0.0
    %1883 = vmatpush1.msra.mxu0 0.0
    %1884 = vmatprep.subr.mxu0 0.0
    %1885 = vmatpush1.msra.mxu0 0.0
    %1886 = vmatprep.subr.mxu0 0.0
    %1887 = vmatpush1.msra.mxu0 0.0
    %1888 = vmatprep.subr.mxu0 0.0
    %1889 = vmatpush1.msra.mxu0 0.0
    %1890 = vmatprep.subr.mxu0 0.0
    %1891 = vmatpush1.msra.mxu0 0.0
    %1892 = vmatprep.subr.mxu0 0.0
    %1893 = vmatpush1.msra.mxu0 0.0
    %1894 = vmatprep.subr.mxu0 0.0
    %1895 = vmatpush1.msra.mxu0 0.0
    %1896 = vmatprep.subr.mxu0 0.0
    %1897 = vmatpush1.msra.mxu0 0.0
    %1898 = vmatprep.subr.mxu0 0.0
    %1899 = vmatpush1.msra.mxu0 0.0
    %1900 = vmatprep.subr.mxu0 0.0
    %1901 = vmatpush1.msra.mxu0 0.0
    %1902 = vmatprep.subr.mxu0 0.0
    %1903 = vmatpush1.msra.mxu0 0.0
    %1904 = vmatprep.subr.mxu0 0.0
    %1905 = vmatpush1.msra.mxu0 0.0
    %1906 = vmatprep.subr.mxu0 0.0
    %1907 = vmatpush1.msra.mxu0 0.0
    %1908 = vmatprep.subr.mxu0 0.0
    %1909 = vmatpush1.msra.mxu0 0.0
    %1910 = vmatprep.subr.mxu0 0.0
    %1911 = vmatpush1.msra.mxu0 0.0
    %1912 = vmatprep.subr.mxu0 0.0
    %1913 = vmatpush1.msra.mxu0 0.0
    %1914 = vmatprep.subr.mxu0 0.0
    %1915 = vmatpush1.msra.mxu0 0.0
    %1916 = vmatprep.subr.mxu0 0.0
    %1917 = vmatpush1.msra.mxu0 0.0
    %1918 = vmatprep.subr.mxu0 0.0
    %1919 = vmatpush1.msra.mxu0 0.0
    %1920 = vmatprep.subr.mxu0 0.0
    %1921 = vmatpush1.msra.mxu0 0.0
    %1922 = vmatprep.mubr.f32.mxu0 0.0
    %v1923 = vand.u32 %v1350, 4294901760
    %1924 = vmatmul.mubr.f32.gmra.mrb[0].mxu0 %v1923
    %v1925 = vpop.f32.mrb[0].mxu0
    %v1926 = vadd.f32 %v1841, %v1925
    %v1927 = vpop.f32.mrb[0].mxu0
    %1928 = vmatprep.mubr.f32.mxu0 0.0
    %v1929 = vand.u32 %v1353, 4294901760
    %1930 = vmatmul.mubr.f32.gmra.mrb[0].mxu0 %v1929
    %v1931 = vpop.f32.mrb[0].mxu0
    %v1932 = vadd.f32 %v1847, %v1931
    %v1933 = vpop.f32.mrb[0].mxu0
    %1934 = vdwg.mxu0
    %v1935 = vadd.f32 %v1926, 1e-30
    %v1936 = vadd.f32 %v1932, 1e-30
    %v1937 = vrcp.pop %v1935
    %v1938 = vmul.f32 %v1338, %v1937
    %v1939 = vrcp.pop %v1936
    %v1940 = vmul.f32 %v1340, %v1939
    %1941 = vrot.lane.b32.xlu0 %v686, 64
    %v1942 = vpop.permute.xlu0 %1941
    %1943 = vrot.lane.b32.xlu0 %v687, 64
    %v1944 = vpop.permute.xlu0 %1943
    %1945 = vrot.lane.b32.xlu0 %v688, 64
    %v1946 = vpop.permute.xlu0 %1945
    %1947 = vrot.lane.b32.xlu0 %v689, 64
    %v1948 = vpop.permute.xlu0 %1947
    %1949 = vrot.lane.b32.xlu0 %v690, 64
    %v1950 = vpop.permute.xlu0 %1949
    %1951 = vrot.lane.b32.xlu0 %v691, 64
    %v1952 = vpop.permute.xlu0 %1951
    %1953 = vrot.lane.b32.xlu0 %v692, 64
    %v1954 = vpop.permute.xlu0 %1953
    %1955 = vrot.lane.b32.xlu0 %v693, 64
    %v1956 = vpop.permute.xlu0 %1955
    %v1966 = vsel %vm1328, %v1938, 0
    %v1969 = vsel %vm1328, %v1940, 0
    %1971 = vmatprep.subr.mxu0 0.0
    %v1972 = vand.u32 %v1942, 4294901760
    %1973 = vmatpush1.msra.mxu0 %v1972
    %1974 = vmatprep.subr.mxu0 0.0
    %v1975 = vand.u32 %v1944, 4294901760
    %1976 = vmatpush1.msra.mxu0 %v1975
    %1977 = vmatprep.subr.mxu0 0.0
    %v1978 = vand.u32 %v1946, 4294901760
    %1979 = vmatpush1.msra.mxu0 %v1978
    %1980 = vmatprep.subr.mxu0 0.0
    %v1981 = vand.u32 %v1948, 4294901760
    %1982 = vmatpush1.msra.mxu0 %v1981
    %1983 = vmatprep.subr.mxu0 0.0
    %v1984 = vand.u32 %v1950, 4294901760
    %1985 = vmatpush1.msra.mxu0 %v1984
    %1986 = vmatprep.subr.mxu0 0.0
    %v1987 = vand.u32 %v1952, 4294901760
    %1988 = vmatpush1.msra.mxu0 %v1987
    %1989 = vmatprep.subr.mxu0 0.0
    %v1990 = vand.u32 %v1954, 4294901760
    %1991 = vmatpush1.msra.mxu0 %v1990
    %1992 = vmatprep.subr.mxu0 0.0
    %v1993 = vand.u32 %v1956, 4294901760
    %1994 = vmatpush1.msra.mxu0 %v1993
    %1995 = vmatprep.subr.mxu0 0.0
    %1996 = vmatpush1.msra.mxu0 0.0
    %1997 = vmatprep.subr.mxu0 0.0
    %1998 = vmatpush1.msra.mxu0 0.0
    %1999 = vmatprep.subr.mxu0 0.0
    %2000 = vmatpush1.msra.mxu0 0.0
    %2001 = vmatprep.subr.mxu0 0.0
    %2002 = vmatpush1.msra.mxu0 0.0
    %2003 = vmatprep.subr.mxu0 0.0
    %2004 = vmatpush1.msra.mxu0 0.0
    %2005 = vmatprep.subr.mxu0 0.0
    %2006 = vmatpush1.msra.mxu0 0.0
    %2007 = vmatprep.subr.mxu0 0.0
    %2008 = vmatpush1.msra.mxu0 0.0
    %2009 = vmatprep.subr.mxu0 0.0
    %2010 = vmatpush1.msra.mxu0 0.0
    %2011 = vmatprep.subr.mxu0 0.0
    %2012 = vmatpush1.msra.mxu0 0.0
    %2013 = vmatprep.subr.mxu0 0.0
    %2014 = vmatpush1.msra.mxu0 0.0
    %2015 = vmatprep.subr.mxu0 0.0
    %2016 = vmatpush1.msra.mxu0 0.0
    %2017 = vmatprep.subr.mxu0 0.0
    %2018 = vmatpush1.msra.mxu0 0.0
    %2019 = vmatprep.subr.mxu0 0.0
    %2020 = vmatpush1.msra.mxu0 0.0
    %2021 = vmatprep.subr.mxu0 0.0
    %2022 = vmatpush1.msra.mxu0 0.0
    %2023 = vmatprep.subr.mxu0 0.0
    %2024 = vmatpush1.msra.mxu0 0.0
    %2025 = vmatprep.subr.mxu0 0.0
    %2026 = vmatpush1.msra.mxu0 0.0
    %2027 = vmatprep.subr.mxu0 0.0
    %2028 = vmatpush1.msra.mxu0 0.0
    %2029 = vmatprep.subr.mxu0 0.0
    %2030 = vmatpush1.msra.mxu0 0.0
    %2031 = vmatprep.subr.mxu0 0.0
    %2032 = vmatpush1.msra.mxu0 0.0
    %2033 = vmatprep.subr.mxu0 0.0
    %2034 = vmatpush1.msra.mxu0 0.0
    %2035 = vmatprep.subr.mxu0 0.0
    %2036 = vmatpush1.msra.mxu0 0.0
    %2037 = vmatprep.subr.mxu0 0.0
    %2038 = vmatpush1.msra.mxu0 0.0
    %2039 = vmatprep.subr.mxu0 0.0
    %2040 = vmatpush1.msra.mxu0 0.0
    %2041 = vmatprep.subr.mxu0 0.0
    %2042 = vmatpush1.msra.mxu0 0.0
    %2043 = vmatprep.mubr.f32.mxu0 0.0
    %v2044 = vand.u32 %v1966, 4294901760
    %v2045 = vsub.f32 %v1966, %v2044
    %v2046 = vand.u32 %v2045, 4294901760
    %v2047 = vsub.f32 %v2045, %v2046
    %v2048 = vand.u32 %v2047, 4294901760
    %2049 = vmatmul.mubr.f32.gmra.mrb[0].mxu0 %v2048
    %v2050 = vpop.f32.mrb[0].mxu0
    %v2051 = vadd.f32 0.0, %v2050
    %v2052 = vpop.f32.mrb[0].mxu0
    %2053 = vmatprep.mubr.f32.mxu0 0.0
    %v2054 = vand.u32 %v1969, 4294901760
    %v2055 = vsub.f32 %v1969, %v2054
    %v2056 = vand.u32 %v2055, 4294901760
    %v2057 = vsub.f32 %v2055, %v2056
    %v2058 = vand.u32 %v2057, 4294901760
    %2059 = vmatmul.mubr.f32.gmra.mrb[0].mxu0 %v2058
    %v2060 = vpop.f32.mrb[0].mxu0
    %v2061 = vadd.f32 0.0, %v2060
    %v2062 = vpop.f32.mrb[0].mxu0
    %2063 = vdwg.mxu0
    %2064 = vmatprep.subr.mxu0 0.0
    %v2065 = vand.u32 %v1942, 4294901760
    %v2066 = vsub.f32 %v1942, %v2065
    %v2067 = vand.u32 %v2066, 4294901760
    %v2068 = vsub.f32 %v2066, %v2067
    %v2069 = vand.u32 %v2068, 4294901760
    %2070 = vmatpush1.msra.mxu0 %v2069
    %2071 = vmatprep.subr.mxu0 0.0
    %v2072 = vand.u32 %v1944, 4294901760
    %v2073 = vsub.f32 %v1944, %v2072
    %v2074 = vand.u32 %v2073, 4294901760
    %v2075 = vsub.f32 %v2073, %v2074
    %v2076 = vand.u32 %v2075, 4294901760
    %2077 = vmatpush1.msra.mxu0 %v2076
    %2078 = vmatprep.subr.mxu0 0.0
    %v2079 = vand.u32 %v1946, 4294901760
    %v2080 = vsub.f32 %v1946, %v2079
    %v2081 = vand.u32 %v2080, 4294901760
    %v2082 = vsub.f32 %v2080, %v2081
    %v2083 = vand.u32 %v2082, 4294901760
    %2084 = vmatpush1.msra.mxu0 %v2083
    %2085 = vmatprep.subr.mxu0 0.0
    %v2086 = vand.u32 %v1948, 4294901760
    %v2087 = vsub.f32 %v1948, %v2086
    %v2088 = vand.u32 %v2087, 4294901760
    %v2089 = vsub.f32 %v2087, %v2088
    %v2090 = vand.u32 %v2089, 4294901760
    %2091 = vmatpush1.msra.mxu0 %v2090
    %2092 = vmatprep.subr.mxu0 0.0
    %v2093 = vand.u32 %v1950, 4294901760
    %v2094 = vsub.f32 %v1950, %v2093
    %v2095 = vand.u32 %v2094, 4294901760
    %v2096 = vsub.f32 %v2094, %v2095
    %v2097 = vand.u32 %v2096, 4294901760
    %2098 = vmatpush1.msra.mxu0 %v2097
    %2099 = vmatprep.subr.mxu0 0.0
    %v2100 = vand.u32 %v1952, 4294901760
    %v2101 = vsub.f32 %v1952, %v2100
    %v2102 = vand.u32 %v2101, 4294901760
    %v2103 = vsub.f32 %v2101, %v2102
    %v2104 = vand.u32 %v2103, 4294901760
    %2105 = vmatpush1.msra.mxu0 %v2104
    %2106 = vmatprep.subr.mxu0 0.0
    %v2107 = vand.u32 %v1954, 4294901760
    %v2108 = vsub.f32 %v1954, %v2107
    %v2109 = vand.u32 %v2108, 4294901760
    %v2110 = vsub.f32 %v2108, %v2109
    %v2111 = vand.u32 %v2110, 4294901760
    %2112 = vmatpush1.msra.mxu0 %v2111
    %2113 = vmatprep.subr.mxu0 0.0
    %v2114 = vand.u32 %v1956, 4294901760
    %v2115 = vsub.f32 %v1956, %v2114
    %v2116 = vand.u32 %v2115, 4294901760
    %v2117 = vsub.f32 %v2115, %v2116
    %v2118 = vand.u32 %v2117, 4294901760
    %2119 = vmatpush1.msra.mxu0 %v2118
    %2120 = vmatprep.subr.mxu0 0.0
    %2121 = vmatpush1.msra.mxu0 0.0
    %2122 = vmatprep.subr.mxu0 0.0
    %2123 = vmatpush1.msra.mxu0 0.0
    %2124 = vmatprep.subr.mxu0 0.0
    %2125 = vmatpush1.msra.mxu0 0.0
    %2126 = vmatprep.subr.mxu0 0.0
    %2127 = vmatpush1.msra.mxu0 0.0
    %2128 = vmatprep.subr.mxu0 0.0
    %2129 = vmatpush1.msra.mxu0 0.0
    %2130 = vmatprep.subr.mxu0 0.0
    %2131 = vmatpush1.msra.mxu0 0.0
    %2132 = vmatprep.subr.mxu0 0.0
    %2133 = vmatpush1.msra.mxu0 0.0
    %2134 = vmatprep.subr.mxu0 0.0
    %2135 = vmatpush1.msra.mxu0 0.0
    %2136 = vmatprep.subr.mxu0 0.0
    %2137 = vmatpush1.msra.mxu0 0.0
    %2138 = vmatprep.subr.mxu0 0.0
    %2139 = vmatpush1.msra.mxu0 0.0
    %2140 = vmatprep.subr.mxu0 0.0
    %2141 = vmatpush1.msra.mxu0 0.0
    %2142 = vmatprep.subr.mxu0 0.0
    %2143 = vmatpush1.msra.mxu0 0.0
    %2144 = vmatprep.subr.mxu0 0.0
    %2145 = vmatpush1.msra.mxu0 0.0
    %2146 = vmatprep.subr.mxu0 0.0
    %2147 = vmatpush1.msra.mxu0 0.0
    %2148 = vmatprep.subr.mxu0 0.0
    %2149 = vmatpush1.msra.mxu0 0.0
    %2150 = vmatprep.subr.mxu0 0.0
    %2151 = vmatpush1.msra.mxu0 0.0
    %2152 = vmatprep.subr.mxu0 0.0
    %2153 = vmatpush1.msra.mxu0 0.0
    %2154 = vmatprep.subr.mxu0 0.0
    %2155 = vmatpush1.msra.mxu0 0.0
    %2156 = vmatprep.subr.mxu0 0.0
    %2157 = vmatpush1.msra.mxu0 0.0
    %2158 = vmatprep.subr.mxu0 0.0
    %2159 = vmatpush1.msra.mxu0 0.0
    %2160 = vmatprep.subr.mxu0 0.0
    %2161 = vmatpush1.msra.mxu0 0.0
    %2162 = vmatprep.subr.mxu0 0.0
    %2163 = vmatpush1.msra.mxu0 0.0
    %2164 = vmatprep.subr.mxu0 0.0
    %2165 = vmatpush1.msra.mxu0 0.0
    %2166 = vmatprep.subr.mxu0 0.0
    %2167 = vmatpush1.msra.mxu0 0.0
    %2168 = vmatprep.mubr.f32.mxu0 0.0
    %v2169 = vand.u32 %v1966, 4294901760
    %2170 = vmatmul.mubr.f32.gmra.mrb[0].mxu0 %v2169
    %v2171 = vpop.f32.mrb[0].mxu0
    %v2172 = vadd.f32 %v2051, %v2171
    %v2173 = vpop.f32.mrb[0].mxu0
    %2174 = vmatprep.mubr.f32.mxu0 0.0
    %v2175 = vand.u32 %v1969, 4294901760
    %2176 = vmatmul.mubr.f32.gmra.mrb[0].mxu0 %v2175
    %v2177 = vpop.f32.mrb[0].mxu0
    %v2178 = vadd.f32 %v2061, %v2177
    %v2179 = vpop.f32.mrb[0].mxu0
    %2180 = vdwg.mxu0
    %2181 = vmatprep.subr.mxu0 0.0
    %v2182 = vand.u32 %v1942, 4294901760
    %v2183 = vsub.f32 %v1942, %v2182
    %2184 = vmatpush1.msra.mxu0 %v2183
    %2185 = vmatprep.subr.mxu0 0.0
    %v2186 = vand.u32 %v1944, 4294901760
    %v2187 = vsub.f32 %v1944, %v2186
    %2188 = vmatpush1.msra.mxu0 %v2187
    %2189 = vmatprep.subr.mxu0 0.0
    %v2190 = vand.u32 %v1946, 4294901760
    %v2191 = vsub.f32 %v1946, %v2190
    %2192 = vmatpush1.msra.mxu0 %v2191
    %2193 = vmatprep.subr.mxu0 0.0
    %v2194 = vand.u32 %v1948, 4294901760
    %v2195 = vsub.f32 %v1948, %v2194
    %2196 = vmatpush1.msra.mxu0 %v2195
    %2197 = vmatprep.subr.mxu0 0.0
    %v2198 = vand.u32 %v1950, 4294901760
    %v2199 = vsub.f32 %v1950, %v2198
    %2200 = vmatpush1.msra.mxu0 %v2199
    %2201 = vmatprep.subr.mxu0 0.0
    %v2202 = vand.u32 %v1952, 4294901760
    %v2203 = vsub.f32 %v1952, %v2202
    %2204 = vmatpush1.msra.mxu0 %v2203
    %2205 = vmatprep.subr.mxu0 0.0
    %v2206 = vand.u32 %v1954, 4294901760
    %v2207 = vsub.f32 %v1954, %v2206
    %2208 = vmatpush1.msra.mxu0 %v2207
    %2209 = vmatprep.subr.mxu0 0.0
    %v2210 = vand.u32 %v1956, 4294901760
    %v2211 = vsub.f32 %v1956, %v2210
    %2212 = vmatpush1.msra.mxu0 %v2211
    %2213 = vmatprep.subr.mxu0 0.0
    %2214 = vmatpush1.msra.mxu0 0.0
    %2215 = vmatprep.subr.mxu0 0.0
    %2216 = vmatpush1.msra.mxu0 0.0
    %2217 = vmatprep.subr.mxu0 0.0
    %2218 = vmatpush1.msra.mxu0 0.0
    %2219 = vmatprep.subr.mxu0 0.0
    %2220 = vmatpush1.msra.mxu0 0.0
    %2221 = vmatprep.subr.mxu0 0.0
    %2222 = vmatpush1.msra.mxu0 0.0
    %2223 = vmatprep.subr.mxu0 0.0
    %2224 = vmatpush1.msra.mxu0 0.0
    %2225 = vmatprep.subr.mxu0 0.0
    %2226 = vmatpush1.msra.mxu0 0.0
    %2227 = vmatprep.subr.mxu0 0.0
    %2228 = vmatpush1.msra.mxu0 0.0
    %2229 = vmatprep.subr.mxu0 0.0
    %2230 = vmatpush1.msra.mxu0 0.0
    %2231 = vmatprep.subr.mxu0 0.0
    %2232 = vmatpush1.msra.mxu0 0.0
    %2233 = vmatprep.subr.mxu0 0.0
    %2234 = vmatpush1.msra.mxu0 0.0
    %2235 = vmatprep.subr.mxu0 0.0
    %2236 = vmatpush1.msra.mxu0 0.0
    %2237 = vmatprep.subr.mxu0 0.0
    %2238 = vmatpush1.msra.mxu0 0.0
    %2239 = vmatprep.subr.mxu0 0.0
    %2240 = vmatpush1.msra.mxu0 0.0
    %2241 = vmatprep.subr.mxu0 0.0
    %2242 = vmatpush1.msra.mxu0 0.0
    %2243 = vmatprep.subr.mxu0 0.0
    %2244 = vmatpush1.msra.mxu0 0.0
    %2245 = vmatprep.subr.mxu0 0.0
    %2246 = vmatpush1.msra.mxu0 0.0
    %2247 = vmatprep.subr.mxu0 0.0
    %2248 = vmatpush1.msra.mxu0 0.0
    %2249 = vmatprep.subr.mxu0 0.0
    %2250 = vmatpush1.msra.mxu0 0.0
    %2251 = vmatprep.subr.mxu0 0.0
    %2252 = vmatpush1.msra.mxu0 0.0
    %2253 = vmatprep.subr.mxu0 0.0
    %2254 = vmatpush1.msra.mxu0 0.0
    %2255 = vmatprep.subr.mxu0 0.0
    %2256 = vmatpush1.msra.mxu0 0.0
    %2257 = vmatprep.subr.mxu0 0.0
    %2258 = vmatpush1.msra.mxu0 0.0
    %2259 = vmatprep.subr.mxu0 0.0
    %2260 = vmatpush1.msra.mxu0 0.0
    %2261 = vmatprep.mubr.f32.mxu0 0.0
    %v2262 = vand.u32 %v1966, 4294901760
    %v2263 = vsub.f32 %v1966, %v2262
    %2264 = vmatmul.mubr.f32.gmra.mrb[0].mxu0 %v2263
    %v2265 = vpop.f32.mrb[0].mxu0
    %v2266 = vadd.f32 %v2172, %v2265
    %v2267 = vpop.f32.mrb[0].mxu0
    %2268 = vmatprep.mubr.f32.mxu0 0.0
    %v2269 = vand.u32 %v1969, 4294901760
    %v2270 = vsub.f32 %v1969, %v2269
    %2271 = vmatmul.mubr.f32.gmra.mrb[0].mxu0 %v2270
    %v2272 = vpop.f32.mrb[0].mxu0
    %v2273 = vadd.f32 %v2178, %v2272
    %v2274 = vpop.f32.mrb[0].mxu0
    %2275 = vdwg.mxu0
    %2276 = vmatprep.subr.mxu0 0.0
    %v2277 = vand.u32 %v1942, 4294901760
    %2278 = vmatpush1.msra.mxu0 %v2277
    %2279 = vmatprep.subr.mxu0 0.0
    %v2280 = vand.u32 %v1944, 4294901760
    %2281 = vmatpush1.msra.mxu0 %v2280
    %2282 = vmatprep.subr.mxu0 0.0
    %v2283 = vand.u32 %v1946, 4294901760
    %2284 = vmatpush1.msra.mxu0 %v2283
    %2285 = vmatprep.subr.mxu0 0.0
    %v2286 = vand.u32 %v1948, 4294901760
    %2287 = vmatpush1.msra.mxu0 %v2286
    %2288 = vmatprep.subr.mxu0 0.0
    %v2289 = vand.u32 %v1950, 4294901760
    %2290 = vmatpush1.msra.mxu0 %v2289
    %2291 = vmatprep.subr.mxu0 0.0
    %v2292 = vand.u32 %v1952, 4294901760
    %2293 = vmatpush1.msra.mxu0 %v2292
    %2294 = vmatprep.subr.mxu0 0.0
    %v2295 = vand.u32 %v1954, 4294901760
    %2296 = vmatpush1.msra.mxu0 %v2295
    %2297 = vmatprep.subr.mxu0 0.0
    %v2298 = vand.u32 %v1956, 4294901760
    %2299 = vmatpush1.msra.mxu0 %v2298
    %2300 = vmatprep.subr.mxu0 0.0
    %2301 = vmatpush1.msra.mxu0 0.0
    %2302 = vmatprep.subr.mxu0 0.0
    %2303 = vmatpush1.msra.mxu0 0.0
    %2304 = vmatprep.subr.mxu0 0.0
    %2305 = vmatpush1.msra.mxu0 0.0
    %2306 = vmatprep.subr.mxu0 0.0
    %2307 = vmatpush1.msra.mxu0 0.0
    %2308 = vmatprep.subr.mxu0 0.0
    %2309 = vmatpush1.msra.mxu0 0.0
    %2310 = vmatprep.subr.mxu0 0.0
    %2311 = vmatpush1.msra.mxu0 0.0
    %2312 = vmatprep.subr.mxu0 0.0
    %2313 = vmatpush1.msra.mxu0 0.0
    %2314 = vmatprep.subr.mxu0 0.0
    %2315 = vmatpush1.msra.mxu0 0.0
    %2316 = vmatprep.subr.mxu0 0.0
    %2317 = vmatpush1.msra.mxu0 0.0
    %2318 = vmatprep.subr.mxu0 0.0
    %2319 = vmatpush1.msra.mxu0 0.0
    %2320 = vmatprep.subr.mxu0 0.0
    %2321 = vmatpush1.msra.mxu0 0.0
    %2322 = vmatprep.subr.mxu0 0.0
    %2323 = vmatpush1.msra.mxu0 0.0
    %2324 = vmatprep.subr.mxu0 0.0
    %2325 = vmatpush1.msra.mxu0 0.0
    %2326 = vmatprep.subr.mxu0 0.0
    %2327 = vmatpush1.msra.mxu0 0.0
    %2328 = vmatprep.subr.mxu0 0.0
    %2329 = vmatpush1.msra.mxu0 0.0
    %2330 = vmatprep.subr.mxu0 0.0
    %2331 = vmatpush1.msra.mxu0 0.0
    %2332 = vmatprep.subr.mxu0 0.0
    %2333 = vmatpush1.msra.mxu0 0.0
    %2334 = vmatprep.subr.mxu0 0.0
    %2335 = vmatpush1.msra.mxu0 0.0
    %2336 = vmatprep.subr.mxu0 0.0
    %2337 = vmatpush1.msra.mxu0 0.0
    %2338 = vmatprep.subr.mxu0 0.0
    %2339 = vmatpush1.msra.mxu0 0.0
    %2340 = vmatprep.subr.mxu0 0.0
    %2341 = vmatpush1.msra.mxu0 0.0
    %2342 = vmatprep.subr.mxu0 0.0
    %2343 = vmatpush1.msra.mxu0 0.0
    %2344 = vmatprep.subr.mxu0 0.0
    %2345 = vmatpush1.msra.mxu0 0.0
    %2346 = vmatprep.subr.mxu0 0.0
    %2347 = vmatpush1.msra.mxu0 0.0
    %2348 = vmatprep.mubr.f32.mxu0 0.0
    %v2349 = vand.u32 %v1966, 4294901760
    %v2350 = vsub.f32 %v1966, %v2349
    %v2351 = vand.u32 %v2350, 4294901760
    %2352 = vmatmul.mubr.f32.gmra.mrb[0].mxu0 %v2351
    %v2353 = vpop.f32.mrb[0].mxu0
    %v2354 = vadd.f32 %v2266, %v2353
    %v2355 = vpop.f32.mrb[0].mxu0
    %2356 = vmatprep.mubr.f32.mxu0 0.0
    %v2357 = vand.u32 %v1969, 4294901760
    %v2358 = vsub.f32 %v1969, %v2357
    %v2359 = vand.u32 %v2358, 4294901760
    %2360 = vmatmul.mubr.f32.gmra.mrb[0].mxu0 %v2359
    %v2361 = vpop.f32.mrb[0].mxu0
    %v2362 = vadd.f32 %v2273, %v2361
    %v2363 = vpop.f32.mrb[0].mxu0
    %2364 = vdwg.mxu0
    %2365 = vmatprep.subr.mxu0 0.0
    %v2366 = vand.u32 %v1942, 4294901760
    %v2367 = vsub.f32 %v1942, %v2366
    %v2368 = vand.u32 %v2367, 4294901760
    %2369 = vmatpush1.msra.mxu0 %v2368
    %2370 = vmatprep.subr.mxu0 0.0
    %v2371 = vand.u32 %v1944, 4294901760
    %v2372 = vsub.f32 %v1944, %v2371
    %v2373 = vand.u32 %v2372, 4294901760
    %2374 = vmatpush1.msra.mxu0 %v2373
    %2375 = vmatprep.subr.mxu0 0.0
    %v2376 = vand.u32 %v1946, 4294901760
    %v2377 = vsub.f32 %v1946, %v2376
    %v2378 = vand.u32 %v2377, 4294901760
    %2379 = vmatpush1.msra.mxu0 %v2378
    %2380 = vmatprep.subr.mxu0 0.0
    %v2381 = vand.u32 %v1948, 4294901760
    %v2382 = vsub.f32 %v1948, %v2381
    %v2383 = vand.u32 %v2382, 4294901760
    %2384 = vmatpush1.msra.mxu0 %v2383
    %2385 = vmatprep.subr.mxu0 0.0
    %v2386 = vand.u32 %v1950, 4294901760
    %v2387 = vsub.f32 %v1950, %v2386
    %v2388 = vand.u32 %v2387, 4294901760
    %2389 = vmatpush1.msra.mxu0 %v2388
    %2390 = vmatprep.subr.mxu0 0.0
    %v2391 = vand.u32 %v1952, 4294901760
    %v2392 = vsub.f32 %v1952, %v2391
    %v2393 = vand.u32 %v2392, 4294901760
    %2394 = vmatpush1.msra.mxu0 %v2393
    %2395 = vmatprep.subr.mxu0 0.0
    %v2396 = vand.u32 %v1954, 4294901760
    %v2397 = vsub.f32 %v1954, %v2396
    %v2398 = vand.u32 %v2397, 4294901760
    %2399 = vmatpush1.msra.mxu0 %v2398
    %2400 = vmatprep.subr.mxu0 0.0
    %v2401 = vand.u32 %v1956, 4294901760
    %v2402 = vsub.f32 %v1956, %v2401
    %v2403 = vand.u32 %v2402, 4294901760
    %2404 = vmatpush1.msra.mxu0 %v2403
    %2405 = vmatprep.subr.mxu0 0.0
    %2406 = vmatpush1.msra.mxu0 0.0
    %2407 = vmatprep.subr.mxu0 0.0
    %2408 = vmatpush1.msra.mxu0 0.0
    %2409 = vmatprep.subr.mxu0 0.0
    %2410 = vmatpush1.msra.mxu0 0.0
    %2411 = vmatprep.subr.mxu0 0.0
    %2412 = vmatpush1.msra.mxu0 0.0
    %2413 = vmatprep.subr.mxu0 0.0
    %2414 = vmatpush1.msra.mxu0 0.0
    %2415 = vmatprep.subr.mxu0 0.0
    %2416 = vmatpush1.msra.mxu0 0.0
    %2417 = vmatprep.subr.mxu0 0.0
    %2418 = vmatpush1.msra.mxu0 0.0
    %2419 = vmatprep.subr.mxu0 0.0
    %2420 = vmatpush1.msra.mxu0 0.0
    %2421 = vmatprep.subr.mxu0 0.0
    %2422 = vmatpush1.msra.mxu0 0.0
    %2423 = vmatprep.subr.mxu0 0.0
    %2424 = vmatpush1.msra.mxu0 0.0
    %2425 = vmatprep.subr.mxu0 0.0
    %2426 = vmatpush1.msra.mxu0 0.0
    %2427 = vmatprep.subr.mxu0 0.0
    %2428 = vmatpush1.msra.mxu0 0.0
    %2429 = vmatprep.subr.mxu0 0.0
    %2430 = vmatpush1.msra.mxu0 0.0
    %2431 = vmatprep.subr.mxu0 0.0
    %2432 = vmatpush1.msra.mxu0 0.0
    %2433 = vmatprep.subr.mxu0 0.0
    %2434 = vmatpush1.msra.mxu0 0.0
    %2435 = vmatprep.subr.mxu0 0.0
    %2436 = vmatpush1.msra.mxu0 0.0
    %2437 = vmatprep.subr.mxu0 0.0
    %2438 = vmatpush1.msra.mxu0 0.0
    %2439 = vmatprep.subr.mxu0 0.0
    %2440 = vmatpush1.msra.mxu0 0.0
    %2441 = vmatprep.subr.mxu0 0.0
    %2442 = vmatpush1.msra.mxu0 0.0
    %2443 = vmatprep.subr.mxu0 0.0
    %2444 = vmatpush1.msra.mxu0 0.0
    %2445 = vmatprep.subr.mxu0 0.0
    %2446 = vmatpush1.msra.mxu0 0.0
    %2447 = vmatprep.subr.mxu0 0.0
    %2448 = vmatpush1.msra.mxu0 0.0
    %2449 = vmatprep.subr.mxu0 0.0
    %2450 = vmatpush1.msra.mxu0 0.0
    %2451 = vmatprep.subr.mxu0 0.0
    %2452 = vmatpush1.msra.mxu0 0.0
    %2453 = vmatprep.mubr.f32.mxu0 0.0
    %v2454 = vand.u32 %v1966, 4294901760
    %2455 = vmatmul.mubr.f32.gmra.mrb[0].mxu0 %v2454
    %v2456 = vpop.f32.mrb[0].mxu0
    %v2457 = vadd.f32 %v2354, %v2456
    %v2458 = vpop.f32.mrb[0].mxu0
    %2459 = vmatprep.mubr.f32.mxu0 0.0
    %v2460 = vand.u32 %v1969, 4294901760
    %2461 = vmatmul.mubr.f32.gmra.mrb[0].mxu0 %v2460
    %v2462 = vpop.f32.mrb[0].mxu0
    %v2463 = vadd.f32 %v2362, %v2462
    %v2464 = vpop.f32.mrb[0].mxu0
    %2465 = vdwg.mxu0
    %2466 = vmatprep.subr.mxu0 0.0
    %v2467 = vand.u32 %v1942, 4294901760
    %2468 = vmatpush1.msra.mxu0 %v2467
    %2469 = vmatprep.subr.mxu0 0.0
    %v2470 = vand.u32 %v1944, 4294901760
    %2471 = vmatpush1.msra.mxu0 %v2470
    %2472 = vmatprep.subr.mxu0 0.0
    %v2473 = vand.u32 %v1946, 4294901760
    %2474 = vmatpush1.msra.mxu0 %v2473
    %2475 = vmatprep.subr.mxu0 0.0
    %v2476 = vand.u32 %v1948, 4294901760
    %2477 = vmatpush1.msra.mxu0 %v2476
    %2478 = vmatprep.subr.mxu0 0.0
    %v2479 = vand.u32 %v1950, 4294901760
    %2480 = vmatpush1.msra.mxu0 %v2479
    %2481 = vmatprep.subr.mxu0 0.0
    %v2482 = vand.u32 %v1952, 4294901760
    %2483 = vmatpush1.msra.mxu0 %v2482
    %2484 = vmatprep.subr.mxu0 0.0
    %v2485 = vand.u32 %v1954, 4294901760
    %2486 = vmatpush1.msra.mxu0 %v2485
    %2487 = vmatprep.subr.mxu0 0.0
    %v2488 = vand.u32 %v1956, 4294901760
    %2489 = vmatpush1.msra.mxu0 %v2488
    %2490 = vmatprep.subr.mxu0 0.0
    %2491 = vmatpush1.msra.mxu0 0.0
    %2492 = vmatprep.subr.mxu0 0.0
    %2493 = vmatpush1.msra.mxu0 0.0
    %2494 = vmatprep.subr.mxu0 0.0
    %2495 = vmatpush1.msra.mxu0 0.0
    %2496 = vmatprep.subr.mxu0 0.0
    %2497 = vmatpush1.msra.mxu0 0.0
    %2498 = vmatprep.subr.mxu0 0.0
    %2499 = vmatpush1.msra.mxu0 0.0
    %2500 = vmatprep.subr.mxu0 0.0
    %2501 = vmatpush1.msra.mxu0 0.0
    %2502 = vmatprep.subr.mxu0 0.0
    %2503 = vmatpush1.msra.mxu0 0.0
    %2504 = vmatprep.subr.mxu0 0.0
    %2505 = vmatpush1.msra.mxu0 0.0
    %2506 = vmatprep.subr.mxu0 0.0
    %2507 = vmatpush1.msra.mxu0 0.0
    %2508 = vmatprep.subr.mxu0 0.0
    %2509 = vmatpush1.msra.mxu0 0.0
    %2510 = vmatprep.subr.mxu0 0.0
    %2511 = vmatpush1.msra.mxu0 0.0
    %2512 = vmatprep.subr.mxu0 0.0
    %2513 = vmatpush1.msra.mxu0 0.0
    %2514 = vmatprep.subr.mxu0 0.0
    %2515 = vmatpush1.msra.mxu0 0.0
    %2516 = vmatprep.subr.mxu0 0.0
    %2517 = vmatpush1.msra.mxu0 0.0
    %2518 = vmatprep.subr.mxu0 0.0
    %2519 = vmatpush1.msra.mxu0 0.0
    %2520 = vmatprep.subr.mxu0 0.0
    %2521 = vmatpush1.msra.mxu0 0.0
    %2522 = vmatprep.subr.mxu0 0.0
    %2523 = vmatpush1.msra.mxu0 0.0
    %2524 = vmatprep.subr.mxu0 0.0
    %2525 = vmatpush1.msra.mxu0 0.0
    %2526 = vmatprep.subr.mxu0 0.0
    %2527 = vmatpush1.msra.mxu0 0.0
    %2528 = vmatprep.subr.mxu0 0.0
    %2529 = vmatpush1.msra.mxu0 0.0
    %2530 = vmatprep.subr.mxu0 0.0
    %2531 = vmatpush1.msra.mxu0 0.0
    %2532 = vmatprep.subr.mxu0 0.0
    %2533 = vmatpush1.msra.mxu0 0.0
    %2534 = vmatprep.subr.mxu0 0.0
    %2535 = vmatpush1.msra.mxu0 0.0
    %2536 = vmatprep.subr.mxu0 0.0
    %2537 = vmatpush1.msra.mxu0 0.0
    %2538 = vmatprep.mubr.f32.mxu0 0.0
    %v2539 = vand.u32 %v1966, 4294901760
    %2540 = vmatmul.mubr.f32.gmra.mrb[0].mxu0 %v2539
    %v2541 = vpop.f32.mrb[0].mxu0
    %v2542 = vadd.f32 %v2457, %v2541
    %v2543 = vpop.f32.mrb[0].mxu0
    %2544 = vmatprep.mubr.f32.mxu0 0.0
    %v2545 = vand.u32 %v1969, 4294901760
    %2546 = vmatmul.mubr.f32.gmra.mrb[0].mxu0 %v2545
    %v2547 = vpop.f32.mrb[0].mxu0
    %v2548 = vadd.f32 %v2463, %v2547
    %v2549 = vpop.f32.mrb[0].mxu0
    %2550 = vdwg.mxu0
    %v2551 = vld [vmem:[#allocation7] sm:$0xff]
    %v2552 = vld [vmem:[#allocation7 + $0x8] sm:$0xff]
    %v2553 = vld [vmem:[#allocation7 + $0x10] sm:$0xff]
    %v2554 = vld [vmem:[#allocation7 + $0x18] sm:$0xff]
    %v2555 = vld [vmem:[%s4] sm:$0x1]
    %v2556 = vlaneseq
    %v2557 = vshrl.u32 %v2556, 7
    %v2558 = vsub.s32 0, %v2557
    %v2559 = vrot.slane %v2555, %v2558
    %v2561 = vsel %vm111, %v2542, 0
    %v2564 = vsel %vm111, %v2548, 0
    %2566 = vmatprep.subr.mxu0 0.0
    %v2567 = vand.u32 %v2551, 4294901760
    %2568 = vmatpush1.msra.mxu0 %v2567
    %2569 = vmatprep.subr.mxu0 0.0
    %v2570 = vand.u32 %v2552, 4294901760
    %2571 = vmatpush1.msra.mxu0 %v2570
    %2572 = vmatprep.subr.mxu0 0.0
    %v2573 = vand.u32 %v2553, 4294901760
    %2574 = vmatpush1.msra.mxu0 %v2573
    %2575 = vmatprep.subr.mxu0 0.0
    %v2576 = vand.u32 %v2554, 4294901760
    %2577 = vmatpush1.msra.mxu0 %v2576
    %2578 = vmatprep.subr.mxu0 0.0
    %2579 = vmatpush1.msra.mxu0 0.0
    %2580 = vmatprep.subr.mxu0 0.0
    %2581 = vmatpush1.msra.mxu0 0.0
    %2582 = vmatprep.subr.mxu0 0.0
    %2583 = vmatpush1.msra.mxu0 0.0
    %2584 = vmatprep.subr.mxu0 0.0
    %2585 = vmatpush1.msra.mxu0 0.0
    %2586 = vmatprep.subr.mxu0 0.0
    %2587 = vmatpush1.msra.mxu0 0.0
    %2588 = vmatprep.subr.mxu0 0.0
    %2589 = vmatpush1.msra.mxu0 0.0
    %2590 = vmatprep.subr.mxu0 0.0
    %2591 = vmatpush1.msra.mxu0 0.0
    %2592 = vmatprep.subr.mxu0 0.0
    %2593 = vmatpush1.msra.mxu0 0.0
    %2594 = vmatprep.subr.mxu0 0.0
    %2595 = vmatpush1.msra.mxu0 0.0
    %2596 = vmatprep.subr.mxu0 0.0
    %2597 = vmatpush1.msra.mxu0 0.0
    %2598 = vmatprep.subr.mxu0 0.0
    %2599 = vmatpush1.msra.mxu0 0.0
    %2600 = vmatprep.subr.mxu0 0.0
    %2601 = vmatpush1.msra.mxu0 0.0
    %2602 = vmatprep.subr.mxu0 0.0
    %2603 = vmatpush1.msra.mxu0 0.0
    %2604 = vmatprep.subr.mxu0 0.0
    %2605 = vmatpush1.msra.mxu0 0.0
    %2606 = vmatprep.subr.mxu0 0.0
    %2607 = vmatpush1.msra.mxu0 0.0
    %2608 = vmatprep.subr.mxu0 0.0
    %2609 = vmatpush1.msra.mxu0 0.0
    %2610 = vmatprep.subr.mxu0 0.0
    %2611 = vmatpush1.msra.mxu0 0.0
    %2612 = vmatprep.subr.mxu0 0.0
    %2613 = vmatpush1.msra.mxu0 0.0
    %2614 = vmatprep.subr.mxu0 0.0
    %2615 = vmatpush1.msra.mxu0 0.0
    %2616 = vmatprep.subr.mxu0 0.0
    %2617 = vmatpush1.msra.mxu0 0.0
    %2618 = vmatprep.subr.mxu0 0.0
    %2619 = vmatpush1.msra.mxu0 0.0
    %2620 = vmatprep.subr.mxu0 0.0
    %2621 = vmatpush1.msra.mxu0 0.0
    %2622 = vmatprep.subr.mxu0 0.0
    %2623 = vmatpush1.msra.mxu0 0.0
    %2624 = vmatprep.subr.mxu0 0.0
    %2625 = vmatpush1.msra.mxu0 0.0
    %2626 = vmatprep.subr.mxu0 0.0
    %2627 = vmatpush1.msra.mxu0 0.0
    %2628 = vmatprep.subr.mxu0 0.0
    %2629 = vmatpush1.msra.mxu0 0.0
    %2630 = vmatprep.subr.mxu0 0.0
    %2631 = vmatpush1.msra.mxu0 0.0
    %2632 = vmatprep.subr.mxu0 0.0
    %2633 = vmatpush1.msra.mxu0 0.0
    %2634 = vmatprep.mubr.f32.mxu0 0.0
    %v2635 = vand.u32 %v2561, 4294901760
    %v2636 = vsub.f32 %v2561, %v2635
    %v2637 = vand.u32 %v2636, 4294901760
    %v2638 = vsub.f32 %v2636, %v2637
    %v2639 = vand.u32 %v2638, 4294901760
    %2640 = vmatmul.mubr.f32.gmra.mrb[0].mxu0 %v2639
    %v2641 = vpop.f32.mrb[0].mxu0
    %v2642 = vadd.f32 %v2559, %v2641
    %v2643 = vpop.f32.mrb[0].mxu0
    %2644 = vmatprep.mubr.f32.mxu0 0.0
    %v2645 = vand.u32 %v2564, 4294901760
    %v2646 = vsub.f32 %v2564, %v2645
    %v2647 = vand.u32 %v2646, 4294901760
    %v2648 = vsub.f32 %v2646, %v2647
    %v2649 = vand.u32 %v2648, 4294901760
    %2650 = vmatmul.mubr.f32.gmra.mrb[0].mxu0 %v2649
    %v2651 = vpop.f32.mrb[0].mxu0
    %v2652 = vadd.f32 %v2559, %v2651
    %v2653 = vpop.f32.mrb[0].mxu0
    %2654 = vdwg.mxu0
    %2655 = vmatprep.subr.mxu0 0.0
    %v2656 = vand.u32 %v2551, 4294901760
    %v2657 = vsub.f32 %v2551, %v2656
    %v2658 = vand.u32 %v2657, 4294901760
    %v2659 = vsub.f32 %v2657, %v2658
    %v2660 = vand.u32 %v2659, 4294901760
    %2661 = vmatpush1.msra.mxu0 %v2660
    %2662 = vmatprep.subr.mxu0 0.0
    %v2663 = vand.u32 %v2552, 4294901760
    %v2664 = vsub.f32 %v2552, %v2663
    %v2665 = vand.u32 %v2664, 4294901760
    %v2666 = vsub.f32 %v2664, %v2665
    %v2667 = vand.u32 %v2666, 4294901760
    %2668 = vmatpush1.msra.mxu0 %v2667
    %2669 = vmatprep.subr.mxu0 0.0
    %v2670 = vand.u32 %v2553, 4294901760
    %v2671 = vsub.f32 %v2553, %v2670
    %v2672 = vand.u32 %v2671, 4294901760
    %v2673 = vsub.f32 %v2671, %v2672
    %v2674 = vand.u32 %v2673, 4294901760
    %2675 = vmatpush1.msra.mxu0 %v2674
    %2676 = vmatprep.subr.mxu0 0.0
    %v2677 = vand.u32 %v2554, 4294901760
    %v2678 = vsub.f32 %v2554, %v2677
    %v2679 = vand.u32 %v2678, 4294901760
    %v2680 = vsub.f32 %v2678, %v2679
    %v2681 = vand.u32 %v2680, 4294901760
    %2682 = vmatpush1.msra.mxu0 %v2681
    %2683 = vmatprep.subr.mxu0 0.0
    %2684 = vmatpush1.msra.mxu0 0.0
    %2685 = vmatprep.subr.mxu0 0.0
    %2686 = vmatpush1.msra.mxu0 0.0
    %2687 = vmatprep.subr.mxu0 0.0
    %2688 = vmatpush1.msra.mxu0 0.0
    %2689 = vmatprep.subr.mxu0 0.0
    %2690 = vmatpush1.msra.mxu0 0.0
    %2691 = vmatprep.subr.mxu0 0.0
    %2692 = vmatpush1.msra.mxu0 0.0
    %2693 = vmatprep.subr.mxu0 0.0
    %2694 = vmatpush1.msra.mxu0 0.0
    %2695 = vmatprep.subr.mxu0 0.0
    %2696 = vmatpush1.msra.mxu0 0.0
    %2697 = vmatprep.subr.mxu0 0.0
    %2698 = vmatpush1.msra.mxu0 0.0
    %2699 = vmatprep.subr.mxu0 0.0
    %2700 = vmatpush1.msra.mxu0 0.0
    %2701 = vmatprep.subr.mxu0 0.0
    %2702 = vmatpush1.msra.mxu0 0.0
    %2703 = vmatprep.subr.mxu0 0.0
    %2704 = vmatpush1.msra.mxu0 0.0
    %2705 = vmatprep.subr.mxu0 0.0
    %2706 = vmatpush1.msra.mxu0 0.0
    %2707 = vmatprep.subr.mxu0 0.0
    %2708 = vmatpush1.msra.mxu0 0.0
    %2709 = vmatprep.subr.mxu0 0.0
    %2710 = vmatpush1.msra.mxu0 0.0
    %2711 = vmatprep.subr.mxu0 0.0
    %2712 = vmatpush1.msra.mxu0 0.0
    %2713 = vmatprep.subr.mxu0 0.0
    %2714 = vmatpush1.msra.mxu0 0.0
    %2715 = vmatprep.subr.mxu0 0.0
    %2716 = vmatpush1.msra.mxu0 0.0
    %2717 = vmatprep.subr.mxu0 0.0
    %2718 = vmatpush1.msra.mxu0 0.0
    %2719 = vmatprep.subr.mxu0 0.0
    %2720 = vmatpush1.msra.mxu0 0.0
    %2721 = vmatprep.subr.mxu0 0.0
    %2722 = vmatpush1.msra.mxu0 0.0
    %2723 = vmatprep.subr.mxu0 0.0
    %2724 = vmatpush1.msra.mxu0 0.0
    %2725 = vmatprep.subr.mxu0 0.0
    %2726 = vmatpush1.msra.mxu0 0.0
    %2727 = vmatprep.subr.mxu0 0.0
    %2728 = vmatpush1.msra.mxu0 0.0
    %2729 = vmatprep.subr.mxu0 0.0
    %2730 = vmatpush1.msra.mxu0 0.0
    %2731 = vmatprep.subr.mxu0 0.0
    %2732 = vmatpush1.msra.mxu0 0.0
    %2733 = vmatprep.subr.mxu0 0.0
    %2734 = vmatpush1.msra.mxu0 0.0
    %2735 = vmatprep.subr.mxu0 0.0
    %2736 = vmatpush1.msra.mxu0 0.0
    %2737 = vmatprep.subr.mxu0 0.0
    %2738 = vmatpush1.msra.mxu0 0.0
    %2739 = vmatprep.mubr.f32.mxu0 0.0
    %v2740 = vand.u32 %v2561, 4294901760
    %2741 = vmatmul.mubr.f32.gmra.mrb[0].mxu0 %v2740
    %v2742 = vpop.f32.mrb[0].mxu0
    %v2743 = vadd.f32 %v2642, %v2742
    %v2744 = vpop.f32.mrb[0].mxu0
    %2745 = vmatprep.mubr.f32.mxu0 0.0
    %v2746 = vand.u32 %v2564, 4294901760
    %2747 = vmatmul.mubr.f32.gmra.mrb[0].mxu0 %v2746
    %v2748 = vpop.f32.mrb[0].mxu0
    %v2749 = vadd.f32 %v2652, %v2748
    %v2750 = vpop.f32.mrb[0].mxu0
    %2751 = vdwg.mxu0
    %2752 = vmatprep.subr.mxu0 0.0
    %v2753 = vand.u32 %v2551, 4294901760
    %v2754 = vsub.f32 %v2551, %v2753
    %2755 = vmatpush1.msra.mxu0 %v2754
    %2756 = vmatprep.subr.mxu0 0.0
    %v2757 = vand.u32 %v2552, 4294901760
    %v2758 = vsub.f32 %v2552, %v2757
    %2759 = vmatpush1.msra.mxu0 %v2758
    %2760 = vmatprep.subr.mxu0 0.0
    %v2761 = vand.u32 %v2553, 4294901760
    %v2762 = vsub.f32 %v2553, %v2761
    %2763 = vmatpush1.msra.mxu0 %v2762
    %2764 = vmatprep.subr.mxu0 0.0
    %v2765 = vand.u32 %v2554, 4294901760
    %v2766 = vsub.f32 %v2554, %v2765
    %2767 = vmatpush1.msra.mxu0 %v2766
    %2768 = vmatprep.subr.mxu0 0.0
    %2769 = vmatpush1.msra.mxu0 0.0
    %2770 = vmatprep.subr.mxu0 0.0
    %2771 = vmatpush1.msra.mxu0 0.0
    %2772 = vmatprep.subr.mxu0 0.0
    %2773 = vmatpush1.msra.mxu0 0.0
    %2774 = vmatprep.subr.mxu0 0.0
    %2775 = vmatpush1.msra.mxu0 0.0
    %2776 = vmatprep.subr.mxu0 0.0
    %2777 = vmatpush1.msra.mxu0 0.0
    %2778 = vmatprep.subr.mxu0 0.0
    %2779 = vmatpush1.msra.mxu0 0.0
    %2780 = vmatprep.subr.mxu0 0.0
    %2781 = vmatpush1.msra.mxu0 0.0
    %2782 = vmatprep.subr.mxu0 0.0
    %2783 = vmatpush1.msra.mxu0 0.0
    %2784 = vmatprep.subr.mxu0 0.0
    %2785 = vmatpush1.msra.mxu0 0.0
    %2786 = vmatprep.subr.mxu0 0.0
    %2787 = vmatpush1.msra.mxu0 0.0
    %2788 = vmatprep.subr.mxu0 0.0
    %2789 = vmatpush1.msra.mxu0 0.0
    %2790 = vmatprep.subr.mxu0 0.0
    %2791 = vmatpush1.msra.mxu0 0.0
    %2792 = vmatprep.subr.mxu0 0.0
    %2793 = vmatpush1.msra.mxu0 0.0
    %2794 = vmatprep.subr.mxu0 0.0
    %2795 = vmatpush1.msra.mxu0 0.0
    %2796 = vmatprep.subr.mxu0 0.0
    %2797 = vmatpush1.msra.mxu0 0.0
    %2798 = vmatprep.subr.mxu0 0.0
    %2799 = vmatpush1.msra.mxu0 0.0
    %2800 = vmatprep.subr.mxu0 0.0
    %2801 = vmatpush1.msra.mxu0 0.0
    %2802 = vmatprep.subr.mxu0 0.0
    %2803 = vmatpush1.msra.mxu0 0.0
    %2804 = vmatprep.subr.mxu0 0.0
    %2805 = vmatpush1.msra.mxu0 0.0
    %2806 = vmatprep.subr.mxu0 0.0
    %2807 = vmatpush1.msra.mxu0 0.0
    %2808 = vmatprep.subr.mxu0 0.0
    %2809 = vmatpush1.msra.mxu0 0.0
    %2810 = vmatprep.subr.mxu0 0.0
    %2811 = vmatpush1.msra.mxu0 0.0
    %2812 = vmatprep.subr.mxu0 0.0
    %2813 = vmatpush1.msra.mxu0 0.0
    %2814 = vmatprep.subr.mxu0 0.0
    %2815 = vmatpush1.msra.mxu0 0.0
    %2816 = vmatprep.subr.mxu0 0.0
    %2817 = vmatpush1.msra.mxu0 0.0
    %2818 = vmatprep.subr.mxu0 0.0
    %2819 = vmatpush1.msra.mxu0 0.0
    %2820 = vmatprep.subr.mxu0 0.0
    %2821 = vmatpush1.msra.mxu0 0.0
    %2822 = vmatprep.subr.mxu0 0.0
    %2823 = vmatpush1.msra.mxu0 0.0
    %2824 = vmatprep.mubr.f32.mxu0 0.0
    %v2825 = vand.u32 %v2561, 4294901760
    %v2826 = vsub.f32 %v2561, %v2825
    %2827 = vmatmul.mubr.f32.gmra.mrb[0].mxu0 %v2826
    %v2828 = vpop.f32.mrb[0].mxu0
    %v2829 = vadd.f32 %v2743, %v2828
    %v2830 = vpop.f32.mrb[0].mxu0
    %2831 = vmatprep.mubr.f32.mxu0 0.0
    %v2832 = vand.u32 %v2564, 4294901760
    %v2833 = vsub.f32 %v2564, %v2832
    %2834 = vmatmul.mubr.f32.gmra.mrb[0].mxu0 %v2833
    %v2835 = vpop.f32.mrb[0].mxu0
    %v2836 = vadd.f32 %v2749, %v2835
    %v2837 = vpop.f32.mrb[0].mxu0
    %2838 = vdwg.mxu0
    %2839 = vmatprep.subr.mxu0 0.0
    %v2840 = vand.u32 %v2551, 4294901760
    %2841 = vmatpush1.msra.mxu0 %v2840
    %2842 = vmatprep.subr.mxu0 0.0
    %v2843 = vand.u32 %v2552, 4294901760
    %2844 = vmatpush1.msra.mxu0 %v2843
    %2845 = vmatprep.subr.mxu0 0.0
    %v2846 = vand.u32 %v2553, 4294901760
    %2847 = vmatpush1.msra.mxu0 %v2846
    %2848 = vmatprep.subr.mxu0 0.0
    %v2849 = vand.u32 %v2554, 4294901760
    %2850 = vmatpush1.msra.mxu0 %v2849
    %2851 = vmatprep.subr.mxu0 0.0
    %2852 = vmatpush1.msra.mxu0 0.0
    %2853 = vmatprep.subr.mxu0 0.0
    %2854 = vmatpush1.msra.mxu0 0.0
    %2855 = vmatprep.subr.mxu0 0.0
    %2856 = vmatpush1.msra.mxu0 0.0
    %2857 = vmatprep.subr.mxu0 0.0
    %2858 = vmatpush1.msra.mxu0 0.0
    %2859 = vmatprep.subr.mxu0 0.0
    %2860 = vmatpush1.msra.mxu0 0.0
    %2861 = vmatprep.subr.mxu0 0.0
    %2862 = vmatpush1.msra.mxu0 0.0
    %2863 = vmatprep.subr.mxu0 0.0
    %2864 = vmatpush1.msra.mxu0 0.0
    %2865 = vmatprep.subr.mxu0 0.0
    %2866 = vmatpush1.msra.mxu0 0.0
    %2867 = vmatprep.subr.mxu0 0.0
    %2868 = vmatpush1.msra.mxu0 0.0
    %2869 = vmatprep.subr.mxu0 0.0
    %2870 = vmatpush1.msra.mxu0 0.0
    %2871 = vmatprep.subr.mxu0 0.0
    %2872 = vmatpush1.msra.mxu0 0.0
    %2873 = vmatprep.subr.mxu0 0.0
    %2874 = vmatpush1.msra.mxu0 0.0
    %2875 = vmatprep.subr.mxu0 0.0
    %2876 = vmatpush1.msra.mxu0 0.0
    %2877 = vmatprep.subr.mxu0 0.0
    %2878 = vmatpush1.msra.mxu0 0.0
    %2879 = vmatprep.subr.mxu0 0.0
    %2880 = vmatpush1.msra.mxu0 0.0
    %2881 = vmatprep.subr.mxu0 0.0
    %2882 = vmatpush1.msra.mxu0 0.0
    %2883 = vmatprep.subr.mxu0 0.0
    %2884 = vmatpush1.msra.mxu0 0.0
    %2885 = vmatprep.subr.mxu0 0.0
    %2886 = vmatpush1.msra.mxu0 0.0
    %2887 = vmatprep.subr.mxu0 0.0
    %2888 = vmatpush1.msra.mxu0 0.0
    %2889 = vmatprep.subr.mxu0 0.0
    %2890 = vmatpush1.msra.mxu0 0.0
    %2891 = vmatprep.subr.mxu0 0.0
    %2892 = vmatpush1.msra.mxu0 0.0
    %2893 = vmatprep.subr.mxu0 0.0
    %2894 = vmatpush1.msra.mxu0 0.0
    %2895 = vmatprep.subr.mxu0 0.0
    %2896 = vmatpush1.msra.mxu0 0.0
    %2897 = vmatprep.subr.mxu0 0.0
    %2898 = vmatpush1.msra.mxu0 0.0
    %2899 = vmatprep.subr.mxu0 0.0
    %2900 = vmatpush1.msra.mxu0 0.0
    %2901 = vmatprep.subr.mxu0 0.0
    %2902 = vmatpush1.msra.mxu0 0.0
    %2903 = vmatprep.subr.mxu0 0.0
    %2904 = vmatpush1.msra.mxu0 0.0
    %2905 = vmatprep.subr.mxu0 0.0
    %2906 = vmatpush1.msra.mxu0 0.0
    %2907 = vmatprep.mubr.f32.mxu0 0.0
    %v2908 = vand.u32 %v2561, 4294901760
    %v2909 = vsub.f32 %v2561, %v2908
    %v2910 = vand.u32 %v2909, 4294901760
    %2911 = vmatmul.mubr.f32.gmra.mrb[0].mxu0 %v2910
    %v2912 = vpop.f32.mrb[0].mxu0
    %v2913 = vadd.f32 %v2829, %v2912
    %v2914 = vpop.f32.mrb[0].mxu0
    %2915 = vmatprep.mubr.f32.mxu0 0.0
    %v2916 = vand.u32 %v2564, 4294901760
    %v2917 = vsub.f32 %v2564, %v2916
    %v2918 = vand.u32 %v2917, 4294901760
    %2919 = vmatmul.mubr.f32.gmra.mrb[0].mxu0 %v2918
    %v2920 = vpop.f32.mrb[0].mxu0
    %v2921 = vadd.f32 %v2836, %v2920
    %v2922 = vpop.f32.mrb[0].mxu0
    %2923 = vdwg.mxu0
    %2924 = vmatprep.subr.mxu0 0.0
    %v2925 = vand.u32 %v2551, 4294901760
    %v2926 = vsub.f32 %v2551, %v2925
    %v2927 = vand.u32 %v2926, 4294901760
    %2928 = vmatpush1.msra.mxu0 %v2927
    %2929 = vmatprep.subr.mxu0 0.0
    %v2930 = vand.u32 %v2552, 4294901760
    %v2931 = vsub.f32 %v2552, %v2930
    %v2932 = vand.u32 %v2931, 4294901760
    %2933 = vmatpush1.msra.mxu0 %v2932
    %2934 = vmatprep.subr.mxu0 0.0
    %v2935 = vand.u32 %v2553, 4294901760
    %v2936 = vsub.f32 %v2553, %v2935
    %v2937 = vand.u32 %v2936, 4294901760
    %2938 = vmatpush1.msra.mxu0 %v2937
    %2939 = vmatprep.subr.mxu0 0.0
    %v2940 = vand.u32 %v2554, 4294901760
    %v2941 = vsub.f32 %v2554, %v2940
    %v2942 = vand.u32 %v2941, 4294901760
    %2943 = vmatpush1.msra.mxu0 %v2942
    %2944 = vmatprep.subr.mxu0 0.0
    %2945 = vmatpush1.msra.mxu0 0.0
    %2946 = vmatprep.subr.mxu0 0.0
    %2947 = vmatpush1.msra.mxu0 0.0
    %2948 = vmatprep.subr.mxu0 0.0
    %2949 = vmatpush1.msra.mxu0 0.0
    %2950 = vmatprep.subr.mxu0 0.0
    %2951 = vmatpush1.msra.mxu0 0.0
    %2952 = vmatprep.subr.mxu0 0.0
    %2953 = vmatpush1.msra.mxu0 0.0
    %2954 = vmatprep.subr.mxu0 0.0
    %2955 = vmatpush1.msra.mxu0 0.0
    %2956 = vmatprep.subr.mxu0 0.0
    %2957 = vmatpush1.msra.mxu0 0.0
    %2958 = vmatprep.subr.mxu0 0.0
    %2959 = vmatpush1.msra.mxu0 0.0
    %2960 = vmatprep.subr.mxu0 0.0
    %2961 = vmatpush1.msra.mxu0 0.0
    %2962 = vmatprep.subr.mxu0 0.0
    %2963 = vmatpush1.msra.mxu0 0.0
    %2964 = vmatprep.subr.mxu0 0.0
    %2965 = vmatpush1.msra.mxu0 0.0
    %2966 = vmatprep.subr.mxu0 0.0
    %2967 = vmatpush1.msra.mxu0 0.0
    %2968 = vmatprep.subr.mxu0 0.0
    %2969 = vmatpush1.msra.mxu0 0.0
    %2970 = vmatprep.subr.mxu0 0.0
    %2971 = vmatpush1.msra.mxu0 0.0
    %2972 = vmatprep.subr.mxu0 0.0
    %2973 = vmatpush1.msra.mxu0 0.0
    %2974 = vmatprep.subr.mxu0 0.0
    %2975 = vmatpush1.msra.mxu0 0.0
    %2976 = vmatprep.subr.mxu0 0.0
    %2977 = vmatpush1.msra.mxu0 0.0
    %2978 = vmatprep.subr.mxu0 0.0
    %2979 = vmatpush1.msra.mxu0 0.0
    %2980 = vmatprep.subr.mxu0 0.0
    %2981 = vmatpush1.msra.mxu0 0.0
    %2982 = vmatprep.subr.mxu0 0.0
    %2983 = vmatpush1.msra.mxu0 0.0
    %2984 = vmatprep.subr.mxu0 0.0
    %2985 = vmatpush1.msra.mxu0 0.0
    %2986 = vmatprep.subr.mxu0 0.0
    %2987 = vmatpush1.msra.mxu0 0.0
    %2988 = vmatprep.subr.mxu0 0.0
    %2989 = vmatpush1.msra.mxu0 0.0
    %2990 = vmatprep.subr.mxu0 0.0
    %2991 = vmatpush1.msra.mxu0 0.0
    %2992 = vmatprep.subr.mxu0 0.0
    %2993 = vmatpush1.msra.mxu0 0.0
    %2994 = vmatprep.subr.mxu0 0.0
    %2995 = vmatpush1.msra.mxu0 0.0
    %2996 = vmatprep.subr.mxu0 0.0
    %2997 = vmatpush1.msra.mxu0 0.0
    %2998 = vmatprep.subr.mxu0 0.0
    %2999 = vmatpush1.msra.mxu0 0.0
    %3000 = vmatprep.mubr.f32.mxu0 0.0
    %v3001 = vand.u32 %v2561, 4294901760
    %3002 = vmatmul.mubr.f32.gmra.mrb[0].mxu0 %v3001
    %v3003 = vpop.f32.mrb[0].mxu0
    %v3004 = vadd.f32 %v2913, %v3003
    %v3005 = vpop.f32.mrb[0].mxu0
    %3006 = vmatprep.mubr.f32.mxu0 0.0
    %v3007 = vand.u32 %v2564, 4294901760
    %3008 = vmatmul.mubr.f32.gmra.mrb[0].mxu0 %v3007
    %v3009 = vpop.f32.mrb[0].mxu0
    %v3010 = vadd.f32 %v2921, %v3009
    %v3011 = vpop.f32.mrb[0].mxu0
    %3012 = vdwg.mxu0
    %3013 = vmatprep.subr.mxu0 0.0
    %v3014 = vand.u32 %v2551, 4294901760
    %3015 = vmatpush1.msra.mxu0 %v3014
    %3016 = vmatprep.subr.mxu0 0.0
    %v3017 = vand.u32 %v2552, 4294901760
    %3018 = vmatpush1.msra.mxu0 %v3017
    %3019 = vmatprep.subr.mxu0 0.0
    %v3020 = vand.u32 %v2553, 4294901760
    %3021 = vmatpush1.msra.mxu0 %v3020
    %3022 = vmatprep.subr.mxu0 0.0
    %v3023 = vand.u32 %v2554, 4294901760
    %3024 = vmatpush1.msra.mxu0 %v3023
    %3025 = vmatprep.subr.mxu0 0.0
    %3026 = vmatpush1.msra.mxu0 0.0
    %3027 = vmatprep.subr.mxu0 0.0
    %3028 = vmatpush1.msra.mxu0 0.0
    %3029 = vmatprep.subr.mxu0 0.0
    %3030 = vmatpush1.msra.mxu0 0.0
    %3031 = vmatprep.subr.mxu0 0.0
    %3032 = vmatpush1.msra.mxu0 0.0
    %3033 = vmatprep.subr.mxu0 0.0
    %3034 = vmatpush1.msra.mxu0 0.0
    %3035 = vmatprep.subr.mxu0 0.0
    %3036 = vmatpush1.msra.mxu0 0.0
    %3037 = vmatprep.subr.mxu0 0.0
    %3038 = vmatpush1.msra.mxu0 0.0
    %3039 = vmatprep.subr.mxu0 0.0
    %3040 = vmatpush1.msra.mxu0 0.0
    %3041 = vmatprep.subr.mxu0 0.0
    %3042 = vmatpush1.msra.mxu0 0.0
    %3043 = vmatprep.subr.mxu0 0.0
    %3044 = vmatpush1.msra.mxu0 0.0
    %3045 = vmatprep.subr.mxu0 0.0
    %3046 = vmatpush1.msra.mxu0 0.0
    %3047 = vmatprep.subr.mxu0 0.0
    %3048 = vmatpush1.msra.mxu0 0.0
    %3049 = vmatprep.subr.mxu0 0.0
    %3050 = vmatpush1.msra.mxu0 0.0
    %3051 = vmatprep.subr.mxu0 0.0
    %3052 = vmatpush1.msra.mxu0 0.0
    %3053 = vmatprep.subr.mxu0 0.0
    %3054 = vmatpush1.msra.mxu0 0.0
    %3055 = vmatprep.subr.mxu0 0.0
    %3056 = vmatpush1.msra.mxu0 0.0
    %3057 = vmatprep.subr.mxu0 0.0
    %3058 = vmatpush1.msra.mxu0 0.0
    %3059 = vmatprep.subr.mxu0 0.0
    %3060 = vmatpush1.msra.mxu0 0.0
    %3061 = vmatprep.subr.mxu0 0.0
    %3062 = vmatpush1.msra.mxu0 0.0
    %3063 = vmatprep.subr.mxu0 0.0
    %3064 = vmatpush1.msra.mxu0 0.0
    %3065 = vmatprep.subr.mxu0 0.0
    %3066 = vmatpush1.msra.mxu0 0.0
    %3067 = vmatprep.subr.mxu0 0.0
    %3068 = vmatpush1.msra.mxu0 0.0
    %3069 = vmatprep.subr.mxu0 0.0
    %3070 = vmatpush1.msra.mxu0 0.0
    %3071 = vmatprep.subr.mxu0 0.0
    %3072 = vmatpush1.msra.mxu0 0.0
    %3073 = vmatprep.subr.mxu0 0.0
    %3074 = vmatpush1.msra.mxu0 0.0
    %3075 = vmatprep.subr.mxu0 0.0
    %3076 = vmatpush1.msra.mxu0 0.0
    %3077 = vmatprep.subr.mxu0 0.0
    %3078 = vmatpush1.msra.mxu0 0.0
    %3079 = vmatprep.subr.mxu0 0.0
    %3080 = vmatpush1.msra.mxu0 0.0
    %3081 = vmatprep.mubr.f32.mxu0 0.0
    %v3082 = vand.u32 %v2561, 4294901760
    %3083 = vmatmul.mubr.f32.gmra.mrb[0].mxu0 %v3082
    %v3084 = vpop.f32.mrb[0].mxu0
    %v3085 = vadd.f32 %v3004, %v3084
    %v3086 = vpop.f32.mrb[0].mxu0
    %3087 = vmatprep.mubr.f32.mxu0 0.0
    %v3088 = vand.u32 %v2564, 4294901760
    %3089 = vmatmul.mubr.f32.gmra.mrb[0].mxu0 %v3088
    %v3090 = vpop.f32.mrb[0].mxu0
    %v3091 = vadd.f32 %v3010, %v3090
    %v3092 = vpop.f32.mrb[0].mxu0
    %3093 = vdwg.mxu0
    %v3094 = vadd.f32 %v98, %v3085
    %v3095 = vadd.f32 %v99, %v3091
    %v3096 = vsel %vm111, %v3094, 0.0
    %3097 = vadd.xlane.f32.xlu0 %v3096
    %v3098 = vpop.xlane.xlu0 %3097
    %v3099 = vsel %vm111, %v3095, 0.0
    %3100 = vadd.xlane.f32.xlu0 %v3099
    %v3101 = vpop.xlane.xlu0 %3100
    %v3102 = vrcp.pop 32.0
    %v3103 = vmul.f32 %v3098, %v3102
    %v3104 = vmul.f32 %v3101, %v3102
    %v3105 = vsub.f32 %v3094, %v3103
    %v3106 = vsub.f32 %v3095, %v3104
    %v3107 = vmul.f32 %v3105, %v3105
    %v3108 = vmul.f32 %v3106, %v3106
    %v3109 = vsel %vm111, %v3107, 0.0
    %3110 = vadd.xlane.f32.xlu0 %v3109
    %v3111 = vpop.xlane.xlu0 %3110
    %v3112 = vsel %vm111, %v3108, 0.0
    %3113 = vadd.xlane.f32.xlu0 %v3112
    %v3114 = vpop.xlane.xlu0 %3113
    %v3115 = vmul.f32 %v3111, %v3102
    %v3116 = vmul.f32 %v3114, %v3102
    %v3117 = vadd.f32 %v3115, 1e-05
    %v3118 = vadd.f32 %v3116, 1e-05
    %v3119 = vrsqrt.pop %v3117
    %v3120 = vrsqrt.pop %v3118
    %v3121 = vmul.f32 %v3105, %v3119
    %v3122 = vmul.f32 %v3106, %v3120
    %v3123 = vld [vmem:[%s4 + $0x1] sm:$0x1]
    %v3124 = vlaneseq
    %v3125 = vshrl.u32 %v3124, 7
    %v3126 = vsub.s32 0, %v3125
    %v3127 = vrot.slane %v3123, %v3126
    %v3128 = vmul.f32 %v3121, %v3127
    %v3129 = vmul.f32 %v3122, %v3127
    %v3130 = vld [vmem:[%s4 + $0x2] sm:$0x1]
    %v3131 = vlaneseq
    %v3132 = vshrl.u32 %v3131, 7
    %v3133 = vsub.s32 0, %v3132
    %v3134 = vrot.slane %v3130, %v3133
    %v3135 = vadd.f32 %v3128, %v3134
    %v3136 = vadd.f32 %v3129, %v3134
    %3137 = vst.msk [vmem:[#allocation11] sm:$0xff] %vm111, %v3135
    %3138 = vst.msk [vmem:[#allocation11 + $0x8] sm:$0xff] %vm111, %v3136
    // Predicated region
    $region54: #{self_attention_layer.1} parent=1 // pred_check
      _
    $region55: #{self_attention_layer.1} parent=1 // pred_check_branch
      %3140 = sbr.rel (0) target = $region57
    $region56: #{self_attention_layer.1} parent=1 // pred_region
      %s3142 = ssub.s32 256, 256
      %3143 = vsyncadd [#allocation4], %s3142
      %s3144 = sshll.u32 [#allocation11], 4
      %s3145 = int_to_ptr.vmem [resolvable:$true] %s3144
      %3150 = dma.vmem_to_hbm [thread:$0]  %s3145, 256, %s8, [#allocation4], 128, 128, 8
    $region57: #{self_attention_layer.1} parent=1 // pred_fallthru
      _
    // Predicated region
    $region58: #{self_attention_layer.1} parent=1 // pred_check
      _
    $region59: #{self_attention_layer.1} parent=1 // pred_check_branch
      %3152 = sbr.rel (0) target = $region61
    $region60: #{self_attention_layer.1} parent=1 // pred_region
      %3153 = dma.done [#allocation4], 256
    $region61: #{self_attention_layer.1} parent=1 // pred_fallthru
      _
    %3154 = vsyncpa [#allocation3], 1
    %3155 = vsyncpa [#allocation6], 1
    %3156 = vsyncpa [#allocation9], 1
    %3157 = vsyncpa [#allocation4], 1

</llo_original>
